<compile_context>
chip_gen: v7x
topology: tpu7x:2x2x1
jax: 0.10.0
libtpu: 0.0.40
codegen_flags: <defaults>
</compile_context>

<pallas_src>
import functools

import jax
import jax.numpy as jnp
from jax.experimental import pallas as pl
from jax.experimental.pallas import tpu as pltpu


def _residual_conv2d_kernel(xp_ref, w_ref, b_ref, o_ref, *, H, W, C):
    """Fused 3x3 conv + bias + residual for one batch element.

    xp_ref: (1, H+2, W+2, C)  zero-padded NHWC input tile (VMEM)
    w_ref : (9, C, C)         tap-major weights; identity is pre-folded into
                              the centre tap so the residual add is free
    b_ref : (1, C)            bias
    o_ref : (1, H, W, C)      output tile
    """
    acc = None
    for di in range(3):
        for dj in range(3):
            # Static shifted window -> (H, W, C); channels stay on lanes.
            # W is a multiple of 8, so the (H, W, C) -> (H*W, C) merge is a
            # layout-preserving relabel (no copy).
            patch = xp_ref[0, di:di + H, dj:dj + W, :].reshape(H * W, C)
            contrib = jnp.dot(patch, w_ref[di * 3 + dj],
                              preferred_element_type=jnp.float32)
            acc = contrib if acc is None else acc + contrib
    o_ref[0] = (acc + b_ref[...]).reshape(H, W, C)


def residual_conv2d(x, w, b):
    """PyTorch Residual_Conv2D forward.

    x: (B, C, H, W), w: (C, C, 3, 3) [OIHW], b: (C,)  ->  (B, C, H, W) float32.
    """
    B, C, H, W = x.shape
    # One-time layout glue (NCHW -> NHWC + zero pad) outside the kernel; all
    # arithmetic (9 taps, bias, residual) runs inside a single pallas_call.
    x_nhwc = jnp.transpose(x, (0, 2, 3, 1)).astype(jnp.float32)
    xp = jnp.pad(x_nhwc, ((0, 0), (1, 1), (1, 1), (0, 0)))
    # Tap-major weights: w_taps[di*3+dj][ci, co] = w[co, ci, di, dj].
    w_taps = jnp.transpose(w, (2, 3, 1, 0)).reshape(9, C, C).astype(jnp.float32)
    # Fold the residual (+x) into the centre tap: conv(x, W) + x == conv(x, W + I@centre).
    w_taps = w_taps.at[4].add(jnp.eye(C, dtype=jnp.float32))
    bias = b.reshape(1, C).astype(jnp.float32)

    out_nhwc = pl.pallas_call(
        functools.partial(_residual_conv2d_kernel, H=H, W=W, C=C),
        out_shape=jax.ShapeDtypeStruct((B, H, W, C), jnp.float32),
        grid=(B,),
        in_specs=[
            pl.BlockSpec((1, H + 2, W + 2, C), lambda bi: (bi, 0, 0, 0)),
            pl.BlockSpec((9, C, C), lambda bi: (0, 0, 0)),
            pl.BlockSpec((1, C), lambda bi: (0, 0)),
        ],
        out_specs=pl.BlockSpec((1, H, W, C), lambda bi: (bi, 0, 0, 0)),
        compiler_params=pltpu.CompilerParams(
            dimension_semantics=("parallel",)),
    )(xp, w_taps, bias)
    return jnp.transpose(out_nhwc, (0, 3, 1, 2))


if __name__ == "__main__":
    B, C, H, W = 2, 16, 16, 16
    key = jax.random.PRNGKey(0)
    kx, kw, kb = jax.random.split(key, 3)
    x = jax.random.normal(kx, (B, C, H, W), jnp.float32)
    w = jax.random.normal(kw, (C, C, 3, 3), jnp.float32) * 0.1
    b = jax.random.normal(kb, (C,), jnp.float32) * 0.1

    out = residual_conv2d(x, w, b)
    out = jax.block_until_ready(out)
    assert out.shape == (B, C, H, W), out.shape
    assert bool(jnp.all(jnp.isfinite(out)))

    # Reference check against XLA's conv (same semantics as nn.Conv2d + residual).
    ref = jax.lax.conv_general_dilated(
        x, w, window_strides=(1, 1), padding=((1, 1), (1, 1)),
        dimension_numbers=("NCHW", "OIHW", "NCHW"),
    ) + b[None, :, None, None] + x
    assert bool(jnp.allclose(out, ref, atol=1e-3, rtol=1e-3))

    print("KERNEL_OK")
</pallas_src>

<mosaic_0001>
module attributes {stable_mosaic.version = 11 : i64} {
  func.func @_residual_conv2d_kernel(%arg0: i32, %arg1: memref<1x18x18x16xf32, #tpu.memory_space<vmem>>, %arg2: memref<9x16x16xf32, #tpu.memory_space<vmem>>, %arg3: memref<1x16xf32, #tpu.memory_space<vmem>>, %arg4: memref<1x16x16x16xf32, #tpu.memory_space<vmem>>) attributes {dimension_semantics = [#tpu.dimension_semantics<parallel>], iteration_bounds = array<i64: 2>, scalar_prefetch = 0 : i64, scratch_operands = 0 : i64, tpu.core_type = #tpu.core_type<tc>, window_params = [{transform_indices = @transform_0, window_bounds = array<i64: 1, 18, 18, 16>}, {pipeline_mode = #tpu.pipeline_mode<synchronous>, transform_indices = @transform_1, window_bounds = array<i64: 9, 16, 16>}, {pipeline_mode = #tpu.pipeline_mode<synchronous>, transform_indices = @transform_2, window_bounds = array<i64: 1, 16>}, {transform_indices = @transform_3, window_bounds = array<i64: 1, 16, 16, 16>}]} {
    %c0 = arith.constant 0 : index
    %c0_0 = arith.constant 0 : index
    %c0_1 = arith.constant 0 : index
    %c0_2 = arith.constant 0 : index
    %0 = vector.load %arg1[%c0, %c0_0, %c0_1, %c0_2] : memref<1x18x18x16xf32, #tpu.memory_space<vmem>>, vector<1x16x16x16xf32>
    %1 = vector.shape_cast %0 : vector<1x16x16x16xf32> to vector<16x16x16xf32>
    %2 = vector.shape_cast %1 : vector<16x16x16xf32> to vector<256x16xf32>
    %c0_3 = arith.constant 0 : index
    %c0_4 = arith.constant 0 : index
    %c0_5 = arith.constant 0 : index
    %3 = vector.load %arg2[%c0_3, %c0_4, %c0_5] : memref<9x16x16xf32, #tpu.memory_space<vmem>>, vector<1x16x16xf32>
    %4 = vector.shape_cast %3 : vector<1x16x16xf32> to vector<16x16xf32>
    %cst = arith.constant dense<0.000000e+00> : vector<256x16xf32>
    %5 = tpu.matmul %2, %4, %cst {dimension_numbers = #tpu.dot_dimension_numbers<[1], [0], [0], [1], [0, 0, 1, 1], [], []>} : vector<256x16xf32>, vector<16x16xf32>, vector<256x16xf32> -> vector<256x16xf32>
    %c0_6 = arith.constant 0 : index
    %c0_7 = arith.constant 0 : index
    %c1 = arith.constant 1 : index
    %c0_8 = arith.constant 0 : index
    %6 = vector.load %arg1[%c0_6, %c0_7, %c1, %c0_8] : memref<1x18x18x16xf32, #tpu.memory_space<vmem>>, vector<1x16x16x16xf32>
    %7 = vector.shape_cast %6 : vector<1x16x16x16xf32> to vector<16x16x16xf32>
    %8 = vector.shape_cast %7 : vector<16x16x16xf32> to vector<256x16xf32>
    %c1_9 = arith.constant 1 : index
    %c0_10 = arith.constant 0 : index
    %c0_11 = arith.constant 0 : index
    %9 = vector.load %arg2[%c1_9, %c0_10, %c0_11] : memref<9x16x16xf32, #tpu.memory_space<vmem>>, vector<1x16x16xf32>
    %10 = vector.shape_cast %9 : vector<1x16x16xf32> to vector<16x16xf32>
    %cst_12 = arith.constant dense<0.000000e+00> : vector<256x16xf32>
    %11 = tpu.matmul %8, %10, %cst_12 {dimension_numbers = #tpu.dot_dimension_numbers<[1], [0], [0], [1], [0, 0, 1, 1], [], []>} : vector<256x16xf32>, vector<16x16xf32>, vector<256x16xf32> -> vector<256x16xf32>
    %12 = arith.addf %5, %11 : vector<256x16xf32>
    %c0_13 = arith.constant 0 : index
    %c0_14 = arith.constant 0 : index
    %c2 = arith.constant 2 : index
    %c0_15 = arith.constant 0 : index
    %13 = vector.load %arg1[%c0_13, %c0_14, %c2, %c0_15] : memref<1x18x18x16xf32, #tpu.memory_space<vmem>>, vector<1x16x16x16xf32>
    %14 = vector.shape_cast %13 : vector<1x16x16x16xf32> to vector<16x16x16xf32>
    %15 = vector.shape_cast %14 : vector<16x16x16xf32> to vector<256x16xf32>
    %c2_16 = arith.constant 2 : index
    %c0_17 = arith.constant 0 : index
    %c0_18 = arith.constant 0 : index
    %16 = vector.load %arg2[%c2_16, %c0_17, %c0_18] : memref<9x16x16xf32, #tpu.memory_space<vmem>>, vector<1x16x16xf32>
    %17 = vector.shape_cast %16 : vector<1x16x16xf32> to vector<16x16xf32>
    %cst_19 = arith.constant dense<0.000000e+00> : vector<256x16xf32>
    %18 = tpu.matmul %15, %17, %cst_19 {dimension_numbers = #tpu.dot_dimension_numbers<[1], [0], [0], [1], [0, 0, 1, 1], [], []>} : vector<256x16xf32>, vector<16x16xf32>, vector<256x16xf32> -> vector<256x16xf32>
    %19 = arith.addf %12, %18 : vector<256x16xf32>
    %c0_20 = arith.constant 0 : index
    %c1_21 = arith.constant 1 : index
    %c0_22 = arith.constant 0 : index
    %c0_23 = arith.constant 0 : index
    %20 = vector.load %arg1[%c0_20, %c1_21, %c0_22, %c0_23] : memref<1x18x18x16xf32, #tpu.memory_space<vmem>>, vector<1x16x16x16xf32>
    %21 = vector.shape_cast %20 : vector<1x16x16x16xf32> to vector<16x16x16xf32>
    %22 = vector.shape_cast %21 : vector<16x16x16xf32> to vector<256x16xf32>
    %c3 = arith.constant 3 : index
    %c0_24 = arith.constant 0 : index
    %c0_25 = arith.constant 0 : index
    %23 = vector.load %arg2[%c3, %c0_24, %c0_25] : memref<9x16x16xf32, #tpu.memory_space<vmem>>, vector<1x16x16xf32>
    %24 = vector.shape_cast %23 : vector<1x16x16xf32> to vector<16x16xf32>
    %cst_26 = arith.constant dense<0.000000e+00> : vector<256x16xf32>
    %25 = tpu.matmul %22, %24, %cst_26 {dimension_numbers = #tpu.dot_dimension_numbers<[1], [0], [0], [1], [0, 0, 1, 1], [], []>} : vector<256x16xf32>, vector<16x16xf32>, vector<256x16xf32> -> vector<256x16xf32>
    %26 = arith.addf %19, %25 : vector<256x16xf32>
    %c0_27 = arith.constant 0 : index
    %c1_28 = arith.constant 1 : index
    %c1_29 = arith.constant 1 : index
    %c0_30 = arith.constant 0 : index
    %27 = vector.load %arg1[%c0_27, %c1_28, %c1_29, %c0_30] : memref<1x18x18x16xf32, #tpu.memory_space<vmem>>, vector<1x16x16x16xf32>
    %28 = vector.shape_cast %27 : vector<1x16x16x16xf32> to vector<16x16x16xf32>
    %29 = vector.shape_cast %28 : vector<16x16x16xf32> to vector<256x16xf32>
    %c4 = arith.constant 4 : index
    %c0_31 = arith.constant 0 : index
    %c0_32 = arith.constant 0 : index
    %30 = vector.load %arg2[%c4, %c0_31, %c0_32] : memref<9x16x16xf32, #tpu.memory_space<vmem>>, vector<1x16x16xf32>
    %31 = vector.shape_cast %30 : vector<1x16x16xf32> to vector<16x16xf32>
    %cst_33 = arith.constant dense<0.000000e+00> : vector<256x16xf32>
    %32 = tpu.matmul %29, %31, %cst_33 {dimension_numbers = #tpu.dot_dimension_numbers<[1], [0], [0], [1], [0, 0, 1, 1], [], []>} : vector<256x16xf32>, vector<16x16xf32>, vector<256x16xf32> -> vector<256x16xf32>
    %33 = arith.addf %26, %32 : vector<256x16xf32>
    %c0_34 = arith.constant 0 : index
    %c1_35 = arith.constant 1 : index
    %c2_36 = arith.constant 2 : index
    %c0_37 = arith.constant 0 : index
    %34 = vector.load %arg1[%c0_34, %c1_35, %c2_36, %c0_37] : memref<1x18x18x16xf32, #tpu.memory_space<vmem>>, vector<1x16x16x16xf32>
    %35 = vector.shape_cast %34 : vector<1x16x16x16xf32> to vector<16x16x16xf32>
    %36 = vector.shape_cast %35 : vector<16x16x16xf32> to vector<256x16xf32>
    %c5 = arith.constant 5 : index
    %c0_38 = arith.constant 0 : index
    %c0_39 = arith.constant 0 : index
    %37 = vector.load %arg2[%c5, %c0_38, %c0_39] : memref<9x16x16xf32, #tpu.memory_space<vmem>>, vector<1x16x16xf32>
    %38 = vector.shape_cast %37 : vector<1x16x16xf32> to vector<16x16xf32>
    %cst_40 = arith.constant dense<0.000000e+00> : vector<256x16xf32>
    %39 = tpu.matmul %36, %38, %cst_40 {dimension_numbers = #tpu.dot_dimension_numbers<[1], [0], [0], [1], [0, 0, 1, 1], [], []>} : vector<256x16xf32>, vector<16x16xf32>, vector<256x16xf32> -> vector<256x16xf32>
    %40 = arith.addf %33, %39 : vector<256x16xf32>
    %c0_41 = arith.constant 0 : index
    %c2_42 = arith.constant 2 : index
    %c0_43 = arith.constant 0 : index
    %c0_44 = arith.constant 0 : index
    %41 = vector.load %arg1[%c0_41, %c2_42, %c0_43, %c0_44] : memref<1x18x18x16xf32, #tpu.memory_space<vmem>>, vector<1x16x16x16xf32>
    %42 = vector.shape_cast %41 : vector<1x16x16x16xf32> to vector<16x16x16xf32>
    %43 = vector.shape_cast %42 : vector<16x16x16xf32> to vector<256x16xf32>
    %c6 = arith.constant 6 : index
    %c0_45 = arith.constant 0 : index
    %c0_46 = arith.constant 0 : index
    %44 = vector.load %arg2[%c6, %c0_45, %c0_46] : memref<9x16x16xf32, #tpu.memory_space<vmem>>, vector<1x16x16xf32>
    %45 = vector.shape_cast %44 : vector<1x16x16xf32> to vector<16x16xf32>
    %cst_47 = arith.constant dense<0.000000e+00> : vector<256x16xf32>
    %46 = tpu.matmul %43, %45, %cst_47 {dimension_numbers = #tpu.dot_dimension_numbers<[1], [0], [0], [1], [0, 0, 1, 1], [], []>} : vector<256x16xf32>, vector<16x16xf32>, vector<256x16xf32> -> vector<256x16xf32>
    %47 = arith.addf %40, %46 : vector<256x16xf32>
    %c0_48 = arith.constant 0 : index
    %c2_49 = arith.constant 2 : index
    %c1_50 = arith.constant 1 : index
    %c0_51 = arith.constant 0 : index
    %48 = vector.load %arg1[%c0_48, %c2_49, %c1_50, %c0_51] : memref<1x18x18x16xf32, #tpu.memory_space<vmem>>, vector<1x16x16x16xf32>
    %49 = vector.shape_cast %48 : vector<1x16x16x16xf32> to vector<16x16x16xf32>
    %50 = vector.shape_cast %49 : vector<16x16x16xf32> to vector<256x16xf32>
    %c7 = arith.constant 7 : index
    %c0_52 = arith.constant 0 : index
    %c0_53 = arith.constant 0 : index
    %51 = vector.load %arg2[%c7, %c0_52, %c0_53] : memref<9x16x16xf32, #tpu.memory_space<vmem>>, vector<1x16x16xf32>
    %52 = vector.shape_cast %51 : vector<1x16x16xf32> to vector<16x16xf32>
    %cst_54 = arith.constant dense<0.000000e+00> : vector<256x16xf32>
    %53 = tpu.matmul %50, %52, %cst_54 {dimension_numbers = #tpu.dot_dimension_numbers<[1], [0], [0], [1], [0, 0, 1, 1], [], []>} : vector<256x16xf32>, vector<16x16xf32>, vector<256x16xf32> -> vector<256x16xf32>
    %54 = arith.addf %47, %53 : vector<256x16xf32>
    %c0_55 = arith.constant 0 : index
    %c2_56 = arith.constant 2 : index
    %c2_57 = arith.constant 2 : index
    %c0_58 = arith.constant 0 : index
    %55 = vector.load %arg1[%c0_55, %c2_56, %c2_57, %c0_58] : memref<1x18x18x16xf32, #tpu.memory_space<vmem>>, vector<1x16x16x16xf32>
    %56 = vector.shape_cast %55 : vector<1x16x16x16xf32> to vector<16x16x16xf32>
    %57 = vector.shape_cast %56 : vector<16x16x16xf32> to vector<256x16xf32>
    %c8 = arith.constant 8 : index
    %c0_59 = arith.constant 0 : index
    %c0_60 = arith.constant 0 : index
    %58 = vector.load %arg2[%c8, %c0_59, %c0_60] : memref<9x16x16xf32, #tpu.memory_space<vmem>>, vector<1x16x16xf32>
    %59 = vector.shape_cast %58 : vector<1x16x16xf32> to vector<16x16xf32>
    %cst_61 = arith.constant dense<0.000000e+00> : vector<256x16xf32>
    %60 = tpu.matmul %57, %59, %cst_61 {dimension_numbers = #tpu.dot_dimension_numbers<[1], [0], [0], [1], [0, 0, 1, 1], [], []>} : vector<256x16xf32>, vector<16x16xf32>, vector<256x16xf32> -> vector<256x16xf32>
    %61 = arith.addf %54, %60 : vector<256x16xf32>
    %c0_62 = arith.constant 0 : index
    %c0_63 = arith.constant 0 : index
    %62 = vector.load %arg3[%c0_62, %c0_63] : memref<1x16xf32, #tpu.memory_space<vmem>>, vector<1x16xf32>
    %63 = vector.broadcast %62 : vector<1x16xf32> to vector<256x16xf32>
    %64 = arith.addf %61, %63 : vector<256x16xf32>
    %65 = vector.shape_cast %64 : vector<256x16xf32> to vector<16x16x16xf32>
    %c0_64 = arith.constant 0 : index
    %c0_65 = arith.constant 0 : index
    %c0_66 = arith.constant 0 : index
    %c0_67 = arith.constant 0 : index
    %66 = vector.load %arg4[%c0_64, %c0_65, %c0_66, %c0_67] : memref<1x16x16x16xf32, #tpu.memory_space<vmem>>, vector<1x16x16x16xf32>
    %67 = vector.shape_cast %66 : vector<1x16x16x16xf32> to vector<16x16x16xf32>
    %68 = vector.shape_cast %65 : vector<16x16x16xf32> to vector<1x16x16x16xf32>
    tpu.vector_store %arg4[%c0_64, %c0_65, %c0_66, %c0_67], %68 {strides = array<i32>} : memref<1x16x16x16xf32, #tpu.memory_space<vmem>>, vector<1x16x16x16xf32>,
    return
  }
  func.func @transform_0(%arg0: i32) -> (i32, i32, i32, i32) {
    %c0_i32 = arith.constant 0 : i32
    %c0_i32_0 = arith.constant 0 : i32
    %c0_i32_1 = arith.constant 0 : i32
    %c0_i32_2 = arith.constant 0 : i32
    return %arg0, %c0_i32, %c0_i32_0, %c0_i32_1 : i32, i32, i32, i32
  }
  func.func @transform_1(%arg0: i32) -> (i32, i32, i32) {
    %c0_i32 = arith.constant 0 : i32
    %c0_i32_0 = arith.constant 0 : i32
    %c0_i32_1 = arith.constant 0 : i32
    %c0_i32_2 = arith.constant 0 : i32
    return %c0_i32, %c0_i32_0, %c0_i32_1 : i32, i32, i32
  }
  func.func @transform_2(%arg0: i32) -> (i32, i32) {
    %c0_i32 = arith.constant 0 : i32
    %c0_i32_0 = arith.constant 0 : i32
    %c0_i32_1 = arith.constant 0 : i32
    return %c0_i32, %c0_i32_0 : i32, i32
  }
  func.func @transform_3(%arg0: i32) -> (i32, i32, i32, i32) {
    %c0_i32 = arith.constant 0 : i32
    %c0_i32_0 = arith.constant 0 : i32
    %c0_i32_1 = arith.constant 0 : i32
    %c0_i32_2 = arith.constant 0 : i32
    return %arg0, %c0_i32, %c0_i32_0, %c0_i32_1 : i32, i32, i32, i32
  }
}

</mosaic_0001>

<llo_original>
// kernel: tpu_custom_call.1
$region0: #{tpu_custom_call.1}
  #allocation0 [shape = 'u32[]', space=smem, size = 0x4, offset = 0x4, fixed_abs, tag = 'smem constant byte address 0x4 - core index']
  #allocation1 [shape = 'u32[144,128]{1,0:T(1,128)}', space=vmem, size = 0x12000, scoped, tag = 'internal scratch']
  %s0 = inlined_call_operand.vmem [shape: f32[2,18,18,16], index: 0, kind: input, shape index: {}]
  %s1 = inlined_call_operand.vmem [shape: f32[9,16,16], index: 1, kind: input, shape index: {}]
  %s2 = inlined_call_operand.vmem [shape: f32[1,16], index: 2, kind: input, shape index: {}]
  %s3 = inlined_call_operand.hbm [shape: f32[2,16,16,16], index: 3, kind: output, shape index: {}]
  %s4 = sld [smem:[#allocation0]]
  $region45: #{tpu_custom_call.1} parent=0
    _
  %s6 = ssub.s32 1, %s4
  %s7 = scalar_select 0, %s6, %s4
  $region1: #{tpu_custom_call.1} parent=0
    #allocation2 [shape = 'u8[262144]{0}', space=vmem, size = 0x40000, scoped, tag = 'output window, operand 0']
    #allocation3 [shape = 's32[2]{0}', space=sflag, size = 0x8, scoped, tag = 'scoped memory for tpu_custom_call.1']
    %8 = vsyncpa [#allocation3], 0
    %s9 = scalar_lea.sflag [#allocation3], 1
    %10 = vsyncpa %s9, 0
    loop: start=0, step=1, limit=4
    $region2: #{tpu_custom_call.1} parent=1 // loop_pre_header
      _
    $region3: #{tpu_custom_call.1} parent=1 // loop_header
      %s12 = sphi 0, %s16
      %p13 = scmp.ge.s32.totalorder %s12, 4
      %s22 = sphi 0, %s24
      %s25 = sphi 0, %s22
      %s26 = sphi 0, %s25
      %s42 = sphi 0, %s26
      %s46 = sphi 0, %s46
      %s48 = sphi 0, %s46
      %s49 = sphi 0, %s48
      %s63 = sphi 0, %s49
      %s67 = sphi 0, %s67
      %s69 = sphi 0, %s67
      %s70 = sphi 0, %s69
      %s84 = sphi 0, %s70
      %s90 = sphi 0, %s92
      %s93 = sphi 0, %s90
      %s94 = sphi 0, %s93
      %s110 = sphi 0, %s94
    $region4: #{tpu_custom_call.1} parent=1 // loop_header_branch
      %15 = sbr.rel (%p13) target = $region8
    $region5: #{tpu_custom_call.1} parent=1 // loop_body
      %s17 = ssub.s32 %s12, 1
      %s18 = ssub.s32 %s12, 2
      %s19 = sadd.s32 %s12, 1
      %s20 = ssub.s32 %s12, %s19
      %p21 = scmp.eq.s32.totalorder %s20, 0
      %s23 = sadd.s32 %s22, 1
      %s24 = scalar_select %p21, %s22, %s23
      %p27 = pneg %p21
      %p28 = scmp.eq.s32.totalorder %s12, 1
      %p29 = por %p27, %p28
      %p30 = scmp.ne.s32.totalorder %s22, %s25
      %p31 = scmp.eq.s32.totalorder %s12, 0
      %p32 = por %p30, %p31
      %p33 = scmp.ne.s32.totalorder %s22, %s25
      %p34 = scmp.eq.s32.totalorder %s17, 1
      %p35 = por %p33, %p34
      %p36 = scmp.ne.s32.totalorder %s25, %s26
      %p37 = scmp.eq.s32.totalorder %s17, 0
      %p38 = por %p36, %p37
      %p39 = scmp.ne.s32.totalorder %s25, %s26
      %p40 = scmp.eq.s32.totalorder %s18, 1
      %p41 = por %p39, %p40
      %p43 = scmp.ne.s32.totalorder %s26, %s42
      %p44 = scmp.eq.s32.totalorder %s18, 0
      %p45 = por %p43, %p44
      %s47 = sadd.s32 %s46, 1
      %p50 = scmp.eq.s32.totalorder %s12, 1
      %p51 = scmp.ne.s32.totalorder %s46, %s48
      %p52 = scmp.eq.s32.totalorder %s12, 0
      %p53 = por %p51, %p52
      %p54 = scmp.ne.s32.totalorder %s46, %s48
      %p55 = scmp.eq.s32.totalorder %s17, 1
      %p56 = por %p54, %p55
      %p57 = scmp.ne.s32.totalorder %s48, %s49
      %p58 = scmp.eq.s32.totalorder %s17, 0
      %p59 = por %p57, %p58
      %p60 = scmp.ne.s32.totalorder %s48, %s49
      %p61 = scmp.eq.s32.totalorder %s18, 1
      %p62 = por %p60, %p61
      %p64 = scmp.ne.s32.totalorder %s49, %s63
      %p65 = scmp.eq.s32.totalorder %s18, 0
      %p66 = por %p64, %p65
      %s68 = sadd.s32 %s67, 1
      %p71 = scmp.eq.s32.totalorder %s12, 1
      %p72 = scmp.ne.s32.totalorder %s67, %s69
      %p73 = scmp.eq.s32.totalorder %s12, 0
      %p74 = por %p72, %p73
      %p75 = scmp.ne.s32.totalorder %s67, %s69
      %p76 = scmp.eq.s32.totalorder %s17, 1
      %p77 = por %p75, %p76
      %p78 = scmp.ne.s32.totalorder %s69, %s70
      %p79 = scmp.eq.s32.totalorder %s17, 0
      %p80 = por %p78, %p79
      %p81 = scmp.ne.s32.totalorder %s69, %s70
      %p82 = scmp.eq.s32.totalorder %s18, 1
      %p83 = por %p81, %p82
      %p85 = scmp.ne.s32.totalorder %s70, %s84
      %p86 = scmp.eq.s32.totalorder %s18, 0
      %p87 = por %p85, %p86
      %s88 = ssub.s32 %s12, %s19
      %p89 = scmp.eq.s32.totalorder %s88, 0
      %s91 = sadd.s32 %s90, 1
      %s92 = scalar_select %p89, %s90, %s91
      %p95 = pneg %p89
      %p96 = scmp.eq.s32.totalorder %s12, 1
      %p97 = por %p95, %p96
      %p98 = scmp.ne.s32.totalorder %s90, %s93
      %p99 = scmp.eq.s32.totalorder %s12, 0
      %p100 = por %p98, %p99
      %p101 = scmp.ne.s32.totalorder %s90, %s93
      %p102 = scmp.eq.s32.totalorder %s17, 1
      %p103 = por %p101, %p102
      %p104 = scmp.ne.s32.totalorder %s93, %s94
      %p105 = scmp.eq.s32.totalorder %s17, 0
      %p106 = por %p104, %p105
      %p107 = scmp.ne.s32.totalorder %s93, %s94
      %p108 = scmp.eq.s32.totalorder %s18, 1
      %p109 = por %p107, %p108
      %p111 = scmp.ne.s32.totalorder %s94, %s110
      %p112 = scmp.eq.s32.totalorder %s18, 0
      %p113 = por %p111, %p112
      %p114 = scmp.le.s32.totalorder 1, %s12
      %p115 = scmp.lt.s32.totalorder %s12, 3
      %p116 = pnand %p114, %p115
      %p117 = pneg %p116
      // Predicated region
      $region9: #{tpu_custom_call.1} parent=5 // pred_check
        _
      $region10: #{tpu_custom_call.1} parent=5 // pred_check_branch
        %119 = sbr.rel (%p116) target = $region12
      $region11: #{tpu_custom_call.1} parent=5 // pred_region
        %s120 = ssub.s32 %s12, 1
        // Predicated region
        $region13: #{tpu_custom_call.1} parent=11 // pred_check
          %p121 = pneg %p59
        $region14: #{tpu_custom_call.1} parent=11 // pred_check_branch
          %123 = sbr.rel (%p121) target = $region16
        $region15: #{tpu_custom_call.1} parent=11 // pred_region
          _
        $region16: #{tpu_custom_call.1} parent=11 // pred_fallthru
          _
        // Predicated region
        $region17: #{tpu_custom_call.1} parent=11 // pred_check
          %p124 = pneg %p80
        $region18: #{tpu_custom_call.1} parent=11 // pred_check_branch
          %126 = sbr.rel (%p124) target = $region20
        $region19: #{tpu_custom_call.1} parent=11 // pred_region
          _
        $region20: #{tpu_custom_call.1} parent=11 // pred_fallthru
          _
      $region12: #{tpu_custom_call.1} parent=5 // pred_fallthru
        _
      %p127 = scmp.lt.s32.totalorder %s12, 2
      // Predicated region
      $region21: #{tpu_custom_call.1} parent=5 // pred_check
        %p128 = pneg %p127
      $region22: #{tpu_custom_call.1} parent=5 // pred_check_branch
        %130 = sbr.rel (%p128) target = $region24
      $region23: #{tpu_custom_call.1} parent=5 // pred_region
        // Predicated region
        $region25: #{tpu_custom_call.1} parent=23 // pred_check
          %p131 = pneg %p32
        $region26: #{tpu_custom_call.1} parent=23 // pred_check_branch
          %133 = sbr.rel (%p131) target = $region28
        $region27: #{tpu_custom_call.1} parent=23 // pred_region
          %p134 = scmp.lt.s32.totalorder %s12, 1
          %s135 = scalar_select %p134, %s12, 1
          %s136 = smul.addr %s135, 54
          %s137 = smul.addr %s136, 8
          %s138 = scalar_lea.vmem %s0, %s137
        $region28: #{tpu_custom_call.1} parent=23 // pred_fallthru
          _
      $region24: #{tpu_custom_call.1} parent=5 // pred_fallthru
        _
      %p139 = scmp.le.s32.totalorder 1, %s12
      %p140 = scmp.lt.s32.totalorder %s12, 3
      %p141 = pnand %p139, %p140
      %p142 = pneg %p141
      // Predicated region
      $region29: #{tpu_custom_call.1} parent=5 // pred_check
        _
      $region30: #{tpu_custom_call.1} parent=5 // pred_check_branch
        %144 = sbr.rel (%p141) target = $region32
      $region31: #{tpu_custom_call.1} parent=5 // pred_region
        %s145 = ssub.s32 %s12, 1
        %p146 = scmp.lt.s32.totalorder %s17, 1
        %s147 = scalar_select %p146, %s17, 1
        %s148 = smul.addr %s147, 54
        %s149 = smul.addr %s148, 8
        %s150 = scalar_lea.vmem %s0, %s149
        %p151 = pneg %p38
        %p152 = pneg %p35
        %p153 = pneg %p59
        %p154 = pneg %p56
        %p155 = pneg %p80
        %p156 = pneg %p77
        %p157 = pneg %p106
        %p158 = pneg %p103
        %s159 = sand.u32 %s93, 1
        %s160 = scalar_lea.sflag [#allocation3], %s159
        %s161 = sand.u32 %s93, 1
        %s162 = smul.addr %s161, 256
        %s163 = scalar_lea.vmem [#allocation2], %s162
        %p164 = scmp.lt.s32.totalorder %s17, 1
        %s165 = scalar_select %p164, %s17, 1
        %s166 = smul.addr %s165, 54
        %s167 = smul.addr %s166, 8
        %s168 = scalar_lea.vmem %s0, %s167
        %v169 = vld [vmem:[%s168] sm:$0xff]
        %v170 = vld [vmem:[%s168 + $0x8] sm:$0xff]
        %v171 = vld [vmem:[%s168 + $0x18] sm:$0xff]
        %v172 = vld [vmem:[%s168 + $0x20] sm:$0xff]
        %v173 = vld [vmem:[%s168 + $0x30] sm:$0xff]
        %v174 = vld [vmem:[%s168 + $0x38] sm:$0xff]
        %v175 = vld [vmem:[%s168 + $0x48] sm:$0xff]
        %v176 = vld [vmem:[%s168 + $0x50] sm:$0xff]
        %v177 = vld [vmem:[%s168 + $0x60] sm:$0xff]
        %v178 = vld [vmem:[%s168 + $0x68] sm:$0xff]
        %v179 = vld [vmem:[%s168 + $0x78] sm:$0xff]
        %v180 = vld [vmem:[%s168 + $0x80] sm:$0xff]
        %v181 = vld [vmem:[%s168 + $0x90] sm:$0xff]
        %v182 = vld [vmem:[%s168 + $0x98] sm:$0xff]
        %v183 = vld [vmem:[%s168 + $0xa8] sm:$0xff]
        %v184 = vld [vmem:[%s168 + $0xb0] sm:$0xff]
        %v185 = vld [vmem:[%s168 + $0xc0] sm:$0xff]
        %v186 = vld [vmem:[%s168 + $0xc8] sm:$0xff]
        %v187 = vld [vmem:[%s168 + $0xd8] sm:$0xff]
        %v188 = vld [vmem:[%s168 + $0xe0] sm:$0xff]
        %v189 = vld [vmem:[%s168 + $0xf0] sm:$0xff]
        %v190 = vld [vmem:[%s168 + $0xf8] sm:$0xff]
        %v191 = vld [vmem:[%s168 + $0x108] sm:$0xff]
        %v192 = vld [vmem:[%s168 + $0x110] sm:$0xff]
        %v193 = vld [vmem:[%s168 + $0x120] sm:$0xff]
        %v194 = vld [vmem:[%s168 + $0x128] sm:$0xff]
        %v195 = vld [vmem:[%s168 + $0x138] sm:$0xff]
        %v196 = vld [vmem:[%s168 + $0x140] sm:$0xff]
        %v197 = vld [vmem:[%s168 + $0x150] sm:$0xff]
        %v198 = vld [vmem:[%s168 + $0x158] sm:$0xff]
        %v199 = vld [vmem:[%s168 + $0x168] sm:$0xff]
        %v200 = vld [vmem:[%s168 + $0x170] sm:$0xff]
        %v201 = vld [vmem:[%s1] sm:$0xff]
        %v202 = vld [vmem:[%s1 + $0x8] sm:$0xff]
        %v203 = vld [vmem:[%s168 + $0x1] sm:$0xff]
        %v204 = vld [vmem:[%s168 + $0x9] sm:$0xff]
        %v205 = vld [vmem:[%s168 + $0x19] sm:$0xff]
        %v206 = vld [vmem:[%s168 + $0x21] sm:$0xff]
        %v207 = vld [vmem:[%s168 + $0x31] sm:$0xff]
        %v208 = vld [vmem:[%s168 + $0x39] sm:$0xff]
        %v209 = vld [vmem:[%s168 + $0x49] sm:$0xff]
        %v210 = vld [vmem:[%s168 + $0x51] sm:$0xff]
        %v211 = vld [vmem:[%s168 + $0x61] sm:$0xff]
        %v212 = vld [vmem:[%s168 + $0x69] sm:$0xff]
        %v213 = vld [vmem:[%s168 + $0x79] sm:$0xff]
        %v214 = vld [vmem:[%s168 + $0x81] sm:$0xff]
        %v215 = vld [vmem:[%s168 + $0x91] sm:$0xff]
        %v216 = vld [vmem:[%s168 + $0x99] sm:$0xff]
        %v217 = vld [vmem:[%s168 + $0xa9] sm:$0xff]
        %v218 = vld [vmem:[%s168 + $0xb1] sm:$0xff]
        %v219 = vld [vmem:[%s168 + $0xc1] sm:$0xff]
        %v220 = vld [vmem:[%s168 + $0xc9] sm:$0xff]
        %v221 = vld [vmem:[%s168 + $0xd9] sm:$0xff]
        %v222 = vld [vmem:[%s168 + $0xe1] sm:$0xff]
        %v223 = vld [vmem:[%s168 + $0xf1] sm:$0xff]
        %v224 = vld [vmem:[%s168 + $0xf9] sm:$0xff]
        %v225 = vld [vmem:[%s168 + $0x109] sm:$0xff]
        %v226 = vld [vmem:[%s168 + $0x111] sm:$0xff]
        %v227 = vld [vmem:[%s168 + $0x121] sm:$0xff]
        %v228 = vld [vmem:[%s168 + $0x129] sm:$0xff]
        %v229 = vld [vmem:[%s168 + $0x139] sm:$0xff]
        %v230 = vld [vmem:[%s168 + $0x141] sm:$0xff]
        %v231 = vld [vmem:[%s168 + $0x151] sm:$0xff]
        %v232 = vld [vmem:[%s168 + $0x159] sm:$0xff]
        %v233 = vld [vmem:[%s168 + $0x169] sm:$0xff]
        %v234 = vld [vmem:[%s168 + $0x171] sm:$0xff]
        %s235 = scalar_lea.vmem %s1, 16
        %v236 = vld [vmem:[%s235] sm:$0xff]
        %v237 = vld [vmem:[%s235 + $0x8] sm:$0xff]
        %vm238 = vcmask 130048
        %v240 = vsel %vm238, %v203, 0
        %v243 = vsel %vm238, %v204, 0
        %v246 = vsel %vm238, %v205, 0
        %v249 = vsel %vm238, %v206, 0
        %v252 = vsel %vm238, %v207, 0
        %v255 = vsel %vm238, %v208, 0
        %v258 = vsel %vm238, %v209, 0
        %v261 = vsel %vm238, %v210, 0
        %v264 = vsel %vm238, %v211, 0
        %v267 = vsel %vm238, %v212, 0
        %v270 = vsel %vm238, %v213, 0
        %v273 = vsel %vm238, %v214, 0
        %v276 = vsel %vm238, %v215, 0
        %v279 = vsel %vm238, %v216, 0
        %v282 = vsel %vm238, %v217, 0
        %v285 = vsel %vm238, %v218, 0
        %v288 = vsel %vm238, %v219, 0
        %v291 = vsel %vm238, %v220, 0
        %v294 = vsel %vm238, %v221, 0
        %v297 = vsel %vm238, %v222, 0
        %v300 = vsel %vm238, %v223, 0
        %v303 = vsel %vm238, %v224, 0
        %v306 = vsel %vm238, %v225, 0
        %v309 = vsel %vm238, %v226, 0
        %v312 = vsel %vm238, %v227, 0
        %v315 = vsel %vm238, %v228, 0
        %v318 = vsel %vm238, %v229, 0
        %v321 = vsel %vm238, %v230, 0
        %v324 = vsel %vm238, %v231, 0
        %v327 = vsel %vm238, %v232, 0
        %v330 = vsel %vm238, %v233, 0
        %v333 = vsel %vm238, %v234, 0
        %335 = vmatprep.subr.mxu0 0.0
        %336 = vmatpush1.msra.mxu0 %v236
        %337 = vmatprep.subr.mxu0 0.0
        %338 = vmatpush1.msra.mxu0 %v237
        %339 = vmatprep.subr.mxu0 0.0
        %340 = vmatpush1.msra.mxu0 0.0
        %341 = vmatprep.subr.mxu0 0.0
        %342 = vmatpush1.msra.mxu0 0.0
        %343 = vmatprep.subr.mxu0 0.0
        %344 = vmatpush1.msra.mxu0 0.0
        %345 = vmatprep.subr.mxu0 0.0
        %346 = vmatpush1.msra.mxu0 0.0
        %347 = vmatprep.subr.mxu0 0.0
        %348 = vmatpush1.msra.mxu0 0.0
        %349 = vmatprep.subr.mxu0 0.0
        %350 = vmatpush1.msra.mxu0 0.0
        %351 = vmatprep.subr.mxu0 0.0
        %352 = vmatpush1.msra.mxu0 0.0
        %353 = vmatprep.subr.mxu0 0.0
        %354 = vmatpush1.msra.mxu0 0.0
        %355 = vmatprep.subr.mxu0 0.0
        %356 = vmatpush1.msra.mxu0 0.0
        %357 = vmatprep.subr.mxu0 0.0
        %358 = vmatpush1.msra.mxu0 0.0
        %359 = vmatprep.subr.mxu0 0.0
        %360 = vmatpush1.msra.mxu0 0.0
        %361 = vmatprep.subr.mxu0 0.0
        %362 = vmatpush1.msra.mxu0 0.0
        %363 = vmatprep.subr.mxu0 0.0
        %364 = vmatpush1.msra.mxu0 0.0
        %365 = vmatprep.subr.mxu0 0.0
        %366 = vmatpush1.msra.mxu0 0.0
        %367 = vmatprep.subr.mxu0 0.0
        %368 = vmatpush1.msra.mxu0 0.0
        %369 = vmatprep.subr.mxu0 0.0
        %370 = vmatpush1.msra.mxu0 0.0
        %371 = vmatprep.subr.mxu0 0.0
        %372 = vmatpush1.msra.mxu0 0.0
        %373 = vmatprep.subr.mxu0 0.0
        %374 = vmatpush1.msra.mxu0 0.0
        %375 = vmatprep.subr.mxu0 0.0
        %376 = vmatpush1.msra.mxu0 0.0
        %377 = vmatprep.subr.mxu0 0.0
        %378 = vmatpush1.msra.mxu0 0.0
        %379 = vmatprep.subr.mxu0 0.0
        %380 = vmatpush1.msra.mxu0 0.0
        %381 = vmatprep.subr.mxu0 0.0
        %382 = vmatpush1.msra.mxu0 0.0
        %383 = vmatprep.subr.mxu0 0.0
        %384 = vmatpush1.msra.mxu0 0.0
        %385 = vmatprep.subr.mxu0 0.0
        %386 = vmatpush1.msra.mxu0 0.0
        %387 = vmatprep.subr.mxu0 0.0
        %388 = vmatpush1.msra.mxu0 0.0
        %389 = vmatprep.subr.mxu0 0.0
        %390 = vmatpush1.msra.mxu0 0.0
        %391 = vmatprep.subr.mxu0 0.0
        %392 = vmatpush1.msra.mxu0 0.0
        %393 = vmatprep.subr.mxu0 0.0
        %394 = vmatpush1.msra.mxu0 0.0
        %395 = vmatprep.subr.mxu0 0.0
        %396 = vmatpush1.msra.mxu0 0.0
        %397 = vmatprep.subr.mxu0 0.0
        %398 = vmatpush1.msra.mxu0 0.0
        %399 = vmatprep.mubr.f32.mxu0 0.0
        %400 = vmatmul.mubr.f32.gmra.mrb[0].mxu0 %v240
        %v401 = vpop.f32.mrb[0].mxu0
        %v402 = vadd.f32 0.0, %v401
        %v403 = vpop.f32.mrb[0].mxu0
        %404 = vmatprep.mubr.f32.mxu0 0.0
        %405 = vmatmul.mubr.f32.gmra.mrb[0].mxu0 %v243
        %v406 = vpop.f32.mrb[0].mxu0
        %v407 = vadd.f32 0.0, %v406
        %v408 = vpop.f32.mrb[0].mxu0
        %409 = vmatprep.mubr.f32.mxu0 0.0
        %410 = vmatmul.mubr.f32.gmra.mrb[0].mxu0 %v246
        %v411 = vpop.f32.mrb[0].mxu0
        %v412 = vadd.f32 0.0, %v411
        %v413 = vpop.f32.mrb[0].mxu0
        %414 = vmatprep.mubr.f32.mxu0 0.0
        %415 = vmatmul.mubr.f32.gmra.mrb[0].mxu0 %v249
        %v416 = vpop.f32.mrb[0].mxu0
        %v417 = vadd.f32 0.0, %v416
        %v418 = vpop.f32.mrb[0].mxu0
        %419 = vmatprep.mubr.f32.mxu0 0.0
        %420 = vmatmul.mubr.f32.gmra.mrb[0].mxu0 %v252
        %v421 = vpop.f32.mrb[0].mxu0
        %v422 = vadd.f32 0.0, %v421
        %v423 = vpop.f32.mrb[0].mxu0
        %424 = vmatprep.mubr.f32.mxu0 0.0
        %425 = vmatmul.mubr.f32.gmra.mrb[0].mxu0 %v255
        %v426 = vpop.f32.mrb[0].mxu0
        %v427 = vadd.f32 0.0, %v426
        %v428 = vpop.f32.mrb[0].mxu0
        %429 = vmatprep.mubr.f32.mxu0 0.0
        %430 = vmatmul.mubr.f32.gmra.mrb[0].mxu0 %v258
        %v431 = vpop.f32.mrb[0].mxu0
        %v432 = vadd.f32 0.0, %v431
        %v433 = vpop.f32.mrb[0].mxu0
        %434 = vmatprep.mubr.f32.mxu0 0.0
        %435 = vmatmul.mubr.f32.gmra.mrb[0].mxu0 %v261
        %v436 = vpop.f32.mrb[0].mxu0
        %v437 = vadd.f32 0.0, %v436
        %v438 = vpop.f32.mrb[0].mxu0
        %439 = vmatprep.mubr.f32.mxu0 0.0
        %440 = vmatmul.mubr.f32.gmra.mrb[0].mxu0 %v264
        %v441 = vpop.f32.mrb[0].mxu0
        %v442 = vadd.f32 0.0, %v441
        %v443 = vpop.f32.mrb[0].mxu0
        %444 = vmatprep.mubr.f32.mxu0 0.0
        %445 = vmatmul.mubr.f32.gmra.mrb[0].mxu0 %v267
        %v446 = vpop.f32.mrb[0].mxu0
        %v447 = vadd.f32 0.0, %v446
        %v448 = vpop.f32.mrb[0].mxu0
        %449 = vmatprep.mubr.f32.mxu0 0.0
        %450 = vmatmul.mubr.f32.gmra.mrb[0].mxu0 %v270
        %v451 = vpop.f32.mrb[0].mxu0
        %v452 = vadd.f32 0.0, %v451
        %v453 = vpop.f32.mrb[0].mxu0
        %454 = vmatprep.mubr.f32.mxu0 0.0
        %455 = vmatmul.mubr.f32.gmra.mrb[0].mxu0 %v273
        %v456 = vpop.f32.mrb[0].mxu0
        %v457 = vadd.f32 0.0, %v456
        %v458 = vpop.f32.mrb[0].mxu0
        %459 = vmatprep.mubr.f32.mxu0 0.0
        %460 = vmatmul.mubr.f32.gmra.mrb[0].mxu0 %v276
        %v461 = vpop.f32.mrb[0].mxu0
        %v462 = vadd.f32 0.0, %v461
        %v463 = vpop.f32.mrb[0].mxu0
        %464 = vmatprep.mubr.f32.mxu0 0.0
        %465 = vmatmul.mubr.f32.gmra.mrb[0].mxu0 %v279
        %v466 = vpop.f32.mrb[0].mxu0
        %v467 = vadd.f32 0.0, %v466
        %v468 = vpop.f32.mrb[0].mxu0
        %469 = vmatprep.mubr.f32.mxu0 0.0
        %470 = vmatmul.mubr.f32.gmra.mrb[0].mxu0 %v282
        %v471 = vpop.f32.mrb[0].mxu0
        %v472 = vadd.f32 0.0, %v471
        %v473 = vpop.f32.mrb[0].mxu0
        %474 = vmatprep.mubr.f32.mxu0 0.0
        %475 = vmatmul.mubr.f32.gmra.mrb[0].mxu0 %v285
        %v476 = vpop.f32.mrb[0].mxu0
        %v477 = vadd.f32 0.0, %v476
        %v478 = vpop.f32.mrb[0].mxu0
        %479 = vmatprep.mubr.f32.mxu0 0.0
        %480 = vmatmul.mubr.f32.gmra.mrb[0].mxu0 %v288
        %v481 = vpop.f32.mrb[0].mxu0
        %v482 = vadd.f32 0.0, %v481
        %v483 = vpop.f32.mrb[0].mxu0
        %484 = vmatprep.mubr.f32.mxu0 0.0
        %485 = vmatmul.mubr.f32.gmra.mrb[0].mxu0 %v291
        %v486 = vpop.f32.mrb[0].mxu0
        %v487 = vadd.f32 0.0, %v486
        %v488 = vpop.f32.mrb[0].mxu0
        %489 = vmatprep.mubr.f32.mxu0 0.0
        %490 = vmatmul.mubr.f32.gmra.mrb[0].mxu0 %v294
        %v491 = vpop.f32.mrb[0].mxu0
        %v492 = vadd.f32 0.0, %v491
        %v493 = vpop.f32.mrb[0].mxu0
        %494 = vmatprep.mubr.f32.mxu0 0.0
        %495 = vmatmul.mubr.f32.gmra.mrb[0].mxu0 %v297
        %v496 = vpop.f32.mrb[0].mxu0
        %v497 = vadd.f32 0.0, %v496
        %v498 = vpop.f32.mrb[0].mxu0
        %499 = vmatprep.mubr.f32.mxu0 0.0
        %500 = vmatmul.mubr.f32.gmra.mrb[0].mxu0 %v300
        %v501 = vpop.f32.mrb[0].mxu0
        %v502 = vadd.f32 0.0, %v501
        %v503 = vpop.f32.mrb[0].mxu0
        %504 = vmatprep.mubr.f32.mxu0 0.0
        %505 = vmatmul.mubr.f32.gmra.mrb[0].mxu0 %v303
        %v506 = vpop.f32.mrb[0].mxu0
        %v507 = vadd.f32 0.0, %v506
        %v508 = vpop.f32.mrb[0].mxu0
        %509 = vmatprep.mubr.f32.mxu0 0.0
        %510 = vmatmul.mubr.f32.gmra.mrb[0].mxu0 %v306
        %v511 = vpop.f32.mrb[0].mxu0
        %v512 = vadd.f32 0.0, %v511
        %v513 = vpop.f32.mrb[0].mxu0
        %514 = vmatprep.mubr.f32.mxu0 0.0
        %515 = vmatmul.mubr.f32.gmra.mrb[0].mxu0 %v309
        %v516 = vpop.f32.mrb[0].mxu0
        %v517 = vadd.f32 0.0, %v516
        %v518 = vpop.f32.mrb[0].mxu0
        %519 = vmatprep.mubr.f32.mxu0 0.0
        %520 = vmatmul.mubr.f32.gmra.mrb[0].mxu0 %v312
        %v521 = vpop.f32.mrb[0].mxu0
        %v522 = vadd.f32 0.0, %v521
        %v523 = vpop.f32.mrb[0].mxu0
        %524 = vmatprep.mubr.f32.mxu0 0.0
        %525 = vmatmul.mubr.f32.gmra.mrb[0].mxu0 %v315
        %v526 = vpop.f32.mrb[0].mxu0
        %v527 = vadd.f32 0.0, %v526
        %v528 = vpop.f32.mrb[0].mxu0
        %529 = vmatprep.mubr.f32.mxu0 0.0
        %530 = vmatmul.mubr.f32.gmra.mrb[0].mxu0 %v318
        %v531 = vpop.f32.mrb[0].mxu0
        %v532 = vadd.f32 0.0, %v531
        %v533 = vpop.f32.mrb[0].mxu0
        %534 = vmatprep.mubr.f32.mxu0 0.0
        %535 = vmatmul.mubr.f32.gmra.mrb[0].mxu0 %v321
        %v536 = vpop.f32.mrb[0].mxu0
        %v537 = vadd.f32 0.0, %v536
        %v538 = vpop.f32.mrb[0].mxu0
        %539 = vmatprep.mubr.f32.mxu0 0.0
        %540 = vmatmul.mubr.f32.gmra.mrb[0].mxu0 %v324
        %v541 = vpop.f32.mrb[0].mxu0
        %v542 = vadd.f32 0.0, %v541
        %v543 = vpop.f32.mrb[0].mxu0
        %544 = vmatprep.mubr.f32.mxu0 0.0
        %545 = vmatmul.mubr.f32.gmra.mrb[0].mxu0 %v327
        %v546 = vpop.f32.mrb[0].mxu0
        %v547 = vadd.f32 0.0, %v546
        %v548 = vpop.f32.mrb[0].mxu0
        %549 = vmatprep.mubr.f32.mxu0 0.0
        %550 = vmatmul.mubr.f32.gmra.mrb[0].mxu0 %v330
        %v551 = vpop.f32.mrb[0].mxu0
        %v552 = vadd.f32 0.0, %v551
        %v553 = vpop.f32.mrb[0].mxu0
        %554 = vmatprep.mubr.f32.mxu0 0.0
        %555 = vmatmul.mubr.f32.gmra.mrb[0].mxu0 %v333
        %v556 = vpop.f32.mrb[0].mxu0
        %v557 = vadd.f32 0.0, %v556
        %v558 = vpop.f32.mrb[0].mxu0
        %559 = vdwg.mxu0
        %v561 = vsel %vm238, %v169, 0
        %v564 = vsel %vm238, %v170, 0
        %v567 = vsel %vm238, %v171, 0
        %v570 = vsel %vm238, %v172, 0
        %v573 = vsel %vm238, %v173, 0
        %v576 = vsel %vm238, %v174, 0
        %v579 = vsel %vm238, %v175, 0
        %v582 = vsel %vm238, %v176, 0
        %v585 = vsel %vm238, %v177, 0
        %v588 = vsel %vm238, %v178, 0
        %v591 = vsel %vm238, %v179, 0
        %v594 = vsel %vm238, %v180, 0
        %v597 = vsel %vm238, %v181, 0
        %v600 = vsel %vm238, %v182, 0
        %v603 = vsel %vm238, %v183, 0
        %v606 = vsel %vm238, %v184, 0
        %v609 = vsel %vm238, %v185, 0
        %v612 = vsel %vm238, %v186, 0
        %v615 = vsel %vm238, %v187, 0
        %v618 = vsel %vm238, %v188, 0
        %v621 = vsel %vm238, %v189, 0
        %v624 = vsel %vm238, %v190, 0
        %v627 = vsel %vm238, %v191, 0
        %v630 = vsel %vm238, %v192, 0
        %v633 = vsel %vm238, %v193, 0
        %v636 = vsel %vm238, %v194, 0
        %v639 = vsel %vm238, %v195, 0
        %v642 = vsel %vm238, %v196, 0
        %v645 = vsel %vm238, %v197, 0
        %v648 = vsel %vm238, %v198, 0
        %v651 = vsel %vm238, %v199, 0
        %v654 = vsel %vm238, %v200, 0
        %656 = vmatprep.subr.mxu0 0.0
        %657 = vmatpush1.msra.mxu0 %v201
        %658 = vmatprep.subr.mxu0 0.0
        %659 = vmatpush1.msra.mxu0 %v202
        %660 = vmatprep.subr.mxu0 0.0
        %661 = vmatpush1.msra.mxu0 0.0
        %662 = vmatprep.subr.mxu0 0.0
        %663 = vmatpush1.msra.mxu0 0.0
        %664 = vmatprep.subr.mxu0 0.0
        %665 = vmatpush1.msra.mxu0 0.0
        %666 = vmatprep.subr.mxu0 0.0
        %667 = vmatpush1.msra.mxu0 0.0
        %668 = vmatprep.subr.mxu0 0.0
        %669 = vmatpush1.msra.mxu0 0.0
        %670 = vmatprep.subr.mxu0 0.0
        %671 = vmatpush1.msra.mxu0 0.0
        %672 = vmatprep.subr.mxu0 0.0
        %673 = vmatpush1.msra.mxu0 0.0
        %674 = vmatprep.subr.mxu0 0.0
        %675 = vmatpush1.msra.mxu0 0.0
        %676 = vmatprep.subr.mxu0 0.0
        %677 = vmatpush1.msra.mxu0 0.0
        %678 = vmatprep.subr.mxu0 0.0
        %679 = vmatpush1.msra.mxu0 0.0
        %680 = vmatprep.subr.mxu0 0.0
        %681 = vmatpush1.msra.mxu0 0.0
        %682 = vmatprep.subr.mxu0 0.0
        %683 = vmatpush1.msra.mxu0 0.0
        %684 = vmatprep.subr.mxu0 0.0
        %685 = vmatpush1.msra.mxu0 0.0
        %686 = vmatprep.subr.mxu0 0.0
        %687 = vmatpush1.msra.mxu0 0.0
        %688 = vmatprep.subr.mxu0 0.0
        %689 = vmatpush1.msra.mxu0 0.0
        %690 = vmatprep.subr.mxu0 0.0
        %691 = vmatpush1.msra.mxu0 0.0
        %692 = vmatprep.subr.mxu0 0.0
        %693 = vmatpush1.msra.mxu0 0.0
        %694 = vmatprep.subr.mxu0 0.0
        %695 = vmatpush1.msra.mxu0 0.0
        %696 = vmatprep.subr.mxu0 0.0
        %697 = vmatpush1.msra.mxu0 0.0
        %698 = vmatprep.subr.mxu0 0.0
        %699 = vmatpush1.msra.mxu0 0.0
        %700 = vmatprep.subr.mxu0 0.0
        %701 = vmatpush1.msra.mxu0 0.0
        %702 = vmatprep.subr.mxu0 0.0
        %703 = vmatpush1.msra.mxu0 0.0
        %704 = vmatprep.subr.mxu0 0.0
        %705 = vmatpush1.msra.mxu0 0.0
        %706 = vmatprep.subr.mxu0 0.0
        %707 = vmatpush1.msra.mxu0 0.0
        %708 = vmatprep.subr.mxu0 0.0
        %709 = vmatpush1.msra.mxu0 0.0
        %710 = vmatprep.subr.mxu0 0.0
        %711 = vmatpush1.msra.mxu0 0.0
        %712 = vmatprep.subr.mxu0 0.0
        %713 = vmatpush1.msra.mxu0 0.0
        %714 = vmatprep.subr.mxu0 0.0
        %715 = vmatpush1.msra.mxu0 0.0
        %716 = vmatprep.subr.mxu0 0.0
        %717 = vmatpush1.msra.mxu0 0.0
        %718 = vmatprep.subr.mxu0 0.0
        %719 = vmatpush1.msra.mxu0 0.0
        %720 = vmatprep.mubr.f32.mxu0 0.0
        %721 = vmatmul.mubr.f32.gmra.mrb[0].mxu0 %v561
        %v722 = vpop.f32.mrb[0].mxu0
        %v723 = vadd.f32 %v402, %v722
        %v724 = vpop.f32.mrb[0].mxu0
        %725 = vmatprep.mubr.f32.mxu0 0.0
        %726 = vmatmul.mubr.f32.gmra.mrb[0].mxu0 %v564
        %v727 = vpop.f32.mrb[0].mxu0
        %v728 = vadd.f32 %v407, %v727
        %v729 = vpop.f32.mrb[0].mxu0
        %730 = vmatprep.mubr.f32.mxu0 0.0
        %731 = vmatmul.mubr.f32.gmra.mrb[0].mxu0 %v567
        %v732 = vpop.f32.mrb[0].mxu0
        %v733 = vadd.f32 %v412, %v732
        %v734 = vpop.f32.mrb[0].mxu0
        %735 = vmatprep.mubr.f32.mxu0 0.0
        %736 = vmatmul.mubr.f32.gmra.mrb[0].mxu0 %v570
        %v737 = vpop.f32.mrb[0].mxu0
        %v738 = vadd.f32 %v417, %v737
        %v739 = vpop.f32.mrb[0].mxu0
        %740 = vmatprep.mubr.f32.mxu0 0.0
        %741 = vmatmul.mubr.f32.gmra.mrb[0].mxu0 %v573
        %v742 = vpop.f32.mrb[0].mxu0
        %v743 = vadd.f32 %v422, %v742
        %v744 = vpop.f32.mrb[0].mxu0
        %745 = vmatprep.mubr.f32.mxu0 0.0
        %746 = vmatmul.mubr.f32.gmra.mrb[0].mxu0 %v576
        %v747 = vpop.f32.mrb[0].mxu0
        %v748 = vadd.f32 %v427, %v747
        %v749 = vpop.f32.mrb[0].mxu0
        %750 = vmatprep.mubr.f32.mxu0 0.0
        %751 = vmatmul.mubr.f32.gmra.mrb[0].mxu0 %v579
        %v752 = vpop.f32.mrb[0].mxu0
        %v753 = vadd.f32 %v432, %v752
        %v754 = vpop.f32.mrb[0].mxu0
        %755 = vmatprep.mubr.f32.mxu0 0.0
        %756 = vmatmul.mubr.f32.gmra.mrb[0].mxu0 %v582
        %v757 = vpop.f32.mrb[0].mxu0
        %v758 = vadd.f32 %v437, %v757
        %v759 = vpop.f32.mrb[0].mxu0
        %760 = vmatprep.mubr.f32.mxu0 0.0
        %761 = vmatmul.mubr.f32.gmra.mrb[0].mxu0 %v585
        %v762 = vpop.f32.mrb[0].mxu0
        %v763 = vadd.f32 %v442, %v762
        %v764 = vpop.f32.mrb[0].mxu0
        %765 = vmatprep.mubr.f32.mxu0 0.0
        %766 = vmatmul.mubr.f32.gmra.mrb[0].mxu0 %v588
        %v767 = vpop.f32.mrb[0].mxu0
        %v768 = vadd.f32 %v447, %v767
        %v769 = vpop.f32.mrb[0].mxu0
        %770 = vmatprep.mubr.f32.mxu0 0.0
        %771 = vmatmul.mubr.f32.gmra.mrb[0].mxu0 %v591
        %v772 = vpop.f32.mrb[0].mxu0
        %v773 = vadd.f32 %v452, %v772
        %v774 = vpop.f32.mrb[0].mxu0
        %775 = vmatprep.mubr.f32.mxu0 0.0
        %776 = vmatmul.mubr.f32.gmra.mrb[0].mxu0 %v594
        %v777 = vpop.f32.mrb[0].mxu0
        %v778 = vadd.f32 %v457, %v777
        %v779 = vpop.f32.mrb[0].mxu0
        %780 = vmatprep.mubr.f32.mxu0 0.0
        %781 = vmatmul.mubr.f32.gmra.mrb[0].mxu0 %v597
        %v782 = vpop.f32.mrb[0].mxu0
        %v783 = vadd.f32 %v462, %v782
        %v784 = vpop.f32.mrb[0].mxu0
        %785 = vmatprep.mubr.f32.mxu0 0.0
        %786 = vmatmul.mubr.f32.gmra.mrb[0].mxu0 %v600
        %v787 = vpop.f32.mrb[0].mxu0
        %v788 = vadd.f32 %v467, %v787
        %v789 = vpop.f32.mrb[0].mxu0
        %790 = vmatprep.mubr.f32.mxu0 0.0
        %791 = vmatmul.mubr.f32.gmra.mrb[0].mxu0 %v603
        %v792 = vpop.f32.mrb[0].mxu0
        %v793 = vadd.f32 %v472, %v792
        %v794 = vpop.f32.mrb[0].mxu0
        %795 = vmatprep.mubr.f32.mxu0 0.0
        %796 = vmatmul.mubr.f32.gmra.mrb[0].mxu0 %v606
        %v797 = vpop.f32.mrb[0].mxu0
        %v798 = vadd.f32 %v477, %v797
        %v799 = vpop.f32.mrb[0].mxu0
        %800 = vmatprep.mubr.f32.mxu0 0.0
        %801 = vmatmul.mubr.f32.gmra.mrb[0].mxu0 %v609
        %v802 = vpop.f32.mrb[0].mxu0
        %v803 = vadd.f32 %v482, %v802
        %v804 = vpop.f32.mrb[0].mxu0
        %805 = vmatprep.mubr.f32.mxu0 0.0
        %806 = vmatmul.mubr.f32.gmra.mrb[0].mxu0 %v612
        %v807 = vpop.f32.mrb[0].mxu0
        %v808 = vadd.f32 %v487, %v807
        %v809 = vpop.f32.mrb[0].mxu0
        %810 = vmatprep.mubr.f32.mxu0 0.0
        %811 = vmatmul.mubr.f32.gmra.mrb[0].mxu0 %v615
        %v812 = vpop.f32.mrb[0].mxu0
        %v813 = vadd.f32 %v492, %v812
        %v814 = vpop.f32.mrb[0].mxu0
        %815 = vmatprep.mubr.f32.mxu0 0.0
        %816 = vmatmul.mubr.f32.gmra.mrb[0].mxu0 %v618
        %v817 = vpop.f32.mrb[0].mxu0
        %v818 = vadd.f32 %v497, %v817
        %v819 = vpop.f32.mrb[0].mxu0
        %820 = vmatprep.mubr.f32.mxu0 0.0
        %821 = vmatmul.mubr.f32.gmra.mrb[0].mxu0 %v621
        %v822 = vpop.f32.mrb[0].mxu0
        %v823 = vadd.f32 %v502, %v822
        %v824 = vpop.f32.mrb[0].mxu0
        %825 = vmatprep.mubr.f32.mxu0 0.0
        %826 = vmatmul.mubr.f32.gmra.mrb[0].mxu0 %v624
        %v827 = vpop.f32.mrb[0].mxu0
        %v828 = vadd.f32 %v507, %v827
        %v829 = vpop.f32.mrb[0].mxu0
        %830 = vmatprep.mubr.f32.mxu0 0.0
        %831 = vmatmul.mubr.f32.gmra.mrb[0].mxu0 %v627
        %v832 = vpop.f32.mrb[0].mxu0
        %v833 = vadd.f32 %v512, %v832
        %v834 = vpop.f32.mrb[0].mxu0
        %835 = vmatprep.mubr.f32.mxu0 0.0
        %836 = vmatmul.mubr.f32.gmra.mrb[0].mxu0 %v630
        %v837 = vpop.f32.mrb[0].mxu0
        %v838 = vadd.f32 %v517, %v837
        %v839 = vpop.f32.mrb[0].mxu0
        %840 = vmatprep.mubr.f32.mxu0 0.0
        %841 = vmatmul.mubr.f32.gmra.mrb[0].mxu0 %v633
        %v842 = vpop.f32.mrb[0].mxu0
        %v843 = vadd.f32 %v522, %v842
        %v844 = vpop.f32.mrb[0].mxu0
        %845 = vmatprep.mubr.f32.mxu0 0.0
        %846 = vmatmul.mubr.f32.gmra.mrb[0].mxu0 %v636
        %v847 = vpop.f32.mrb[0].mxu0
        %v848 = vadd.f32 %v527, %v847
        %v849 = vpop.f32.mrb[0].mxu0
        %850 = vmatprep.mubr.f32.mxu0 0.0
        %851 = vmatmul.mubr.f32.gmra.mrb[0].mxu0 %v639
        %v852 = vpop.f32.mrb[0].mxu0
        %v853 = vadd.f32 %v532, %v852
        %v854 = vpop.f32.mrb[0].mxu0
        %855 = vmatprep.mubr.f32.mxu0 0.0
        %856 = vmatmul.mubr.f32.gmra.mrb[0].mxu0 %v642
        %v857 = vpop.f32.mrb[0].mxu0
        %v858 = vadd.f32 %v537, %v857
        %v859 = vpop.f32.mrb[0].mxu0
        %860 = vmatprep.mubr.f32.mxu0 0.0
        %861 = vmatmul.mubr.f32.gmra.mrb[0].mxu0 %v645
        %v862 = vpop.f32.mrb[0].mxu0
        %v863 = vadd.f32 %v542, %v862
        %v864 = vpop.f32.mrb[0].mxu0
        %865 = vmatprep.mubr.f32.mxu0 0.0
        %866 = vmatmul.mubr.f32.gmra.mrb[0].mxu0 %v648
        %v867 = vpop.f32.mrb[0].mxu0
        %v868 = vadd.f32 %v547, %v867
        %v869 = vpop.f32.mrb[0].mxu0
        %870 = vmatprep.mubr.f32.mxu0 0.0
        %871 = vmatmul.mubr.f32.gmra.mrb[0].mxu0 %v651
        %v872 = vpop.f32.mrb[0].mxu0
        %v873 = vadd.f32 %v552, %v872
        %v874 = vpop.f32.mrb[0].mxu0
        %875 = vmatprep.mubr.f32.mxu0 0.0
        %876 = vmatmul.mubr.f32.gmra.mrb[0].mxu0 %v654
        %v877 = vpop.f32.mrb[0].mxu0
        %v878 = vadd.f32 %v557, %v877
        %v879 = vpop.f32.mrb[0].mxu0
        %880 = vdwg.mxu0
        %v881 = vld [vmem:[%s168 + $0x2] sm:$0xff]
        %v882 = vld [vmem:[%s168 + $0xa] sm:$0xff]
        %v883 = vld [vmem:[%s168 + $0x1a] sm:$0xff]
        %v884 = vld [vmem:[%s168 + $0x22] sm:$0xff]
        %v885 = vld [vmem:[%s168 + $0x32] sm:$0xff]
        %v886 = vld [vmem:[%s168 + $0x3a] sm:$0xff]
        %v887 = vld [vmem:[%s168 + $0x4a] sm:$0xff]
        %v888 = vld [vmem:[%s168 + $0x52] sm:$0xff]
        %v889 = vld [vmem:[%s168 + $0x62] sm:$0xff]
        %v890 = vld [vmem:[%s168 + $0x6a] sm:$0xff]
        %v891 = vld [vmem:[%s168 + $0x7a] sm:$0xff]
        %v892 = vld [vmem:[%s168 + $0x82] sm:$0xff]
        %v893 = vld [vmem:[%s168 + $0x92] sm:$0xff]
        %v894 = vld [vmem:[%s168 + $0x9a] sm:$0xff]
        %v895 = vld [vmem:[%s168 + $0xaa] sm:$0xff]
        %v896 = vld [vmem:[%s168 + $0xb2] sm:$0xff]
        %v897 = vld [vmem:[%s168 + $0xc2] sm:$0xff]
        %v898 = vld [vmem:[%s168 + $0xca] sm:$0xff]
        %v899 = vld [vmem:[%s168 + $0xda] sm:$0xff]
        %v900 = vld [vmem:[%s168 + $0xe2] sm:$0xff]
        %v901 = vld [vmem:[%s168 + $0xf2] sm:$0xff]
        %v902 = vld [vmem:[%s168 + $0xfa] sm:$0xff]
        %v903 = vld [vmem:[%s168 + $0x10a] sm:$0xff]
        %v904 = vld [vmem:[%s168 + $0x112] sm:$0xff]
        %v905 = vld [vmem:[%s168 + $0x122] sm:$0xff]
        %v906 = vld [vmem:[%s168 + $0x12a] sm:$0xff]
        %v907 = vld [vmem:[%s168 + $0x13a] sm:$0xff]
        %v908 = vld [vmem:[%s168 + $0x142] sm:$0xff]
        %v909 = vld [vmem:[%s168 + $0x152] sm:$0xff]
        %v910 = vld [vmem:[%s168 + $0x15a] sm:$0xff]
        %v911 = vld [vmem:[%s168 + $0x16a] sm:$0xff]
        %v912 = vld [vmem:[%s168 + $0x172] sm:$0xff]
        %s913 = scalar_lea.vmem %s1, 32
        %v914 = vld [vmem:[%s913] sm:$0xff]
        %v915 = vld [vmem:[%s913 + $0x8] sm:$0xff]
        %v917 = vsel %vm238, %v881, 0
        %v920 = vsel %vm238, %v882, 0
        %v923 = vsel %vm238, %v883, 0
        %v926 = vsel %vm238, %v884, 0
        %v929 = vsel %vm238, %v885, 0
        %v932 = vsel %vm238, %v886, 0
        %v935 = vsel %vm238, %v887, 0
        %v938 = vsel %vm238, %v888, 0
        %v941 = vsel %vm238, %v889, 0
        %v944 = vsel %vm238, %v890, 0
        %v947 = vsel %vm238, %v891, 0
        %v950 = vsel %vm238, %v892, 0
        %v953 = vsel %vm238, %v893, 0
        %v956 = vsel %vm238, %v894, 0
        %v959 = vsel %vm238, %v895, 0
        %v962 = vsel %vm238, %v896, 0
        %v965 = vsel %vm238, %v897, 0
        %v968 = vsel %vm238, %v898, 0
        %v971 = vsel %vm238, %v899, 0
        %v974 = vsel %vm238, %v900, 0
        %v977 = vsel %vm238, %v901, 0
        %v980 = vsel %vm238, %v902, 0
        %v983 = vsel %vm238, %v903, 0
        %v986 = vsel %vm238, %v904, 0
        %v989 = vsel %vm238, %v905, 0
        %v992 = vsel %vm238, %v906, 0
        %v995 = vsel %vm238, %v907, 0
        %v998 = vsel %vm238, %v908, 0
        %v1001 = vsel %vm238, %v909, 0
        %v1004 = vsel %vm238, %v910, 0
        %v1007 = vsel %vm238, %v911, 0
        %v1010 = vsel %vm238, %v912, 0
        %1012 = vmatprep.subr.mxu0 0.0
        %1013 = vmatpush1.msra.mxu0 %v914
        %1014 = vmatprep.subr.mxu0 0.0
        %1015 = vmatpush1.msra.mxu0 %v915
        %1016 = vmatprep.subr.mxu0 0.0
        %1017 = vmatpush1.msra.mxu0 0.0
        %1018 = vmatprep.subr.mxu0 0.0
        %1019 = vmatpush1.msra.mxu0 0.0
        %1020 = vmatprep.subr.mxu0 0.0
        %1021 = vmatpush1.msra.mxu0 0.0
        %1022 = vmatprep.subr.mxu0 0.0
        %1023 = vmatpush1.msra.mxu0 0.0
        %1024 = vmatprep.subr.mxu0 0.0
        %1025 = vmatpush1.msra.mxu0 0.0
        %1026 = vmatprep.subr.mxu0 0.0
        %1027 = vmatpush1.msra.mxu0 0.0
        %1028 = vmatprep.subr.mxu0 0.0
        %1029 = vmatpush1.msra.mxu0 0.0
        %1030 = vmatprep.subr.mxu0 0.0
        %1031 = vmatpush1.msra.mxu0 0.0
        %1032 = vmatprep.subr.mxu0 0.0
        %1033 = vmatpush1.msra.mxu0 0.0
        %1034 = vmatprep.subr.mxu0 0.0
        %1035 = vmatpush1.msra.mxu0 0.0
        %1036 = vmatprep.subr.mxu0 0.0
        %1037 = vmatpush1.msra.mxu0 0.0
        %1038 = vmatprep.subr.mxu0 0.0
        %1039 = vmatpush1.msra.mxu0 0.0
        %1040 = vmatprep.subr.mxu0 0.0
        %1041 = vmatpush1.msra.mxu0 0.0
        %1042 = vmatprep.subr.mxu0 0.0
        %1043 = vmatpush1.msra.mxu0 0.0
        %1044 = vmatprep.subr.mxu0 0.0
        %1045 = vmatpush1.msra.mxu0 0.0
        %1046 = vmatprep.subr.mxu0 0.0
        %1047 = vmatpush1.msra.mxu0 0.0
        %1048 = vmatprep.subr.mxu0 0.0
        %1049 = vmatpush1.msra.mxu0 0.0
        %1050 = vmatprep.subr.mxu0 0.0
        %1051 = vmatpush1.msra.mxu0 0.0
        %1052 = vmatprep.subr.mxu0 0.0
        %1053 = vmatpush1.msra.mxu0 0.0
        %1054 = vmatprep.subr.mxu0 0.0
        %1055 = vmatpush1.msra.mxu0 0.0
        %1056 = vmatprep.subr.mxu0 0.0
        %1057 = vmatpush1.msra.mxu0 0.0
        %1058 = vmatprep.subr.mxu0 0.0
        %1059 = vmatpush1.msra.mxu0 0.0
        %1060 = vmatprep.subr.mxu0 0.0
        %1061 = vmatpush1.msra.mxu0 0.0
        %1062 = vmatprep.subr.mxu0 0.0
        %1063 = vmatpush1.msra.mxu0 0.0
        %1064 = vmatprep.subr.mxu0 0.0
        %1065 = vmatpush1.msra.mxu0 0.0
        %1066 = vmatprep.subr.mxu0 0.0
        %1067 = vmatpush1.msra.mxu0 0.0
        %1068 = vmatprep.subr.mxu0 0.0
        %1069 = vmatpush1.msra.mxu0 0.0
        %1070 = vmatprep.subr.mxu0 0.0
        %1071 = vmatpush1.msra.mxu0 0.0
        %1072 = vmatprep.subr.mxu0 0.0
        %1073 = vmatpush1.msra.mxu0 0.0
        %1074 = vmatprep.subr.mxu0 0.0
        %1075 = vmatpush1.msra.mxu0 0.0
        %1076 = vmatprep.mubr.f32.mxu0 0.0
        %1077 = vmatmul.mubr.f32.gmra.mrb[0].mxu0 %v917
        %v1078 = vpop.f32.mrb[0].mxu0
        %v1079 = vadd.f32 0.0, %v1078
        %v1080 = vpop.f32.mrb[0].mxu0
        %1081 = vmatprep.mubr.f32.mxu0 0.0
        %1082 = vmatmul.mubr.f32.gmra.mrb[0].mxu0 %v920
        %v1083 = vpop.f32.mrb[0].mxu0
        %v1084 = vadd.f32 0.0, %v1083
        %v1085 = vpop.f32.mrb[0].mxu0
        %1086 = vmatprep.mubr.f32.mxu0 0.0
        %1087 = vmatmul.mubr.f32.gmra.mrb[0].mxu0 %v923
        %v1088 = vpop.f32.mrb[0].mxu0
        %v1089 = vadd.f32 0.0, %v1088
        %v1090 = vpop.f32.mrb[0].mxu0
        %1091 = vmatprep.mubr.f32.mxu0 0.0
        %1092 = vmatmul.mubr.f32.gmra.mrb[0].mxu0 %v926
        %v1093 = vpop.f32.mrb[0].mxu0
        %v1094 = vadd.f32 0.0, %v1093
        %v1095 = vpop.f32.mrb[0].mxu0
        %1096 = vmatprep.mubr.f32.mxu0 0.0
        %1097 = vmatmul.mubr.f32.gmra.mrb[0].mxu0 %v929
        %v1098 = vpop.f32.mrb[0].mxu0
        %v1099 = vadd.f32 0.0, %v1098
        %v1100 = vpop.f32.mrb[0].mxu0
        %1101 = vmatprep.mubr.f32.mxu0 0.0
        %1102 = vmatmul.mubr.f32.gmra.mrb[0].mxu0 %v932
        %v1103 = vpop.f32.mrb[0].mxu0
        %v1104 = vadd.f32 0.0, %v1103
        %v1105 = vpop.f32.mrb[0].mxu0
        %1106 = vmatprep.mubr.f32.mxu0 0.0
        %1107 = vmatmul.mubr.f32.gmra.mrb[0].mxu0 %v935
        %v1108 = vpop.f32.mrb[0].mxu0
        %v1109 = vadd.f32 0.0, %v1108
        %v1110 = vpop.f32.mrb[0].mxu0
        %1111 = vmatprep.mubr.f32.mxu0 0.0
        %1112 = vmatmul.mubr.f32.gmra.mrb[0].mxu0 %v938
        %v1113 = vpop.f32.mrb[0].mxu0
        %v1114 = vadd.f32 0.0, %v1113
        %v1115 = vpop.f32.mrb[0].mxu0
        %1116 = vmatprep.mubr.f32.mxu0 0.0
        %1117 = vmatmul.mubr.f32.gmra.mrb[0].mxu0 %v941
        %v1118 = vpop.f32.mrb[0].mxu0
        %v1119 = vadd.f32 0.0, %v1118
        %v1120 = vpop.f32.mrb[0].mxu0
        %1121 = vmatprep.mubr.f32.mxu0 0.0
        %1122 = vmatmul.mubr.f32.gmra.mrb[0].mxu0 %v944
        %v1123 = vpop.f32.mrb[0].mxu0
        %v1124 = vadd.f32 0.0, %v1123
        %v1125 = vpop.f32.mrb[0].mxu0
        %1126 = vmatprep.mubr.f32.mxu0 0.0
        %1127 = vmatmul.mubr.f32.gmra.mrb[0].mxu0 %v947
        %v1128 = vpop.f32.mrb[0].mxu0
        %v1129 = vadd.f32 0.0, %v1128
        %v1130 = vpop.f32.mrb[0].mxu0
        %1131 = vmatprep.mubr.f32.mxu0 0.0
        %1132 = vmatmul.mubr.f32.gmra.mrb[0].mxu0 %v950
        %v1133 = vpop.f32.mrb[0].mxu0
        %v1134 = vadd.f32 0.0, %v1133
        %v1135 = vpop.f32.mrb[0].mxu0
        %1136 = vmatprep.mubr.f32.mxu0 0.0
        %1137 = vmatmul.mubr.f32.gmra.mrb[0].mxu0 %v953
        %v1138 = vpop.f32.mrb[0].mxu0
        %v1139 = vadd.f32 0.0, %v1138
        %v1140 = vpop.f32.mrb[0].mxu0
        %1141 = vmatprep.mubr.f32.mxu0 0.0
        %1142 = vmatmul.mubr.f32.gmra.mrb[0].mxu0 %v956
        %v1143 = vpop.f32.mrb[0].mxu0
        %v1144 = vadd.f32 0.0, %v1143
        %v1145 = vpop.f32.mrb[0].mxu0
        %1146 = vmatprep.mubr.f32.mxu0 0.0
        %1147 = vmatmul.mubr.f32.gmra.mrb[0].mxu0 %v959
        %v1148 = vpop.f32.mrb[0].mxu0
        %v1149 = vadd.f32 0.0, %v1148
        %v1150 = vpop.f32.mrb[0].mxu0
        %1151 = vmatprep.mubr.f32.mxu0 0.0
        %1152 = vmatmul.mubr.f32.gmra.mrb[0].mxu0 %v962
        %v1153 = vpop.f32.mrb[0].mxu0
        %v1154 = vadd.f32 0.0, %v1153
        %v1155 = vpop.f32.mrb[0].mxu0
        %1156 = vmatprep.mubr.f32.mxu0 0.0
        %1157 = vmatmul.mubr.f32.gmra.mrb[0].mxu0 %v965
        %v1158 = vpop.f32.mrb[0].mxu0
        %v1159 = vadd.f32 0.0, %v1158
        %v1160 = vpop.f32.mrb[0].mxu0
        %1161 = vmatprep.mubr.f32.mxu0 0.0
        %1162 = vmatmul.mubr.f32.gmra.mrb[0].mxu0 %v968
        %v1163 = vpop.f32.mrb[0].mxu0
        %v1164 = vadd.f32 0.0, %v1163
        %v1165 = vpop.f32.mrb[0].mxu0
        %1166 = vmatprep.mubr.f32.mxu0 0.0
        %1167 = vmatmul.mubr.f32.gmra.mrb[0].mxu0 %v971
        %v1168 = vpop.f32.mrb[0].mxu0
        %v1169 = vadd.f32 0.0, %v1168
        %v1170 = vpop.f32.mrb[0].mxu0
        %1171 = vmatprep.mubr.f32.mxu0 0.0
        %1172 = vmatmul.mubr.f32.gmra.mrb[0].mxu0 %v974
        %v1173 = vpop.f32.mrb[0].mxu0
        %v1174 = vadd.f32 0.0, %v1173
        %v1175 = vpop.f32.mrb[0].mxu0
        %1176 = vmatprep.mubr.f32.mxu0 0.0
        %1177 = vmatmul.mubr.f32.gmra.mrb[0].mxu0 %v977
        %v1178 = vpop.f32.mrb[0].mxu0
        %v1179 = vadd.f32 0.0, %v1178
        %v1180 = vpop.f32.mrb[0].mxu0
        %1181 = vmatprep.mubr.f32.mxu0 0.0
        %1182 = vmatmul.mubr.f32.gmra.mrb[0].mxu0 %v980
        %v1183 = vpop.f32.mrb[0].mxu0
        %v1184 = vadd.f32 0.0, %v1183
        %v1185 = vpop.f32.mrb[0].mxu0
        %1186 = vmatprep.mubr.f32.mxu0 0.0
        %1187 = vmatmul.mubr.f32.gmra.mrb[0].mxu0 %v983
        %v1188 = vpop.f32.mrb[0].mxu0
        %v1189 = vadd.f32 0.0, %v1188
        %v1190 = vpop.f32.mrb[0].mxu0
        %1191 = vmatprep.mubr.f32.mxu0 0.0
        %1192 = vmatmul.mubr.f32.gmra.mrb[0].mxu0 %v986
        %v1193 = vpop.f32.mrb[0].mxu0
        %v1194 = vadd.f32 0.0, %v1193
        %v1195 = vpop.f32.mrb[0].mxu0
        %1196 = vmatprep.mubr.f32.mxu0 0.0
        %1197 = vmatmul.mubr.f32.gmra.mrb[0].mxu0 %v989
        %v1198 = vpop.f32.mrb[0].mxu0
        %v1199 = vadd.f32 0.0, %v1198
        %v1200 = vpop.f32.mrb[0].mxu0
        %1201 = vmatprep.mubr.f32.mxu0 0.0
        %1202 = vmatmul.mubr.f32.gmra.mrb[0].mxu0 %v992
        %v1203 = vpop.f32.mrb[0].mxu0
        %v1204 = vadd.f32 0.0, %v1203
        %v1205 = vpop.f32.mrb[0].mxu0
        %1206 = vmatprep.mubr.f32.mxu0 0.0
        %1207 = vmatmul.mubr.f32.gmra.mrb[0].mxu0 %v995
        %v1208 = vpop.f32.mrb[0].mxu0
        %v1209 = vadd.f32 0.0, %v1208
        %v1210 = vpop.f32.mrb[0].mxu0
        %1211 = vmatprep.mubr.f32.mxu0 0.0
        %1212 = vmatmul.mubr.f32.gmra.mrb[0].mxu0 %v998
        %v1213 = vpop.f32.mrb[0].mxu0
        %v1214 = vadd.f32 0.0, %v1213
        %v1215 = vpop.f32.mrb[0].mxu0
        %1216 = vmatprep.mubr.f32.mxu0 0.0
        %1217 = vmatmul.mubr.f32.gmra.mrb[0].mxu0 %v1001
        %v1218 = vpop.f32.mrb[0].mxu0
        %v1219 = vadd.f32 0.0, %v1218
        %v1220 = vpop.f32.mrb[0].mxu0
        %1221 = vmatprep.mubr.f32.mxu0 0.0
        %1222 = vmatmul.mubr.f32.gmra.mrb[0].mxu0 %v1004
        %v1223 = vpop.f32.mrb[0].mxu0
        %v1224 = vadd.f32 0.0, %v1223
        %v1225 = vpop.f32.mrb[0].mxu0
        %1226 = vmatprep.mubr.f32.mxu0 0.0
        %1227 = vmatmul.mubr.f32.gmra.mrb[0].mxu0 %v1007
        %v1228 = vpop.f32.mrb[0].mxu0
        %v1229 = vadd.f32 0.0, %v1228
        %v1230 = vpop.f32.mrb[0].mxu0
        %1231 = vmatprep.mubr.f32.mxu0 0.0
        %1232 = vmatmul.mubr.f32.gmra.mrb[0].mxu0 %v1010
        %v1233 = vpop.f32.mrb[0].mxu0
        %v1234 = vadd.f32 0.0, %v1233
        %v1235 = vpop.f32.mrb[0].mxu0
        %1236 = vdwg.mxu0
        %v1237 = vadd.f32 %v723, %v1079
        %v1238 = vadd.f32 %v728, %v1084
        %v1239 = vadd.f32 %v733, %v1089
        %v1240 = vadd.f32 %v738, %v1094
        %v1241 = vadd.f32 %v743, %v1099
        %v1242 = vadd.f32 %v748, %v1104
        %v1243 = vadd.f32 %v753, %v1109
        %v1244 = vadd.f32 %v758, %v1114
        %v1245 = vadd.f32 %v763, %v1119
        %v1246 = vadd.f32 %v768, %v1124
        %v1247 = vadd.f32 %v773, %v1129
        %v1248 = vadd.f32 %v778, %v1134
        %v1249 = vadd.f32 %v783, %v1139
        %v1250 = vadd.f32 %v788, %v1144
        %v1251 = vadd.f32 %v793, %v1149
        %v1252 = vadd.f32 %v798, %v1154
        %v1253 = vadd.f32 %v803, %v1159
        %v1254 = vadd.f32 %v808, %v1164
        %v1255 = vadd.f32 %v813, %v1169
        %v1256 = vadd.f32 %v818, %v1174
        %v1257 = vadd.f32 %v823, %v1179
        %v1258 = vadd.f32 %v828, %v1184
        %v1259 = vadd.f32 %v833, %v1189
        %v1260 = vadd.f32 %v838, %v1194
        %v1261 = vadd.f32 %v843, %v1199
        %v1262 = vadd.f32 %v848, %v1204
        %v1263 = vadd.f32 %v853, %v1209
        %v1264 = vadd.f32 %v858, %v1214
        %v1265 = vadd.f32 %v863, %v1219
        %v1266 = vadd.f32 %v868, %v1224
        %v1267 = vadd.f32 %v873, %v1229
        %v1268 = vadd.f32 %v878, %v1234
        %s1269 = scalar_lea.vmem %s168, 24
        %v1270 = vld [vmem:[%s1269] sm:$0xff]
        %v1271 = vld [vmem:[%s1269 + $0x8] sm:$0xff]
        %v1272 = vld [vmem:[%s1269 + $0x18] sm:$0xff]
        %v1273 = vld [vmem:[%s1269 + $0x20] sm:$0xff]
        %v1274 = vld [vmem:[%s1269 + $0x30] sm:$0xff]
        %v1275 = vld [vmem:[%s1269 + $0x38] sm:$0xff]
        %v1276 = vld [vmem:[%s1269 + $0x48] sm:$0xff]
        %v1277 = vld [vmem:[%s1269 + $0x50] sm:$0xff]
        %v1278 = vld [vmem:[%s1269 + $0x60] sm:$0xff]
        %v1279 = vld [vmem:[%s1269 + $0x68] sm:$0xff]
        %v1280 = vld [vmem:[%s1269 + $0x78] sm:$0xff]
        %v1281 = vld [vmem:[%s1269 + $0x80] sm:$0xff]
        %v1282 = vld [vmem:[%s1269 + $0x90] sm:$0xff]
        %v1283 = vld [vmem:[%s1269 + $0x98] sm:$0xff]
        %v1284 = vld [vmem:[%s1269 + $0xa8] sm:$0xff]
        %v1285 = vld [vmem:[%s1269 + $0xb0] sm:$0xff]
        %v1286 = vld [vmem:[%s1269 + $0xc0] sm:$0xff]
        %v1287 = vld [vmem:[%s1269 + $0xc8] sm:$0xff]
        %v1288 = vld [vmem:[%s1269 + $0xd8] sm:$0xff]
        %v1289 = vld [vmem:[%s1269 + $0xe0] sm:$0xff]
        %v1290 = vld [vmem:[%s1269 + $0xf0] sm:$0xff]
        %v1291 = vld [vmem:[%s1269 + $0xf8] sm:$0xff]
        %v1292 = vld [vmem:[%s1269 + $0x108] sm:$0xff]
        %v1293 = vld [vmem:[%s1269 + $0x110] sm:$0xff]
        %v1294 = vld [vmem:[%s1269 + $0x120] sm:$0xff]
        %v1295 = vld [vmem:[%s1269 + $0x128] sm:$0xff]
        %v1296 = vld [vmem:[%s1269 + $0x138] sm:$0xff]
        %v1297 = vld [vmem:[%s1269 + $0x140] sm:$0xff]
        %v1298 = vld [vmem:[%s1269 + $0x150] sm:$0xff]
        %v1299 = vld [vmem:[%s1269 + $0x158] sm:$0xff]
        %v1300 = vld [vmem:[%s1269 + $0x168] sm:$0xff]
        %v1301 = vld [vmem:[%s1269 + $0x170] sm:$0xff]
        %s1302 = scalar_lea.vmem %s1, 48
        %v1303 = vld [vmem:[%s1302] sm:$0xff]
        %v1304 = vld [vmem:[%s1302 + $0x8] sm:$0xff]
        %v1306 = vsel %vm238, %v1270, 0
        %v1309 = vsel %vm238, %v1271, 0
        %v1312 = vsel %vm238, %v1272, 0
        %v1315 = vsel %vm238, %v1273, 0
        %v1318 = vsel %vm238, %v1274, 0
        %v1321 = vsel %vm238, %v1275, 0
        %v1324 = vsel %vm238, %v1276, 0
        %v1327 = vsel %vm238, %v1277, 0
        %v1330 = vsel %vm238, %v1278, 0
        %v1333 = vsel %vm238, %v1279, 0
        %v1336 = vsel %vm238, %v1280, 0
        %v1339 = vsel %vm238, %v1281, 0
        %v1342 = vsel %vm238, %v1282, 0
        %v1345 = vsel %vm238, %v1283, 0
        %v1348 = vsel %vm238, %v1284, 0
        %v1351 = vsel %vm238, %v1285, 0
        %v1354 = vsel %vm238, %v1286, 0
        %v1357 = vsel %vm238, %v1287, 0
        %v1360 = vsel %vm238, %v1288, 0
        %v1363 = vsel %vm238, %v1289, 0
        %v1366 = vsel %vm238, %v1290, 0
        %v1369 = vsel %vm238, %v1291, 0
        %v1372 = vsel %vm238, %v1292, 0
        %v1375 = vsel %vm238, %v1293, 0
        %v1378 = vsel %vm238, %v1294, 0
        %v1381 = vsel %vm238, %v1295, 0
        %v1384 = vsel %vm238, %v1296, 0
        %v1387 = vsel %vm238, %v1297, 0
        %v1390 = vsel %vm238, %v1298, 0
        %v1393 = vsel %vm238, %v1299, 0
        %v1396 = vsel %vm238, %v1300, 0
        %v1399 = vsel %vm238, %v1301, 0
        %1401 = vmatprep.subr.mxu0 0.0
        %1402 = vmatpush1.msra.mxu0 %v1303
        %1403 = vmatprep.subr.mxu0 0.0
        %1404 = vmatpush1.msra.mxu0 %v1304
        %1405 = vmatprep.subr.mxu0 0.0
        %1406 = vmatpush1.msra.mxu0 0.0
        %1407 = vmatprep.subr.mxu0 0.0
        %1408 = vmatpush1.msra.mxu0 0.0
        %1409 = vmatprep.subr.mxu0 0.0
        %1410 = vmatpush1.msra.mxu0 0.0
        %1411 = vmatprep.subr.mxu0 0.0
        %1412 = vmatpush1.msra.mxu0 0.0
        %1413 = vmatprep.subr.mxu0 0.0
        %1414 = vmatpush1.msra.mxu0 0.0
        %1415 = vmatprep.subr.mxu0 0.0
        %1416 = vmatpush1.msra.mxu0 0.0
        %1417 = vmatprep.subr.mxu0 0.0
        %1418 = vmatpush1.msra.mxu0 0.0
        %1419 = vmatprep.subr.mxu0 0.0
        %1420 = vmatpush1.msra.mxu0 0.0
        %1421 = vmatprep.subr.mxu0 0.0
        %1422 = vmatpush1.msra.mxu0 0.0
        %1423 = vmatprep.subr.mxu0 0.0
        %1424 = vmatpush1.msra.mxu0 0.0
        %1425 = vmatprep.subr.mxu0 0.0
        %1426 = vmatpush1.msra.mxu0 0.0
        %1427 = vmatprep.subr.mxu0 0.0
        %1428 = vmatpush1.msra.mxu0 0.0
        %1429 = vmatprep.subr.mxu0 0.0
        %1430 = vmatpush1.msra.mxu0 0.0
        %1431 = vmatprep.subr.mxu0 0.0
        %1432 = vmatpush1.msra.mxu0 0.0
        %1433 = vmatprep.subr.mxu0 0.0
        %1434 = vmatpush1.msra.mxu0 0.0
        %1435 = vmatprep.subr.mxu0 0.0
        %1436 = vmatpush1.msra.mxu0 0.0
        %1437 = vmatprep.subr.mxu0 0.0
        %1438 = vmatpush1.msra.mxu0 0.0
        %1439 = vmatprep.subr.mxu0 0.0
        %1440 = vmatpush1.msra.mxu0 0.0
        %1441 = vmatprep.subr.mxu0 0.0
        %1442 = vmatpush1.msra.mxu0 0.0
        %1443 = vmatprep.subr.mxu0 0.0
        %1444 = vmatpush1.msra.mxu0 0.0
        %1445 = vmatprep.subr.mxu0 0.0
        %1446 = vmatpush1.msra.mxu0 0.0
        %1447 = vmatprep.subr.mxu0 0.0
        %1448 = vmatpush1.msra.mxu0 0.0
        %1449 = vmatprep.subr.mxu0 0.0
        %1450 = vmatpush1.msra.mxu0 0.0
        %1451 = vmatprep.subr.mxu0 0.0
        %1452 = vmatpush1.msra.mxu0 0.0
        %1453 = vmatprep.subr.mxu0 0.0
        %1454 = vmatpush1.msra.mxu0 0.0
        %1455 = vmatprep.subr.mxu0 0.0
        %1456 = vmatpush1.msra.mxu0 0.0
        %1457 = vmatprep.subr.mxu0 0.0
        %1458 = vmatpush1.msra.mxu0 0.0
        %1459 = vmatprep.subr.mxu0 0.0
        %1460 = vmatpush1.msra.mxu0 0.0
        %1461 = vmatprep.subr.mxu0 0.0
        %1462 = vmatpush1.msra.mxu0 0.0
        %1463 = vmatprep.subr.mxu0 0.0
        %1464 = vmatpush1.msra.mxu0 0.0
        %1465 = vmatprep.mubr.f32.mxu0 0.0
        %1466 = vmatmul.mubr.f32.gmra.mrb[0].mxu0 %v1306
        %v1467 = vpop.f32.mrb[0].mxu0
        %v1468 = vadd.f32 0.0, %v1467
        %v1469 = vpop.f32.mrb[0].mxu0
        %1470 = vmatprep.mubr.f32.mxu0 0.0
        %1471 = vmatmul.mubr.f32.gmra.mrb[0].mxu0 %v1309
        %v1472 = vpop.f32.mrb[0].mxu0
        %v1473 = vadd.f32 0.0, %v1472
        %v1474 = vpop.f32.mrb[0].mxu0
        %1475 = vmatprep.mubr.f32.mxu0 0.0
        %1476 = vmatmul.mubr.f32.gmra.mrb[0].mxu0 %v1312
        %v1477 = vpop.f32.mrb[0].mxu0
        %v1478 = vadd.f32 0.0, %v1477
        %v1479 = vpop.f32.mrb[0].mxu0
        %1480 = vmatprep.mubr.f32.mxu0 0.0
        %1481 = vmatmul.mubr.f32.gmra.mrb[0].mxu0 %v1315
        %v1482 = vpop.f32.mrb[0].mxu0
        %v1483 = vadd.f32 0.0, %v1482
        %v1484 = vpop.f32.mrb[0].mxu0
        %1485 = vmatprep.mubr.f32.mxu0 0.0
        %1486 = vmatmul.mubr.f32.gmra.mrb[0].mxu0 %v1318
        %v1487 = vpop.f32.mrb[0].mxu0
        %v1488 = vadd.f32 0.0, %v1487
        %v1489 = vpop.f32.mrb[0].mxu0
        %1490 = vmatprep.mubr.f32.mxu0 0.0
        %1491 = vmatmul.mubr.f32.gmra.mrb[0].mxu0 %v1321
        %v1492 = vpop.f32.mrb[0].mxu0
        %v1493 = vadd.f32 0.0, %v1492
        %v1494 = vpop.f32.mrb[0].mxu0
        %1495 = vmatprep.mubr.f32.mxu0 0.0
        %1496 = vmatmul.mubr.f32.gmra.mrb[0].mxu0 %v1324
        %v1497 = vpop.f32.mrb[0].mxu0
        %v1498 = vadd.f32 0.0, %v1497
        %v1499 = vpop.f32.mrb[0].mxu0
        %1500 = vmatprep.mubr.f32.mxu0 0.0
        %1501 = vmatmul.mubr.f32.gmra.mrb[0].mxu0 %v1327
        %v1502 = vpop.f32.mrb[0].mxu0
        %v1503 = vadd.f32 0.0, %v1502
        %v1504 = vpop.f32.mrb[0].mxu0
        %1505 = vmatprep.mubr.f32.mxu0 0.0
        %1506 = vmatmul.mubr.f32.gmra.mrb[0].mxu0 %v1330
        %v1507 = vpop.f32.mrb[0].mxu0
        %v1508 = vadd.f32 0.0, %v1507
        %v1509 = vpop.f32.mrb[0].mxu0
        %1510 = vmatprep.mubr.f32.mxu0 0.0
        %1511 = vmatmul.mubr.f32.gmra.mrb[0].mxu0 %v1333
        %v1512 = vpop.f32.mrb[0].mxu0
        %v1513 = vadd.f32 0.0, %v1512
        %v1514 = vpop.f32.mrb[0].mxu0
        %1515 = vmatprep.mubr.f32.mxu0 0.0
        %1516 = vmatmul.mubr.f32.gmra.mrb[0].mxu0 %v1336
        %v1517 = vpop.f32.mrb[0].mxu0
        %v1518 = vadd.f32 0.0, %v1517
        %v1519 = vpop.f32.mrb[0].mxu0
        %1520 = vmatprep.mubr.f32.mxu0 0.0
        %1521 = vmatmul.mubr.f32.gmra.mrb[0].mxu0 %v1339
        %v1522 = vpop.f32.mrb[0].mxu0
        %v1523 = vadd.f32 0.0, %v1522
        %v1524 = vpop.f32.mrb[0].mxu0
        %1525 = vmatprep.mubr.f32.mxu0 0.0
        %1526 = vmatmul.mubr.f32.gmra.mrb[0].mxu0 %v1342
        %v1527 = vpop.f32.mrb[0].mxu0
        %v1528 = vadd.f32 0.0, %v1527
        %v1529 = vpop.f32.mrb[0].mxu0
        %1530 = vmatprep.mubr.f32.mxu0 0.0
        %1531 = vmatmul.mubr.f32.gmra.mrb[0].mxu0 %v1345
        %v1532 = vpop.f32.mrb[0].mxu0
        %v1533 = vadd.f32 0.0, %v1532
        %v1534 = vpop.f32.mrb[0].mxu0
        %1535 = vmatprep.mubr.f32.mxu0 0.0
        %1536 = vmatmul.mubr.f32.gmra.mrb[0].mxu0 %v1348
        %v1537 = vpop.f32.mrb[0].mxu0
        %v1538 = vadd.f32 0.0, %v1537
        %v1539 = vpop.f32.mrb[0].mxu0
        %1540 = vmatprep.mubr.f32.mxu0 0.0
        %1541 = vmatmul.mubr.f32.gmra.mrb[0].mxu0 %v1351
        %v1542 = vpop.f32.mrb[0].mxu0
        %v1543 = vadd.f32 0.0, %v1542
        %v1544 = vpop.f32.mrb[0].mxu0
        %1545 = vmatprep.mubr.f32.mxu0 0.0
        %1546 = vmatmul.mubr.f32.gmra.mrb[0].mxu0 %v1354
        %v1547 = vpop.f32.mrb[0].mxu0
        %v1548 = vadd.f32 0.0, %v1547
        %v1549 = vpop.f32.mrb[0].mxu0
        %1550 = vmatprep.mubr.f32.mxu0 0.0
        %1551 = vmatmul.mubr.f32.gmra.mrb[0].mxu0 %v1357
        %v1552 = vpop.f32.mrb[0].mxu0
        %v1553 = vadd.f32 0.0, %v1552
        %v1554 = vpop.f32.mrb[0].mxu0
        %1555 = vmatprep.mubr.f32.mxu0 0.0
        %1556 = vmatmul.mubr.f32.gmra.mrb[0].mxu0 %v1360
        %v1557 = vpop.f32.mrb[0].mxu0
        %v1558 = vadd.f32 0.0, %v1557
        %v1559 = vpop.f32.mrb[0].mxu0
        %1560 = vmatprep.mubr.f32.mxu0 0.0
        %1561 = vmatmul.mubr.f32.gmra.mrb[0].mxu0 %v1363
        %v1562 = vpop.f32.mrb[0].mxu0
        %v1563 = vadd.f32 0.0, %v1562
        %v1564 = vpop.f32.mrb[0].mxu0
        %1565 = vmatprep.mubr.f32.mxu0 0.0
        %1566 = vmatmul.mubr.f32.gmra.mrb[0].mxu0 %v1366
        %v1567 = vpop.f32.mrb[0].mxu0
        %v1568 = vadd.f32 0.0, %v1567
        %v1569 = vpop.f32.mrb[0].mxu0
        %1570 = vmatprep.mubr.f32.mxu0 0.0
        %1571 = vmatmul.mubr.f32.gmra.mrb[0].mxu0 %v1369
        %v1572 = vpop.f32.mrb[0].mxu0
        %v1573 = vadd.f32 0.0, %v1572
        %v1574 = vpop.f32.mrb[0].mxu0
        %1575 = vmatprep.mubr.f32.mxu0 0.0
        %1576 = vmatmul.mubr.f32.gmra.mrb[0].mxu0 %v1372
        %v1577 = vpop.f32.mrb[0].mxu0
        %v1578 = vadd.f32 0.0, %v1577
        %v1579 = vpop.f32.mrb[0].mxu0
        %1580 = vmatprep.mubr.f32.mxu0 0.0
        %1581 = vmatmul.mubr.f32.gmra.mrb[0].mxu0 %v1375
        %v1582 = vpop.f32.mrb[0].mxu0
        %v1583 = vadd.f32 0.0, %v1582
        %v1584 = vpop.f32.mrb[0].mxu0
        %1585 = vmatprep.mubr.f32.mxu0 0.0
        %1586 = vmatmul.mubr.f32.gmra.mrb[0].mxu0 %v1378
        %v1587 = vpop.f32.mrb[0].mxu0
        %v1588 = vadd.f32 0.0, %v1587
        %v1589 = vpop.f32.mrb[0].mxu0
        %1590 = vmatprep.mubr.f32.mxu0 0.0
        %1591 = vmatmul.mubr.f32.gmra.mrb[0].mxu0 %v1381
        %v1592 = vpop.f32.mrb[0].mxu0
        %v1593 = vadd.f32 0.0, %v1592
        %v1594 = vpop.f32.mrb[0].mxu0
        %1595 = vmatprep.mubr.f32.mxu0 0.0
        %1596 = vmatmul.mubr.f32.gmra.mrb[0].mxu0 %v1384
        %v1597 = vpop.f32.mrb[0].mxu0
        %v1598 = vadd.f32 0.0, %v1597
        %v1599 = vpop.f32.mrb[0].mxu0
        %1600 = vmatprep.mubr.f32.mxu0 0.0
        %1601 = vmatmul.mubr.f32.gmra.mrb[0].mxu0 %v1387
        %v1602 = vpop.f32.mrb[0].mxu0
        %v1603 = vadd.f32 0.0, %v1602
        %v1604 = vpop.f32.mrb[0].mxu0
        %1605 = vmatprep.mubr.f32.mxu0 0.0
        %1606 = vmatmul.mubr.f32.gmra.mrb[0].mxu0 %v1390
        %v1607 = vpop.f32.mrb[0].mxu0
        %v1608 = vadd.f32 0.0, %v1607
        %v1609 = vpop.f32.mrb[0].mxu0
        %1610 = vmatprep.mubr.f32.mxu0 0.0
        %1611 = vmatmul.mubr.f32.gmra.mrb[0].mxu0 %v1393
        %v1612 = vpop.f32.mrb[0].mxu0
        %v1613 = vadd.f32 0.0, %v1612
        %v1614 = vpop.f32.mrb[0].mxu0
        %1615 = vmatprep.mubr.f32.mxu0 0.0
        %1616 = vmatmul.mubr.f32.gmra.mrb[0].mxu0 %v1396
        %v1617 = vpop.f32.mrb[0].mxu0
        %v1618 = vadd.f32 0.0, %v1617
        %v1619 = vpop.f32.mrb[0].mxu0
        %1620 = vmatprep.mubr.f32.mxu0 0.0
        %1621 = vmatmul.mubr.f32.gmra.mrb[0].mxu0 %v1399
        %v1622 = vpop.f32.mrb[0].mxu0
        %v1623 = vadd.f32 0.0, %v1622
        %v1624 = vpop.f32.mrb[0].mxu0
        %1625 = vdwg.mxu0
        %v1626 = vadd.f32 %v1237, %v1468
        %v1627 = vadd.f32 %v1238, %v1473
        %v1628 = vadd.f32 %v1239, %v1478
        %v1629 = vadd.f32 %v1240, %v1483
        %v1630 = vadd.f32 %v1241, %v1488
        %v1631 = vadd.f32 %v1242, %v1493
        %v1632 = vadd.f32 %v1243, %v1498
        %v1633 = vadd.f32 %v1244, %v1503
        %v1634 = vadd.f32 %v1245, %v1508
        %v1635 = vadd.f32 %v1246, %v1513
        %v1636 = vadd.f32 %v1247, %v1518
        %v1637 = vadd.f32 %v1248, %v1523
        %v1638 = vadd.f32 %v1249, %v1528
        %v1639 = vadd.f32 %v1250, %v1533
        %v1640 = vadd.f32 %v1251, %v1538
        %v1641 = vadd.f32 %v1252, %v1543
        %v1642 = vadd.f32 %v1253, %v1548
        %v1643 = vadd.f32 %v1254, %v1553
        %v1644 = vadd.f32 %v1255, %v1558
        %v1645 = vadd.f32 %v1256, %v1563
        %v1646 = vadd.f32 %v1257, %v1568
        %v1647 = vadd.f32 %v1258, %v1573
        %v1648 = vadd.f32 %v1259, %v1578
        %v1649 = vadd.f32 %v1260, %v1583
        %v1650 = vadd.f32 %v1261, %v1588
        %v1651 = vadd.f32 %v1262, %v1593
        %v1652 = vadd.f32 %v1263, %v1598
        %v1653 = vadd.f32 %v1264, %v1603
        %v1654 = vadd.f32 %v1265, %v1608
        %v1655 = vadd.f32 %v1266, %v1613
        %v1656 = vadd.f32 %v1267, %v1618
        %v1657 = vadd.f32 %v1268, %v1623
        %v1658 = vld [vmem:[%s1269 + $0x1] sm:$0xff]
        %v1659 = vld [vmem:[%s1269 + $0x9] sm:$0xff]
        %v1660 = vld [vmem:[%s1269 + $0x19] sm:$0xff]
        %v1661 = vld [vmem:[%s1269 + $0x21] sm:$0xff]
        %v1662 = vld [vmem:[%s1269 + $0x31] sm:$0xff]
        %v1663 = vld [vmem:[%s1269 + $0x39] sm:$0xff]
        %v1664 = vld [vmem:[%s1269 + $0x49] sm:$0xff]
        %v1665 = vld [vmem:[%s1269 + $0x51] sm:$0xff]
        %v1666 = vld [vmem:[%s1269 + $0x61] sm:$0xff]
        %v1667 = vld [vmem:[%s1269 + $0x69] sm:$0xff]
        %v1668 = vld [vmem:[%s1269 + $0x79] sm:$0xff]
        %v1669 = vld [vmem:[%s1269 + $0x81] sm:$0xff]
        %v1670 = vld [vmem:[%s1269 + $0x91] sm:$0xff]
        %v1671 = vld [vmem:[%s1269 + $0x99] sm:$0xff]
        %v1672 = vld [vmem:[%s1269 + $0xa9] sm:$0xff]
        %v1673 = vld [vmem:[%s1269 + $0xb1] sm:$0xff]
        %v1674 = vld [vmem:[%s1269 + $0xc1] sm:$0xff]
        %v1675 = vld [vmem:[%s1269 + $0xc9] sm:$0xff]
        %v1676 = vld [vmem:[%s1269 + $0xd9] sm:$0xff]
        %v1677 = vld [vmem:[%s1269 + $0xe1] sm:$0xff]
        %v1678 = vld [vmem:[%s1269 + $0xf1] sm:$0xff]
        %v1679 = vld [vmem:[%s1269 + $0xf9] sm:$0xff]
        %v1680 = vld [vmem:[%s1269 + $0x109] sm:$0xff]
        %v1681 = vld [vmem:[%s1269 + $0x111] sm:$0xff]
        %v1682 = vld [vmem:[%s1269 + $0x121] sm:$0xff]
        %v1683 = vld [vmem:[%s1269 + $0x129] sm:$0xff]
        %v1684 = vld [vmem:[%s1269 + $0x139] sm:$0xff]
        %v1685 = vld [vmem:[%s1269 + $0x141] sm:$0xff]
        %v1686 = vld [vmem:[%s1269 + $0x151] sm:$0xff]
        %v1687 = vld [vmem:[%s1269 + $0x159] sm:$0xff]
        %v1688 = vld [vmem:[%s1269 + $0x169] sm:$0xff]
        %v1689 = vld [vmem:[%s1269 + $0x171] sm:$0xff]
        %s1690 = scalar_lea.vmem %s1, 64
        %v1691 = vld [vmem:[%s1690] sm:$0xff]
        %v1692 = vld [vmem:[%s1690 + $0x8] sm:$0xff]
        %v1694 = vsel %vm238, %v1658, 0
        %v1697 = vsel %vm238, %v1659, 0
        %v1700 = vsel %vm238, %v1660, 0
        %v1703 = vsel %vm238, %v1661, 0
        %v1706 = vsel %vm238, %v1662, 0
        %v1709 = vsel %vm238, %v1663, 0
        %v1712 = vsel %vm238, %v1664, 0
        %v1715 = vsel %vm238, %v1665, 0
        %v1718 = vsel %vm238, %v1666, 0
        %v1721 = vsel %vm238, %v1667, 0
        %v1724 = vsel %vm238, %v1668, 0
        %v1727 = vsel %vm238, %v1669, 0
        %v1730 = vsel %vm238, %v1670, 0
        %v1733 = vsel %vm238, %v1671, 0
        %v1736 = vsel %vm238, %v1672, 0
        %v1739 = vsel %vm238, %v1673, 0
        %v1742 = vsel %vm238, %v1674, 0
        %v1745 = vsel %vm238, %v1675, 0
        %v1748 = vsel %vm238, %v1676, 0
        %v1751 = vsel %vm238, %v1677, 0
        %v1754 = vsel %vm238, %v1678, 0
        %v1757 = vsel %vm238, %v1679, 0
        %v1760 = vsel %vm238, %v1680, 0
        %v1763 = vsel %vm238, %v1681, 0
        %v1766 = vsel %vm238, %v1682, 0
        %v1769 = vsel %vm238, %v1683, 0
        %v1772 = vsel %vm238, %v1684, 0
        %v1775 = vsel %vm238, %v1685, 0
        %v1778 = vsel %vm238, %v1686, 0
        %v1781 = vsel %vm238, %v1687, 0
        %v1784 = vsel %vm238, %v1688, 0
        %v1787 = vsel %vm238, %v1689, 0
        %1789 = vmatprep.subr.mxu0 0.0
        %1790 = vmatpush1.msra.mxu0 %v1691
        %1791 = vmatprep.subr.mxu0 0.0
        %1792 = vmatpush1.msra.mxu0 %v1692
        %1793 = vmatprep.subr.mxu0 0.0
        %1794 = vmatpush1.msra.mxu0 0.0
        %1795 = vmatprep.subr.mxu0 0.0
        %1796 = vmatpush1.msra.mxu0 0.0
        %1797 = vmatprep.subr.mxu0 0.0
        %1798 = vmatpush1.msra.mxu0 0.0
        %1799 = vmatprep.subr.mxu0 0.0
        %1800 = vmatpush1.msra.mxu0 0.0
        %1801 = vmatprep.subr.mxu0 0.0
        %1802 = vmatpush1.msra.mxu0 0.0
        %1803 = vmatprep.subr.mxu0 0.0
        %1804 = vmatpush1.msra.mxu0 0.0
        %1805 = vmatprep.subr.mxu0 0.0
        %1806 = vmatpush1.msra.mxu0 0.0
        %1807 = vmatprep.subr.mxu0 0.0
        %1808 = vmatpush1.msra.mxu0 0.0
        %1809 = vmatprep.subr.mxu0 0.0
        %1810 = vmatpush1.msra.mxu0 0.0
        %1811 = vmatprep.subr.mxu0 0.0
        %1812 = vmatpush1.msra.mxu0 0.0
        %1813 = vmatprep.subr.mxu0 0.0
        %1814 = vmatpush1.msra.mxu0 0.0
        %1815 = vmatprep.subr.mxu0 0.0
        %1816 = vmatpush1.msra.mxu0 0.0
        %1817 = vmatprep.subr.mxu0 0.0
        %1818 = vmatpush1.msra.mxu0 0.0
        %1819 = vmatprep.subr.mxu0 0.0
        %1820 = vmatpush1.msra.mxu0 0.0
        %1821 = vmatprep.subr.mxu0 0.0
        %1822 = vmatpush1.msra.mxu0 0.0
        %1823 = vmatprep.subr.mxu0 0.0
        %1824 = vmatpush1.msra.mxu0 0.0
        %1825 = vmatprep.subr.mxu0 0.0
        %1826 = vmatpush1.msra.mxu0 0.0
        %1827 = vmatprep.subr.mxu0 0.0
        %1828 = vmatpush1.msra.mxu0 0.0
        %1829 = vmatprep.subr.mxu0 0.0
        %1830 = vmatpush1.msra.mxu0 0.0
        %1831 = vmatprep.subr.mxu0 0.0
        %1832 = vmatpush1.msra.mxu0 0.0
        %1833 = vmatprep.subr.mxu0 0.0
        %1834 = vmatpush1.msra.mxu0 0.0
        %1835 = vmatprep.subr.mxu0 0.0
        %1836 = vmatpush1.msra.mxu0 0.0
        %1837 = vmatprep.subr.mxu0 0.0
        %1838 = vmatpush1.msra.mxu0 0.0
        %1839 = vmatprep.subr.mxu0 0.0
        %1840 = vmatpush1.msra.mxu0 0.0
        %1841 = vmatprep.subr.mxu0 0.0
        %1842 = vmatpush1.msra.mxu0 0.0
        %1843 = vmatprep.subr.mxu0 0.0
        %1844 = vmatpush1.msra.mxu0 0.0
        %1845 = vmatprep.subr.mxu0 0.0
        %1846 = vmatpush1.msra.mxu0 0.0
        %1847 = vmatprep.subr.mxu0 0.0
        %1848 = vmatpush1.msra.mxu0 0.0
        %1849 = vmatprep.subr.mxu0 0.0
        %1850 = vmatpush1.msra.mxu0 0.0
        %1851 = vmatprep.subr.mxu0 0.0
        %1852 = vmatpush1.msra.mxu0 0.0
        %1853 = vmatprep.mubr.f32.mxu0 0.0
        %1854 = vmatmul.mubr.f32.gmra.mrb[0].mxu0 %v1694
        %v1855 = vpop.f32.mrb[0].mxu0
        %v1856 = vadd.f32 0.0, %v1855
        %v1857 = vpop.f32.mrb[0].mxu0
        %1858 = vmatprep.mubr.f32.mxu0 0.0
        %1859 = vmatmul.mubr.f32.gmra.mrb[0].mxu0 %v1697
        %v1860 = vpop.f32.mrb[0].mxu0
        %v1861 = vadd.f32 0.0, %v1860
        %v1862 = vpop.f32.mrb[0].mxu0
        %1863 = vmatprep.mubr.f32.mxu0 0.0
        %1864 = vmatmul.mubr.f32.gmra.mrb[0].mxu0 %v1700
        %v1865 = vpop.f32.mrb[0].mxu0
        %v1866 = vadd.f32 0.0, %v1865
        %v1867 = vpop.f32.mrb[0].mxu0
        %1868 = vmatprep.mubr.f32.mxu0 0.0
        %1869 = vmatmul.mubr.f32.gmra.mrb[0].mxu0 %v1703
        %v1870 = vpop.f32.mrb[0].mxu0
        %v1871 = vadd.f32 0.0, %v1870
        %v1872 = vpop.f32.mrb[0].mxu0
        %1873 = vmatprep.mubr.f32.mxu0 0.0
        %1874 = vmatmul.mubr.f32.gmra.mrb[0].mxu0 %v1706
        %v1875 = vpop.f32.mrb[0].mxu0
        %v1876 = vadd.f32 0.0, %v1875
        %v1877 = vpop.f32.mrb[0].mxu0
        %1878 = vmatprep.mubr.f32.mxu0 0.0
        %1879 = vmatmul.mubr.f32.gmra.mrb[0].mxu0 %v1709
        %v1880 = vpop.f32.mrb[0].mxu0
        %v1881 = vadd.f32 0.0, %v1880
        %v1882 = vpop.f32.mrb[0].mxu0
        %1883 = vmatprep.mubr.f32.mxu0 0.0
        %1884 = vmatmul.mubr.f32.gmra.mrb[0].mxu0 %v1712
        %v1885 = vpop.f32.mrb[0].mxu0
        %v1886 = vadd.f32 0.0, %v1885
        %v1887 = vpop.f32.mrb[0].mxu0
        %1888 = vmatprep.mubr.f32.mxu0 0.0
        %1889 = vmatmul.mubr.f32.gmra.mrb[0].mxu0 %v1715
        %v1890 = vpop.f32.mrb[0].mxu0
        %v1891 = vadd.f32 0.0, %v1890
        %v1892 = vpop.f32.mrb[0].mxu0
        %1893 = vmatprep.mubr.f32.mxu0 0.0
        %1894 = vmatmul.mubr.f32.gmra.mrb[0].mxu0 %v1718
        %v1895 = vpop.f32.mrb[0].mxu0
        %v1896 = vadd.f32 0.0, %v1895
        %v1897 = vpop.f32.mrb[0].mxu0
        %1898 = vmatprep.mubr.f32.mxu0 0.0
        %1899 = vmatmul.mubr.f32.gmra.mrb[0].mxu0 %v1721
        %v1900 = vpop.f32.mrb[0].mxu0
        %v1901 = vadd.f32 0.0, %v1900
        %v1902 = vpop.f32.mrb[0].mxu0
        %1903 = vmatprep.mubr.f32.mxu0 0.0
        %1904 = vmatmul.mubr.f32.gmra.mrb[0].mxu0 %v1724
        %v1905 = vpop.f32.mrb[0].mxu0
        %v1906 = vadd.f32 0.0, %v1905
        %v1907 = vpop.f32.mrb[0].mxu0
        %1908 = vmatprep.mubr.f32.mxu0 0.0
        %1909 = vmatmul.mubr.f32.gmra.mrb[0].mxu0 %v1727
        %v1910 = vpop.f32.mrb[0].mxu0
        %v1911 = vadd.f32 0.0, %v1910
        %v1912 = vpop.f32.mrb[0].mxu0
        %1913 = vmatprep.mubr.f32.mxu0 0.0
        %1914 = vmatmul.mubr.f32.gmra.mrb[0].mxu0 %v1730
        %v1915 = vpop.f32.mrb[0].mxu0
        %v1916 = vadd.f32 0.0, %v1915
        %v1917 = vpop.f32.mrb[0].mxu0
        %1918 = vmatprep.mubr.f32.mxu0 0.0
        %1919 = vmatmul.mubr.f32.gmra.mrb[0].mxu0 %v1733
        %v1920 = vpop.f32.mrb[0].mxu0
        %v1921 = vadd.f32 0.0, %v1920
        %v1922 = vpop.f32.mrb[0].mxu0
        %1923 = vmatprep.mubr.f32.mxu0 0.0
        %1924 = vmatmul.mubr.f32.gmra.mrb[0].mxu0 %v1736
        %v1925 = vpop.f32.mrb[0].mxu0
        %v1926 = vadd.f32 0.0, %v1925
        %v1927 = vpop.f32.mrb[0].mxu0
        %1928 = vmatprep.mubr.f32.mxu0 0.0
        %1929 = vmatmul.mubr.f32.gmra.mrb[0].mxu0 %v1739
        %v1930 = vpop.f32.mrb[0].mxu0
        %v1931 = vadd.f32 0.0, %v1930
        %v1932 = vpop.f32.mrb[0].mxu0
        %1933 = vmatprep.mubr.f32.mxu0 0.0
        %1934 = vmatmul.mubr.f32.gmra.mrb[0].mxu0 %v1742
        %v1935 = vpop.f32.mrb[0].mxu0
        %v1936 = vadd.f32 0.0, %v1935
        %v1937 = vpop.f32.mrb[0].mxu0
        %1938 = vmatprep.mubr.f32.mxu0 0.0
        %1939 = vmatmul.mubr.f32.gmra.mrb[0].mxu0 %v1745
        %v1940 = vpop.f32.mrb[0].mxu0
        %v1941 = vadd.f32 0.0, %v1940
        %v1942 = vpop.f32.mrb[0].mxu0
        %1943 = vmatprep.mubr.f32.mxu0 0.0
        %1944 = vmatmul.mubr.f32.gmra.mrb[0].mxu0 %v1748
        %v1945 = vpop.f32.mrb[0].mxu0
        %v1946 = vadd.f32 0.0, %v1945
        %v1947 = vpop.f32.mrb[0].mxu0
        %1948 = vmatprep.mubr.f32.mxu0 0.0
        %1949 = vmatmul.mubr.f32.gmra.mrb[0].mxu0 %v1751
        %v1950 = vpop.f32.mrb[0].mxu0
        %v1951 = vadd.f32 0.0, %v1950
        %v1952 = vpop.f32.mrb[0].mxu0
        %1953 = vmatprep.mubr.f32.mxu0 0.0
        %1954 = vmatmul.mubr.f32.gmra.mrb[0].mxu0 %v1754
        %v1955 = vpop.f32.mrb[0].mxu0
        %v1956 = vadd.f32 0.0, %v1955
        %v1957 = vpop.f32.mrb[0].mxu0
        %1958 = vmatprep.mubr.f32.mxu0 0.0
        %1959 = vmatmul.mubr.f32.gmra.mrb[0].mxu0 %v1757
        %v1960 = vpop.f32.mrb[0].mxu0
        %v1961 = vadd.f32 0.0, %v1960
        %v1962 = vpop.f32.mrb[0].mxu0
        %1963 = vmatprep.mubr.f32.mxu0 0.0
        %1964 = vmatmul.mubr.f32.gmra.mrb[0].mxu0 %v1760
        %v1965 = vpop.f32.mrb[0].mxu0
        %v1966 = vadd.f32 0.0, %v1965
        %v1967 = vpop.f32.mrb[0].mxu0
        %1968 = vmatprep.mubr.f32.mxu0 0.0
        %1969 = vmatmul.mubr.f32.gmra.mrb[0].mxu0 %v1763
        %v1970 = vpop.f32.mrb[0].mxu0
        %v1971 = vadd.f32 0.0, %v1970
        %v1972 = vpop.f32.mrb[0].mxu0
        %1973 = vmatprep.mubr.f32.mxu0 0.0
        %1974 = vmatmul.mubr.f32.gmra.mrb[0].mxu0 %v1766
        %v1975 = vpop.f32.mrb[0].mxu0
        %v1976 = vadd.f32 0.0, %v1975
        %v1977 = vpop.f32.mrb[0].mxu0
        %1978 = vmatprep.mubr.f32.mxu0 0.0
        %1979 = vmatmul.mubr.f32.gmra.mrb[0].mxu0 %v1769
        %v1980 = vpop.f32.mrb[0].mxu0
        %v1981 = vadd.f32 0.0, %v1980
        %v1982 = vpop.f32.mrb[0].mxu0
        %1983 = vmatprep.mubr.f32.mxu0 0.0
        %1984 = vmatmul.mubr.f32.gmra.mrb[0].mxu0 %v1772
        %v1985 = vpop.f32.mrb[0].mxu0
        %v1986 = vadd.f32 0.0, %v1985
        %v1987 = vpop.f32.mrb[0].mxu0
        %1988 = vmatprep.mubr.f32.mxu0 0.0
        %1989 = vmatmul.mubr.f32.gmra.mrb[0].mxu0 %v1775
        %v1990 = vpop.f32.mrb[0].mxu0
        %v1991 = vadd.f32 0.0, %v1990
        %v1992 = vpop.f32.mrb[0].mxu0
        %1993 = vmatprep.mubr.f32.mxu0 0.0
        %1994 = vmatmul.mubr.f32.gmra.mrb[0].mxu0 %v1778
        %v1995 = vpop.f32.mrb[0].mxu0
        %v1996 = vadd.f32 0.0, %v1995
        %v1997 = vpop.f32.mrb[0].mxu0
        %1998 = vmatprep.mubr.f32.mxu0 0.0
        %1999 = vmatmul.mubr.f32.gmra.mrb[0].mxu0 %v1781
        %v2000 = vpop.f32.mrb[0].mxu0
        %v2001 = vadd.f32 0.0, %v2000
        %v2002 = vpop.f32.mrb[0].mxu0
        %2003 = vmatprep.mubr.f32.mxu0 0.0
        %2004 = vmatmul.mubr.f32.gmra.mrb[0].mxu0 %v1784
        %v2005 = vpop.f32.mrb[0].mxu0
        %v2006 = vadd.f32 0.0, %v2005
        %v2007 = vpop.f32.mrb[0].mxu0
        %2008 = vmatprep.mubr.f32.mxu0 0.0
        %2009 = vmatmul.mubr.f32.gmra.mrb[0].mxu0 %v1787
        %v2010 = vpop.f32.mrb[0].mxu0
        %v2011 = vadd.f32 0.0, %v2010
        %v2012 = vpop.f32.mrb[0].mxu0
        %2013 = vdwg.mxu0
        %v2014 = vadd.f32 %v1626, %v1856
        %v2015 = vadd.f32 %v1627, %v1861
        %v2016 = vadd.f32 %v1628, %v1866
        %v2017 = vadd.f32 %v1629, %v1871
        %v2018 = vadd.f32 %v1630, %v1876
        %v2019 = vadd.f32 %v1631, %v1881
        %v2020 = vadd.f32 %v1632, %v1886
        %v2021 = vadd.f32 %v1633, %v1891
        %v2022 = vadd.f32 %v1634, %v1896
        %v2023 = vadd.f32 %v1635, %v1901
        %v2024 = vadd.f32 %v1636, %v1906
        %v2025 = vadd.f32 %v1637, %v1911
        %v2026 = vadd.f32 %v1638, %v1916
        %v2027 = vadd.f32 %v1639, %v1921
        %v2028 = vadd.f32 %v1640, %v1926
        %v2029 = vadd.f32 %v1641, %v1931
        %v2030 = vadd.f32 %v1642, %v1936
        %v2031 = vadd.f32 %v1643, %v1941
        %v2032 = vadd.f32 %v1644, %v1946
        %v2033 = vadd.f32 %v1645, %v1951
        %v2034 = vadd.f32 %v1646, %v1956
        %v2035 = vadd.f32 %v1647, %v1961
        %v2036 = vadd.f32 %v1648, %v1966
        %v2037 = vadd.f32 %v1649, %v1971
        %v2038 = vadd.f32 %v1650, %v1976
        %v2039 = vadd.f32 %v1651, %v1981
        %v2040 = vadd.f32 %v1652, %v1986
        %v2041 = vadd.f32 %v1653, %v1991
        %v2042 = vadd.f32 %v1654, %v1996
        %v2043 = vadd.f32 %v1655, %v2001
        %v2044 = vadd.f32 %v1656, %v2006
        %v2045 = vadd.f32 %v1657, %v2011
        %v2046 = vld [vmem:[%s1269 + $0x2] sm:$0xff]
        %v2047 = vld [vmem:[%s1269 + $0xa] sm:$0xff]
        %v2048 = vld [vmem:[%s1269 + $0x1a] sm:$0xff]
        %v2049 = vld [vmem:[%s1269 + $0x22] sm:$0xff]
        %v2050 = vld [vmem:[%s1269 + $0x32] sm:$0xff]
        %v2051 = vld [vmem:[%s1269 + $0x3a] sm:$0xff]
        %v2052 = vld [vmem:[%s1269 + $0x4a] sm:$0xff]
        %v2053 = vld [vmem:[%s1269 + $0x52] sm:$0xff]
        %v2054 = vld [vmem:[%s1269 + $0x62] sm:$0xff]
        %v2055 = vld [vmem:[%s1269 + $0x6a] sm:$0xff]
        %v2056 = vld [vmem:[%s1269 + $0x7a] sm:$0xff]
        %v2057 = vld [vmem:[%s1269 + $0x82] sm:$0xff]
        %v2058 = vld [vmem:[%s1269 + $0x92] sm:$0xff]
        %v2059 = vld [vmem:[%s1269 + $0x9a] sm:$0xff]
        %v2060 = vld [vmem:[%s1269 + $0xaa] sm:$0xff]
        %v2061 = vld [vmem:[%s1269 + $0xb2] sm:$0xff]
        %v2062 = vld [vmem:[%s1269 + $0xc2] sm:$0xff]
        %v2063 = vld [vmem:[%s1269 + $0xca] sm:$0xff]
        %v2064 = vld [vmem:[%s1269 + $0xda] sm:$0xff]
        %v2065 = vld [vmem:[%s1269 + $0xe2] sm:$0xff]
        %v2066 = vld [vmem:[%s1269 + $0xf2] sm:$0xff]
        %v2067 = vld [vmem:[%s1269 + $0xfa] sm:$0xff]
        %v2068 = vld [vmem:[%s1269 + $0x10a] sm:$0xff]
        %v2069 = vld [vmem:[%s1269 + $0x112] sm:$0xff]
        %v2070 = vld [vmem:[%s1269 + $0x122] sm:$0xff]
        %v2071 = vld [vmem:[%s1269 + $0x12a] sm:$0xff]
        %v2072 = vld [vmem:[%s1269 + $0x13a] sm:$0xff]
        %v2073 = vld [vmem:[%s1269 + $0x142] sm:$0xff]
        %v2074 = vld [vmem:[%s1269 + $0x152] sm:$0xff]
        %v2075 = vld [vmem:[%s1269 + $0x15a] sm:$0xff]
        %v2076 = vld [vmem:[%s1269 + $0x16a] sm:$0xff]
        %v2077 = vld [vmem:[%s1269 + $0x172] sm:$0xff]
        %s2078 = scalar_lea.vmem %s1, 80
        %v2079 = vld [vmem:[%s2078] sm:$0xff]
        %v2080 = vld [vmem:[%s2078 + $0x8] sm:$0xff]
        %v2082 = vsel %vm238, %v2046, 0
        %v2085 = vsel %vm238, %v2047, 0
        %v2088 = vsel %vm238, %v2048, 0
        %v2091 = vsel %vm238, %v2049, 0
        %v2094 = vsel %vm238, %v2050, 0
        %v2097 = vsel %vm238, %v2051, 0
        %v2100 = vsel %vm238, %v2052, 0
        %v2103 = vsel %vm238, %v2053, 0
        %v2106 = vsel %vm238, %v2054, 0
        %v2109 = vsel %vm238, %v2055, 0
        %v2112 = vsel %vm238, %v2056, 0
        %v2115 = vsel %vm238, %v2057, 0
        %v2118 = vsel %vm238, %v2058, 0
        %v2121 = vsel %vm238, %v2059, 0
        %v2124 = vsel %vm238, %v2060, 0
        %v2127 = vsel %vm238, %v2061, 0
        %v2130 = vsel %vm238, %v2062, 0
        %v2133 = vsel %vm238, %v2063, 0
        %v2136 = vsel %vm238, %v2064, 0
        %v2139 = vsel %vm238, %v2065, 0
        %v2142 = vsel %vm238, %v2066, 0
        %v2145 = vsel %vm238, %v2067, 0
        %v2148 = vsel %vm238, %v2068, 0
        %v2151 = vsel %vm238, %v2069, 0
        %v2154 = vsel %vm238, %v2070, 0
        %v2157 = vsel %vm238, %v2071, 0
        %v2160 = vsel %vm238, %v2072, 0
        %v2163 = vsel %vm238, %v2073, 0
        %v2166 = vsel %vm238, %v2074, 0
        %v2169 = vsel %vm238, %v2075, 0
        %v2172 = vsel %vm238, %v2076, 0
        %v2175 = vsel %vm238, %v2077, 0
        %2177 = vmatprep.subr.mxu0 0.0
        %2178 = vmatpush1.msra.mxu0 %v2079
        %2179 = vmatprep.subr.mxu0 0.0
        %2180 = vmatpush1.msra.mxu0 %v2080
        %2181 = vmatprep.subr.mxu0 0.0
        %2182 = vmatpush1.msra.mxu0 0.0
        %2183 = vmatprep.subr.mxu0 0.0
        %2184 = vmatpush1.msra.mxu0 0.0
        %2185 = vmatprep.subr.mxu0 0.0
        %2186 = vmatpush1.msra.mxu0 0.0
        %2187 = vmatprep.subr.mxu0 0.0
        %2188 = vmatpush1.msra.mxu0 0.0
        %2189 = vmatprep.subr.mxu0 0.0
        %2190 = vmatpush1.msra.mxu0 0.0
        %2191 = vmatprep.subr.mxu0 0.0
        %2192 = vmatpush1.msra.mxu0 0.0
        %2193 = vmatprep.subr.mxu0 0.0
        %2194 = vmatpush1.msra.mxu0 0.0
        %2195 = vmatprep.subr.mxu0 0.0
        %2196 = vmatpush1.msra.mxu0 0.0
        %2197 = vmatprep.subr.mxu0 0.0
        %2198 = vmatpush1.msra.mxu0 0.0
        %2199 = vmatprep.subr.mxu0 0.0
        %2200 = vmatpush1.msra.mxu0 0.0
        %2201 = vmatprep.subr.mxu0 0.0
        %2202 = vmatpush1.msra.mxu0 0.0
        %2203 = vmatprep.subr.mxu0 0.0
        %2204 = vmatpush1.msra.mxu0 0.0
        %2205 = vmatprep.subr.mxu0 0.0
        %2206 = vmatpush1.msra.mxu0 0.0
        %2207 = vmatprep.subr.mxu0 0.0
        %2208 = vmatpush1.msra.mxu0 0.0
        %2209 = vmatprep.subr.mxu0 0.0
        %2210 = vmatpush1.msra.mxu0 0.0
        %2211 = vmatprep.subr.mxu0 0.0
        %2212 = vmatpush1.msra.mxu0 0.0
        %2213 = vmatprep.subr.mxu0 0.0
        %2214 = vmatpush1.msra.mxu0 0.0
        %2215 = vmatprep.subr.mxu0 0.0
        %2216 = vmatpush1.msra.mxu0 0.0
        %2217 = vmatprep.subr.mxu0 0.0
        %2218 = vmatpush1.msra.mxu0 0.0
        %2219 = vmatprep.subr.mxu0 0.0
        %2220 = vmatpush1.msra.mxu0 0.0
        %2221 = vmatprep.subr.mxu0 0.0
        %2222 = vmatpush1.msra.mxu0 0.0
        %2223 = vmatprep.subr.mxu0 0.0
        %2224 = vmatpush1.msra.mxu0 0.0
        %2225 = vmatprep.subr.mxu0 0.0
        %2226 = vmatpush1.msra.mxu0 0.0
        %2227 = vmatprep.subr.mxu0 0.0
        %2228 = vmatpush1.msra.mxu0 0.0
        %2229 = vmatprep.subr.mxu0 0.0
        %2230 = vmatpush1.msra.mxu0 0.0
        %2231 = vmatprep.subr.mxu0 0.0
        %2232 = vmatpush1.msra.mxu0 0.0
        %2233 = vmatprep.subr.mxu0 0.0
        %2234 = vmatpush1.msra.mxu0 0.0
        %2235 = vmatprep.subr.mxu0 0.0
        %2236 = vmatpush1.msra.mxu0 0.0
        %2237 = vmatprep.subr.mxu0 0.0
        %2238 = vmatpush1.msra.mxu0 0.0
        %2239 = vmatprep.subr.mxu0 0.0
        %2240 = vmatpush1.msra.mxu0 0.0
        %2241 = vmatprep.mubr.f32.mxu0 0.0
        %2242 = vmatmul.mubr.f32.gmra.mrb[0].mxu0 %v2082
        %v2243 = vpop.f32.mrb[0].mxu0
        %v2244 = vadd.f32 0.0, %v2243
        %v2245 = vpop.f32.mrb[0].mxu0
        %2246 = vmatprep.mubr.f32.mxu0 0.0
        %2247 = vmatmul.mubr.f32.gmra.mrb[0].mxu0 %v2085
        %v2248 = vpop.f32.mrb[0].mxu0
        %v2249 = vadd.f32 0.0, %v2248
        %v2250 = vpop.f32.mrb[0].mxu0
        %2251 = vmatprep.mubr.f32.mxu0 0.0
        %2252 = vmatmul.mubr.f32.gmra.mrb[0].mxu0 %v2088
        %v2253 = vpop.f32.mrb[0].mxu0
        %v2254 = vadd.f32 0.0, %v2253
        %v2255 = vpop.f32.mrb[0].mxu0
        %2256 = vmatprep.mubr.f32.mxu0 0.0
        %2257 = vmatmul.mubr.f32.gmra.mrb[0].mxu0 %v2091
        %v2258 = vpop.f32.mrb[0].mxu0
        %v2259 = vadd.f32 0.0, %v2258
        %v2260 = vpop.f32.mrb[0].mxu0
        %2261 = vmatprep.mubr.f32.mxu0 0.0
        %2262 = vmatmul.mubr.f32.gmra.mrb[0].mxu0 %v2094
        %v2263 = vpop.f32.mrb[0].mxu0
        %v2264 = vadd.f32 0.0, %v2263
        %v2265 = vpop.f32.mrb[0].mxu0
        %2266 = vmatprep.mubr.f32.mxu0 0.0
        %2267 = vmatmul.mubr.f32.gmra.mrb[0].mxu0 %v2097
        %v2268 = vpop.f32.mrb[0].mxu0
        %v2269 = vadd.f32 0.0, %v2268
        %v2270 = vpop.f32.mrb[0].mxu0
        %2271 = vmatprep.mubr.f32.mxu0 0.0
        %2272 = vmatmul.mubr.f32.gmra.mrb[0].mxu0 %v2100
        %v2273 = vpop.f32.mrb[0].mxu0
        %v2274 = vadd.f32 0.0, %v2273
        %v2275 = vpop.f32.mrb[0].mxu0
        %2276 = vmatprep.mubr.f32.mxu0 0.0
        %2277 = vmatmul.mubr.f32.gmra.mrb[0].mxu0 %v2103
        %v2278 = vpop.f32.mrb[0].mxu0
        %v2279 = vadd.f32 0.0, %v2278
        %v2280 = vpop.f32.mrb[0].mxu0
        %2281 = vmatprep.mubr.f32.mxu0 0.0
        %2282 = vmatmul.mubr.f32.gmra.mrb[0].mxu0 %v2106
        %v2283 = vpop.f32.mrb[0].mxu0
        %v2284 = vadd.f32 0.0, %v2283
        %v2285 = vpop.f32.mrb[0].mxu0
        %2286 = vmatprep.mubr.f32.mxu0 0.0
        %2287 = vmatmul.mubr.f32.gmra.mrb[0].mxu0 %v2109
        %v2288 = vpop.f32.mrb[0].mxu0
        %v2289 = vadd.f32 0.0, %v2288
        %v2290 = vpop.f32.mrb[0].mxu0
        %2291 = vmatprep.mubr.f32.mxu0 0.0
        %2292 = vmatmul.mubr.f32.gmra.mrb[0].mxu0 %v2112
        %v2293 = vpop.f32.mrb[0].mxu0
        %v2294 = vadd.f32 0.0, %v2293
        %v2295 = vpop.f32.mrb[0].mxu0
        %2296 = vmatprep.mubr.f32.mxu0 0.0
        %2297 = vmatmul.mubr.f32.gmra.mrb[0].mxu0 %v2115
        %v2298 = vpop.f32.mrb[0].mxu0
        %v2299 = vadd.f32 0.0, %v2298
        %v2300 = vpop.f32.mrb[0].mxu0
        %2301 = vmatprep.mubr.f32.mxu0 0.0
        %2302 = vmatmul.mubr.f32.gmra.mrb[0].mxu0 %v2118
        %v2303 = vpop.f32.mrb[0].mxu0
        %v2304 = vadd.f32 0.0, %v2303
        %v2305 = vpop.f32.mrb[0].mxu0
        %2306 = vmatprep.mubr.f32.mxu0 0.0
        %2307 = vmatmul.mubr.f32.gmra.mrb[0].mxu0 %v2121
        %v2308 = vpop.f32.mrb[0].mxu0
        %v2309 = vadd.f32 0.0, %v2308
        %v2310 = vpop.f32.mrb[0].mxu0
        %2311 = vmatprep.mubr.f32.mxu0 0.0
        %2312 = vmatmul.mubr.f32.gmra.mrb[0].mxu0 %v2124
        %v2313 = vpop.f32.mrb[0].mxu0
        %v2314 = vadd.f32 0.0, %v2313
        %v2315 = vpop.f32.mrb[0].mxu0
        %2316 = vmatprep.mubr.f32.mxu0 0.0
        %2317 = vmatmul.mubr.f32.gmra.mrb[0].mxu0 %v2127
        %v2318 = vpop.f32.mrb[0].mxu0
        %v2319 = vadd.f32 0.0, %v2318
        %v2320 = vpop.f32.mrb[0].mxu0
        %2321 = vmatprep.mubr.f32.mxu0 0.0
        %2322 = vmatmul.mubr.f32.gmra.mrb[0].mxu0 %v2130
        %v2323 = vpop.f32.mrb[0].mxu0
        %v2324 = vadd.f32 0.0, %v2323
        %v2325 = vpop.f32.mrb[0].mxu0
        %2326 = vmatprep.mubr.f32.mxu0 0.0
        %2327 = vmatmul.mubr.f32.gmra.mrb[0].mxu0 %v2133
        %v2328 = vpop.f32.mrb[0].mxu0
        %v2329 = vadd.f32 0.0, %v2328
        %v2330 = vpop.f32.mrb[0].mxu0
        %2331 = vmatprep.mubr.f32.mxu0 0.0
        %2332 = vmatmul.mubr.f32.gmra.mrb[0].mxu0 %v2136
        %v2333 = vpop.f32.mrb[0].mxu0
        %v2334 = vadd.f32 0.0, %v2333
        %v2335 = vpop.f32.mrb[0].mxu0
        %2336 = vmatprep.mubr.f32.mxu0 0.0
        %2337 = vmatmul.mubr.f32.gmra.mrb[0].mxu0 %v2139
        %v2338 = vpop.f32.mrb[0].mxu0
        %v2339 = vadd.f32 0.0, %v2338
        %v2340 = vpop.f32.mrb[0].mxu0
        %2341 = vmatprep.mubr.f32.mxu0 0.0
        %2342 = vmatmul.mubr.f32.gmra.mrb[0].mxu0 %v2142
        %v2343 = vpop.f32.mrb[0].mxu0
        %v2344 = vadd.f32 0.0, %v2343
        %v2345 = vpop.f32.mrb[0].mxu0
        %2346 = vmatprep.mubr.f32.mxu0 0.0
        %2347 = vmatmul.mubr.f32.gmra.mrb[0].mxu0 %v2145
        %v2348 = vpop.f32.mrb[0].mxu0
        %v2349 = vadd.f32 0.0, %v2348
        %v2350 = vpop.f32.mrb[0].mxu0
        %2351 = vmatprep.mubr.f32.mxu0 0.0
        %2352 = vmatmul.mubr.f32.gmra.mrb[0].mxu0 %v2148
        %v2353 = vpop.f32.mrb[0].mxu0
        %v2354 = vadd.f32 0.0, %v2353
        %v2355 = vpop.f32.mrb[0].mxu0
        %2356 = vmatprep.mubr.f32.mxu0 0.0
        %2357 = vmatmul.mubr.f32.gmra.mrb[0].mxu0 %v2151
        %v2358 = vpop.f32.mrb[0].mxu0
        %v2359 = vadd.f32 0.0, %v2358
        %v2360 = vpop.f32.mrb[0].mxu0
        %2361 = vmatprep.mubr.f32.mxu0 0.0
        %2362 = vmatmul.mubr.f32.gmra.mrb[0].mxu0 %v2154
        %v2363 = vpop.f32.mrb[0].mxu0
        %v2364 = vadd.f32 0.0, %v2363
        %v2365 = vpop.f32.mrb[0].mxu0
        %2366 = vmatprep.mubr.f32.mxu0 0.0
        %2367 = vmatmul.mubr.f32.gmra.mrb[0].mxu0 %v2157
        %v2368 = vpop.f32.mrb[0].mxu0
        %v2369 = vadd.f32 0.0, %v2368
        %v2370 = vpop.f32.mrb[0].mxu0
        %2371 = vmatprep.mubr.f32.mxu0 0.0
        %2372 = vmatmul.mubr.f32.gmra.mrb[0].mxu0 %v2160
        %v2373 = vpop.f32.mrb[0].mxu0
        %v2374 = vadd.f32 0.0, %v2373
        %v2375 = vpop.f32.mrb[0].mxu0
        %2376 = vmatprep.mubr.f32.mxu0 0.0
        %2377 = vmatmul.mubr.f32.gmra.mrb[0].mxu0 %v2163
        %v2378 = vpop.f32.mrb[0].mxu0
        %v2379 = vadd.f32 0.0, %v2378
        %v2380 = vpop.f32.mrb[0].mxu0
        %2381 = vmatprep.mubr.f32.mxu0 0.0
        %2382 = vmatmul.mubr.f32.gmra.mrb[0].mxu0 %v2166
        %v2383 = vpop.f32.mrb[0].mxu0
        %v2384 = vadd.f32 0.0, %v2383
        %v2385 = vpop.f32.mrb[0].mxu0
        %2386 = vmatprep.mubr.f32.mxu0 0.0
        %2387 = vmatmul.mubr.f32.gmra.mrb[0].mxu0 %v2169
        %v2388 = vpop.f32.mrb[0].mxu0
        %v2389 = vadd.f32 0.0, %v2388
        %v2390 = vpop.f32.mrb[0].mxu0
        %2391 = vmatprep.mubr.f32.mxu0 0.0
        %2392 = vmatmul.mubr.f32.gmra.mrb[0].mxu0 %v2172
        %v2393 = vpop.f32.mrb[0].mxu0
        %v2394 = vadd.f32 0.0, %v2393
        %v2395 = vpop.f32.mrb[0].mxu0
        %2396 = vmatprep.mubr.f32.mxu0 0.0
        %2397 = vmatmul.mubr.f32.gmra.mrb[0].mxu0 %v2175
        %v2398 = vpop.f32.mrb[0].mxu0
        %v2399 = vadd.f32 0.0, %v2398
        %v2400 = vpop.f32.mrb[0].mxu0
        %2401 = vdwg.mxu0
        %v2402 = vadd.f32 %v2014, %v2244
        %v2403 = vadd.f32 %v2015, %v2249
        %v2404 = vadd.f32 %v2016, %v2254
        %v2405 = vadd.f32 %v2017, %v2259
        %v2406 = vadd.f32 %v2018, %v2264
        %v2407 = vadd.f32 %v2019, %v2269
        %v2408 = vadd.f32 %v2020, %v2274
        %v2409 = vadd.f32 %v2021, %v2279
        %v2410 = vadd.f32 %v2022, %v2284
        %v2411 = vadd.f32 %v2023, %v2289
        %v2412 = vadd.f32 %v2024, %v2294
        %v2413 = vadd.f32 %v2025, %v2299
        %v2414 = vadd.f32 %v2026, %v2304
        %v2415 = vadd.f32 %v2027, %v2309
        %v2416 = vadd.f32 %v2028, %v2314
        %v2417 = vadd.f32 %v2029, %v2319
        %v2418 = vadd.f32 %v2030, %v2324
        %v2419 = vadd.f32 %v2031, %v2329
        %v2420 = vadd.f32 %v2032, %v2334
        %v2421 = vadd.f32 %v2033, %v2339
        %v2422 = vadd.f32 %v2034, %v2344
        %v2423 = vadd.f32 %v2035, %v2349
        %v2424 = vadd.f32 %v2036, %v2354
        %v2425 = vadd.f32 %v2037, %v2359
        %v2426 = vadd.f32 %v2038, %v2364
        %v2427 = vadd.f32 %v2039, %v2369
        %v2428 = vadd.f32 %v2040, %v2374
        %v2429 = vadd.f32 %v2041, %v2379
        %v2430 = vadd.f32 %v2042, %v2384
        %v2431 = vadd.f32 %v2043, %v2389
        %v2432 = vadd.f32 %v2044, %v2394
        %v2433 = vadd.f32 %v2045, %v2399
        %s2434 = scalar_lea.vmem %s168, 48
        %v2435 = vld [vmem:[%s2434] sm:$0xff]
        %v2436 = vld [vmem:[%s2434 + $0x8] sm:$0xff]
        %v2437 = vld [vmem:[%s2434 + $0x18] sm:$0xff]
        %v2438 = vld [vmem:[%s2434 + $0x20] sm:$0xff]
        %v2439 = vld [vmem:[%s2434 + $0x30] sm:$0xff]
        %v2440 = vld [vmem:[%s2434 + $0x38] sm:$0xff]
        %v2441 = vld [vmem:[%s2434 + $0x48] sm:$0xff]
        %v2442 = vld [vmem:[%s2434 + $0x50] sm:$0xff]
        %v2443 = vld [vmem:[%s2434 + $0x60] sm:$0xff]
        %v2444 = vld [vmem:[%s2434 + $0x68] sm:$0xff]
        %v2445 = vld [vmem:[%s2434 + $0x78] sm:$0xff]
        %v2446 = vld [vmem:[%s2434 + $0x80] sm:$0xff]
        %v2447 = vld [vmem:[%s2434 + $0x90] sm:$0xff]
        %v2448 = vld [vmem:[%s2434 + $0x98] sm:$0xff]
        %v2449 = vld [vmem:[%s2434 + $0xa8] sm:$0xff]
        %v2450 = vld [vmem:[%s2434 + $0xb0] sm:$0xff]
        %v2451 = vld [vmem:[%s2434 + $0xc0] sm:$0xff]
        %v2452 = vld [vmem:[%s2434 + $0xc8] sm:$0xff]
        %v2453 = vld [vmem:[%s2434 + $0xd8] sm:$0xff]
        %v2454 = vld [vmem:[%s2434 + $0xe0] sm:$0xff]
        %v2455 = vld [vmem:[%s2434 + $0xf0] sm:$0xff]
        %v2456 = vld [vmem:[%s2434 + $0xf8] sm:$0xff]
        %v2457 = vld [vmem:[%s2434 + $0x108] sm:$0xff]
        %v2458 = vld [vmem:[%s2434 + $0x110] sm:$0xff]
        %v2459 = vld [vmem:[%s2434 + $0x120] sm:$0xff]
        %v2460 = vld [vmem:[%s2434 + $0x128] sm:$0xff]
        %v2461 = vld [vmem:[%s2434 + $0x138] sm:$0xff]
        %v2462 = vld [vmem:[%s2434 + $0x140] sm:$0xff]
        %v2463 = vld [vmem:[%s2434 + $0x150] sm:$0xff]
        %v2464 = vld [vmem:[%s2434 + $0x158] sm:$0xff]
        %v2465 = vld [vmem:[%s2434 + $0x168] sm:$0xff]
        %v2466 = vld [vmem:[%s2434 + $0x170] sm:$0xff]
        %s2467 = scalar_lea.vmem %s1, 96
        %v2468 = vld [vmem:[%s2467] sm:$0xff]
        %v2469 = vld [vmem:[%s2467 + $0x8] sm:$0xff]
        %v2471 = vsel %vm238, %v2435, 0
        %v2474 = vsel %vm238, %v2436, 0
        %v2477 = vsel %vm238, %v2437, 0
        %v2480 = vsel %vm238, %v2438, 0
        %v2483 = vsel %vm238, %v2439, 0
        %v2486 = vsel %vm238, %v2440, 0
        %v2489 = vsel %vm238, %v2441, 0
        %v2492 = vsel %vm238, %v2442, 0
        %v2495 = vsel %vm238, %v2443, 0
        %v2498 = vsel %vm238, %v2444, 0
        %v2501 = vsel %vm238, %v2445, 0
        %v2504 = vsel %vm238, %v2446, 0
        %v2507 = vsel %vm238, %v2447, 0
        %v2510 = vsel %vm238, %v2448, 0
        %v2513 = vsel %vm238, %v2449, 0
        %v2516 = vsel %vm238, %v2450, 0
        %v2519 = vsel %vm238, %v2451, 0
        %v2522 = vsel %vm238, %v2452, 0
        %v2525 = vsel %vm238, %v2453, 0
        %v2528 = vsel %vm238, %v2454, 0
        %v2531 = vsel %vm238, %v2455, 0
        %v2534 = vsel %vm238, %v2456, 0
        %v2537 = vsel %vm238, %v2457, 0
        %v2540 = vsel %vm238, %v2458, 0
        %v2543 = vsel %vm238, %v2459, 0
        %v2546 = vsel %vm238, %v2460, 0
        %v2549 = vsel %vm238, %v2461, 0
        %v2552 = vsel %vm238, %v2462, 0
        %v2555 = vsel %vm238, %v2463, 0
        %v2558 = vsel %vm238, %v2464, 0
        %v2561 = vsel %vm238, %v2465, 0
        %v2564 = vsel %vm238, %v2466, 0
        %2566 = vmatprep.subr.mxu0 0.0
        %2567 = vmatpush1.msra.mxu0 %v2468
        %2568 = vmatprep.subr.mxu0 0.0
        %2569 = vmatpush1.msra.mxu0 %v2469
        %2570 = vmatprep.subr.mxu0 0.0
        %2571 = vmatpush1.msra.mxu0 0.0
        %2572 = vmatprep.subr.mxu0 0.0
        %2573 = vmatpush1.msra.mxu0 0.0
        %2574 = vmatprep.subr.mxu0 0.0
        %2575 = vmatpush1.msra.mxu0 0.0
        %2576 = vmatprep.subr.mxu0 0.0
        %2577 = vmatpush1.msra.mxu0 0.0
        %2578 = vmatprep.subr.mxu0 0.0
        %2579 = vmatpush1.msra.mxu0 0.0
        %2580 = vmatprep.subr.mxu0 0.0
        %2581 = vmatpush1.msra.mxu0 0.0
        %2582 = vmatprep.subr.mxu0 0.0
        %2583 = vmatpush1.msra.mxu0 0.0
        %2584 = vmatprep.subr.mxu0 0.0
        %2585 = vmatpush1.msra.mxu0 0.0
        %2586 = vmatprep.subr.mxu0 0.0
        %2587 = vmatpush1.msra.mxu0 0.0
        %2588 = vmatprep.subr.mxu0 0.0
        %2589 = vmatpush1.msra.mxu0 0.0
        %2590 = vmatprep.subr.mxu0 0.0
        %2591 = vmatpush1.msra.mxu0 0.0
        %2592 = vmatprep.subr.mxu0 0.0
        %2593 = vmatpush1.msra.mxu0 0.0
        %2594 = vmatprep.subr.mxu0 0.0
        %2595 = vmatpush1.msra.mxu0 0.0
        %2596 = vmatprep.subr.mxu0 0.0
        %2597 = vmatpush1.msra.mxu0 0.0
        %2598 = vmatprep.subr.mxu0 0.0
        %2599 = vmatpush1.msra.mxu0 0.0
        %2600 = vmatprep.subr.mxu0 0.0
        %2601 = vmatpush1.msra.mxu0 0.0
        %2602 = vmatprep.subr.mxu0 0.0
        %2603 = vmatpush1.msra.mxu0 0.0
        %2604 = vmatprep.subr.mxu0 0.0
        %2605 = vmatpush1.msra.mxu0 0.0
        %2606 = vmatprep.subr.mxu0 0.0
        %2607 = vmatpush1.msra.mxu0 0.0
        %2608 = vmatprep.subr.mxu0 0.0
        %2609 = vmatpush1.msra.mxu0 0.0
        %2610 = vmatprep.subr.mxu0 0.0
        %2611 = vmatpush1.msra.mxu0 0.0
        %2612 = vmatprep.subr.mxu0 0.0
        %2613 = vmatpush1.msra.mxu0 0.0
        %2614 = vmatprep.subr.mxu0 0.0
        %2615 = vmatpush1.msra.mxu0 0.0
        %2616 = vmatprep.subr.mxu0 0.0
        %2617 = vmatpush1.msra.mxu0 0.0
        %2618 = vmatprep.subr.mxu0 0.0
        %2619 = vmatpush1.msra.mxu0 0.0
        %2620 = vmatprep.subr.mxu0 0.0
        %2621 = vmatpush1.msra.mxu0 0.0
        %2622 = vmatprep.subr.mxu0 0.0
        %2623 = vmatpush1.msra.mxu0 0.0
        %2624 = vmatprep.subr.mxu0 0.0
        %2625 = vmatpush1.msra.mxu0 0.0
        %2626 = vmatprep.subr.mxu0 0.0
        %2627 = vmatpush1.msra.mxu0 0.0
        %2628 = vmatprep.subr.mxu0 0.0
        %2629 = vmatpush1.msra.mxu0 0.0
        %2630 = vmatprep.mubr.f32.mxu0 0.0
        %2631 = vmatmul.mubr.f32.gmra.mrb[0].mxu0 %v2471
        %v2632 = vpop.f32.mrb[0].mxu0
        %v2633 = vadd.f32 0.0, %v2632
        %v2634 = vpop.f32.mrb[0].mxu0
        %2635 = vmatprep.mubr.f32.mxu0 0.0
        %2636 = vmatmul.mubr.f32.gmra.mrb[0].mxu0 %v2474
        %v2637 = vpop.f32.mrb[0].mxu0
        %v2638 = vadd.f32 0.0, %v2637
        %v2639 = vpop.f32.mrb[0].mxu0
        %2640 = vmatprep.mubr.f32.mxu0 0.0
        %2641 = vmatmul.mubr.f32.gmra.mrb[0].mxu0 %v2477
        %v2642 = vpop.f32.mrb[0].mxu0
        %v2643 = vadd.f32 0.0, %v2642
        %v2644 = vpop.f32.mrb[0].mxu0
        %2645 = vmatprep.mubr.f32.mxu0 0.0
        %2646 = vmatmul.mubr.f32.gmra.mrb[0].mxu0 %v2480
        %v2647 = vpop.f32.mrb[0].mxu0
        %v2648 = vadd.f32 0.0, %v2647
        %v2649 = vpop.f32.mrb[0].mxu0
        %2650 = vmatprep.mubr.f32.mxu0 0.0
        %2651 = vmatmul.mubr.f32.gmra.mrb[0].mxu0 %v2483
        %v2652 = vpop.f32.mrb[0].mxu0
        %v2653 = vadd.f32 0.0, %v2652
        %v2654 = vpop.f32.mrb[0].mxu0
        %2655 = vmatprep.mubr.f32.mxu0 0.0
        %2656 = vmatmul.mubr.f32.gmra.mrb[0].mxu0 %v2486
        %v2657 = vpop.f32.mrb[0].mxu0
        %v2658 = vadd.f32 0.0, %v2657
        %v2659 = vpop.f32.mrb[0].mxu0
        %2660 = vmatprep.mubr.f32.mxu0 0.0
        %2661 = vmatmul.mubr.f32.gmra.mrb[0].mxu0 %v2489
        %v2662 = vpop.f32.mrb[0].mxu0
        %v2663 = vadd.f32 0.0, %v2662
        %v2664 = vpop.f32.mrb[0].mxu0
        %2665 = vmatprep.mubr.f32.mxu0 0.0
        %2666 = vmatmul.mubr.f32.gmra.mrb[0].mxu0 %v2492
        %v2667 = vpop.f32.mrb[0].mxu0
        %v2668 = vadd.f32 0.0, %v2667
        %v2669 = vpop.f32.mrb[0].mxu0
        %2670 = vmatprep.mubr.f32.mxu0 0.0
        %2671 = vmatmul.mubr.f32.gmra.mrb[0].mxu0 %v2495
        %v2672 = vpop.f32.mrb[0].mxu0
        %v2673 = vadd.f32 0.0, %v2672
        %v2674 = vpop.f32.mrb[0].mxu0
        %2675 = vmatprep.mubr.f32.mxu0 0.0
        %2676 = vmatmul.mubr.f32.gmra.mrb[0].mxu0 %v2498
        %v2677 = vpop.f32.mrb[0].mxu0
        %v2678 = vadd.f32 0.0, %v2677
        %v2679 = vpop.f32.mrb[0].mxu0
        %2680 = vmatprep.mubr.f32.mxu0 0.0
        %2681 = vmatmul.mubr.f32.gmra.mrb[0].mxu0 %v2501
        %v2682 = vpop.f32.mrb[0].mxu0
        %v2683 = vadd.f32 0.0, %v2682
        %v2684 = vpop.f32.mrb[0].mxu0
        %2685 = vmatprep.mubr.f32.mxu0 0.0
        %2686 = vmatmul.mubr.f32.gmra.mrb[0].mxu0 %v2504
        %v2687 = vpop.f32.mrb[0].mxu0
        %v2688 = vadd.f32 0.0, %v2687
        %v2689 = vpop.f32.mrb[0].mxu0
        %2690 = vmatprep.mubr.f32.mxu0 0.0
        %2691 = vmatmul.mubr.f32.gmra.mrb[0].mxu0 %v2507
        %v2692 = vpop.f32.mrb[0].mxu0
        %v2693 = vadd.f32 0.0, %v2692
        %v2694 = vpop.f32.mrb[0].mxu0
        %2695 = vmatprep.mubr.f32.mxu0 0.0
        %2696 = vmatmul.mubr.f32.gmra.mrb[0].mxu0 %v2510
        %v2697 = vpop.f32.mrb[0].mxu0
        %v2698 = vadd.f32 0.0, %v2697
        %v2699 = vpop.f32.mrb[0].mxu0
        %2700 = vmatprep.mubr.f32.mxu0 0.0
        %2701 = vmatmul.mubr.f32.gmra.mrb[0].mxu0 %v2513
        %v2702 = vpop.f32.mrb[0].mxu0
        %v2703 = vadd.f32 0.0, %v2702
        %v2704 = vpop.f32.mrb[0].mxu0
        %2705 = vmatprep.mubr.f32.mxu0 0.0
        %2706 = vmatmul.mubr.f32.gmra.mrb[0].mxu0 %v2516
        %v2707 = vpop.f32.mrb[0].mxu0
        %v2708 = vadd.f32 0.0, %v2707
        %v2709 = vpop.f32.mrb[0].mxu0
        %2710 = vmatprep.mubr.f32.mxu0 0.0
        %2711 = vmatmul.mubr.f32.gmra.mrb[0].mxu0 %v2519
        %v2712 = vpop.f32.mrb[0].mxu0
        %v2713 = vadd.f32 0.0, %v2712
        %v2714 = vpop.f32.mrb[0].mxu0
        %2715 = vmatprep.mubr.f32.mxu0 0.0
        %2716 = vmatmul.mubr.f32.gmra.mrb[0].mxu0 %v2522
        %v2717 = vpop.f32.mrb[0].mxu0
        %v2718 = vadd.f32 0.0, %v2717
        %v2719 = vpop.f32.mrb[0].mxu0
        %2720 = vmatprep.mubr.f32.mxu0 0.0
        %2721 = vmatmul.mubr.f32.gmra.mrb[0].mxu0 %v2525
        %v2722 = vpop.f32.mrb[0].mxu0
        %v2723 = vadd.f32 0.0, %v2722
        %v2724 = vpop.f32.mrb[0].mxu0
        %2725 = vmatprep.mubr.f32.mxu0 0.0
        %2726 = vmatmul.mubr.f32.gmra.mrb[0].mxu0 %v2528
        %v2727 = vpop.f32.mrb[0].mxu0
        %v2728 = vadd.f32 0.0, %v2727
        %v2729 = vpop.f32.mrb[0].mxu0
        %2730 = vmatprep.mubr.f32.mxu0 0.0
        %2731 = vmatmul.mubr.f32.gmra.mrb[0].mxu0 %v2531
        %v2732 = vpop.f32.mrb[0].mxu0
        %v2733 = vadd.f32 0.0, %v2732
        %v2734 = vpop.f32.mrb[0].mxu0
        %2735 = vmatprep.mubr.f32.mxu0 0.0
        %2736 = vmatmul.mubr.f32.gmra.mrb[0].mxu0 %v2534
        %v2737 = vpop.f32.mrb[0].mxu0
        %v2738 = vadd.f32 0.0, %v2737
        %v2739 = vpop.f32.mrb[0].mxu0
        %2740 = vmatprep.mubr.f32.mxu0 0.0
        %2741 = vmatmul.mubr.f32.gmra.mrb[0].mxu0 %v2537
        %v2742 = vpop.f32.mrb[0].mxu0
        %v2743 = vadd.f32 0.0, %v2742
        %v2744 = vpop.f32.mrb[0].mxu0
        %2745 = vmatprep.mubr.f32.mxu0 0.0
        %2746 = vmatmul.mubr.f32.gmra.mrb[0].mxu0 %v2540
        %v2747 = vpop.f32.mrb[0].mxu0
        %v2748 = vadd.f32 0.0, %v2747
        %v2749 = vpop.f32.mrb[0].mxu0
        %2750 = vmatprep.mubr.f32.mxu0 0.0
        %2751 = vmatmul.mubr.f32.gmra.mrb[0].mxu0 %v2543
        %v2752 = vpop.f32.mrb[0].mxu0
        %v2753 = vadd.f32 0.0, %v2752
        %v2754 = vpop.f32.mrb[0].mxu0
        %2755 = vmatprep.mubr.f32.mxu0 0.0
        %2756 = vmatmul.mubr.f32.gmra.mrb[0].mxu0 %v2546
        %v2757 = vpop.f32.mrb[0].mxu0
        %v2758 = vadd.f32 0.0, %v2757
        %v2759 = vpop.f32.mrb[0].mxu0
        %2760 = vmatprep.mubr.f32.mxu0 0.0
        %2761 = vmatmul.mubr.f32.gmra.mrb[0].mxu0 %v2549
        %v2762 = vpop.f32.mrb[0].mxu0
        %v2763 = vadd.f32 0.0, %v2762
        %v2764 = vpop.f32.mrb[0].mxu0
        %2765 = vmatprep.mubr.f32.mxu0 0.0
        %2766 = vmatmul.mubr.f32.gmra.mrb[0].mxu0 %v2552
        %v2767 = vpop.f32.mrb[0].mxu0
        %v2768 = vadd.f32 0.0, %v2767
        %v2769 = vpop.f32.mrb[0].mxu0
        %2770 = vmatprep.mubr.f32.mxu0 0.0
        %2771 = vmatmul.mubr.f32.gmra.mrb[0].mxu0 %v2555
        %v2772 = vpop.f32.mrb[0].mxu0
        %v2773 = vadd.f32 0.0, %v2772
        %v2774 = vpop.f32.mrb[0].mxu0
        %2775 = vmatprep.mubr.f32.mxu0 0.0
        %2776 = vmatmul.mubr.f32.gmra.mrb[0].mxu0 %v2558
        %v2777 = vpop.f32.mrb[0].mxu0
        %v2778 = vadd.f32 0.0, %v2777
        %v2779 = vpop.f32.mrb[0].mxu0
        %2780 = vmatprep.mubr.f32.mxu0 0.0
        %2781 = vmatmul.mubr.f32.gmra.mrb[0].mxu0 %v2561
        %v2782 = vpop.f32.mrb[0].mxu0
        %v2783 = vadd.f32 0.0, %v2782
        %v2784 = vpop.f32.mrb[0].mxu0
        %2785 = vmatprep.mubr.f32.mxu0 0.0
        %2786 = vmatmul.mubr.f32.gmra.mrb[0].mxu0 %v2564
        %v2787 = vpop.f32.mrb[0].mxu0
        %v2788 = vadd.f32 0.0, %v2787
        %v2789 = vpop.f32.mrb[0].mxu0
        %2790 = vdwg.mxu0
        %v2791 = vadd.f32 %v2402, %v2633
        %v2792 = vadd.f32 %v2403, %v2638
        %v2793 = vadd.f32 %v2404, %v2643
        %v2794 = vadd.f32 %v2405, %v2648
        %v2795 = vadd.f32 %v2406, %v2653
        %v2796 = vadd.f32 %v2407, %v2658
        %v2797 = vadd.f32 %v2408, %v2663
        %v2798 = vadd.f32 %v2409, %v2668
        %v2799 = vadd.f32 %v2410, %v2673
        %v2800 = vadd.f32 %v2411, %v2678
        %v2801 = vadd.f32 %v2412, %v2683
        %v2802 = vadd.f32 %v2413, %v2688
        %v2803 = vadd.f32 %v2414, %v2693
        %v2804 = vadd.f32 %v2415, %v2698
        %v2805 = vadd.f32 %v2416, %v2703
        %v2806 = vadd.f32 %v2417, %v2708
        %v2807 = vadd.f32 %v2418, %v2713
        %v2808 = vadd.f32 %v2419, %v2718
        %v2809 = vadd.f32 %v2420, %v2723
        %v2810 = vadd.f32 %v2421, %v2728
        %v2811 = vadd.f32 %v2422, %v2733
        %v2812 = vadd.f32 %v2423, %v2738
        %v2813 = vadd.f32 %v2424, %v2743
        %v2814 = vadd.f32 %v2425, %v2748
        %v2815 = vadd.f32 %v2426, %v2753
        %v2816 = vadd.f32 %v2427, %v2758
        %v2817 = vadd.f32 %v2428, %v2763
        %v2818 = vadd.f32 %v2429, %v2768
        %v2819 = vadd.f32 %v2430, %v2773
        %v2820 = vadd.f32 %v2431, %v2778
        %v2821 = vadd.f32 %v2432, %v2783
        %v2822 = vadd.f32 %v2433, %v2788
        %v2823 = vld [vmem:[%s2434 + $0x1] sm:$0xff]
        %v2824 = vld [vmem:[%s2434 + $0x9] sm:$0xff]
        %v2825 = vld [vmem:[%s2434 + $0x19] sm:$0xff]
        %v2826 = vld [vmem:[%s2434 + $0x21] sm:$0xff]
        %v2827 = vld [vmem:[%s2434 + $0x31] sm:$0xff]
        %v2828 = vld [vmem:[%s2434 + $0x39] sm:$0xff]
        %v2829 = vld [vmem:[%s2434 + $0x49] sm:$0xff]
        %v2830 = vld [vmem:[%s2434 + $0x51] sm:$0xff]
        %v2831 = vld [vmem:[%s2434 + $0x61] sm:$0xff]
        %v2832 = vld [vmem:[%s2434 + $0x69] sm:$0xff]
        %v2833 = vld [vmem:[%s2434 + $0x79] sm:$0xff]
        %v2834 = vld [vmem:[%s2434 + $0x81] sm:$0xff]
        %v2835 = vld [vmem:[%s2434 + $0x91] sm:$0xff]
        %v2836 = vld [vmem:[%s2434 + $0x99] sm:$0xff]
        %v2837 = vld [vmem:[%s2434 + $0xa9] sm:$0xff]
        %v2838 = vld [vmem:[%s2434 + $0xb1] sm:$0xff]
        %v2839 = vld [vmem:[%s2434 + $0xc1] sm:$0xff]
        %v2840 = vld [vmem:[%s2434 + $0xc9] sm:$0xff]
        %v2841 = vld [vmem:[%s2434 + $0xd9] sm:$0xff]
        %v2842 = vld [vmem:[%s2434 + $0xe1] sm:$0xff]
        %v2843 = vld [vmem:[%s2434 + $0xf1] sm:$0xff]
        %v2844 = vld [vmem:[%s2434 + $0xf9] sm:$0xff]
        %v2845 = vld [vmem:[%s2434 + $0x109] sm:$0xff]
        %v2846 = vld [vmem:[%s2434 + $0x111] sm:$0xff]
        %v2847 = vld [vmem:[%s2434 + $0x121] sm:$0xff]
        %v2848 = vld [vmem:[%s2434 + $0x129] sm:$0xff]
        %v2849 = vld [vmem:[%s2434 + $0x139] sm:$0xff]
        %v2850 = vld [vmem:[%s2434 + $0x141] sm:$0xff]
        %v2851 = vld [vmem:[%s2434 + $0x151] sm:$0xff]
        %v2852 = vld [vmem:[%s2434 + $0x159] sm:$0xff]
        %v2853 = vld [vmem:[%s2434 + $0x169] sm:$0xff]
        %v2854 = vld [vmem:[%s2434 + $0x171] sm:$0xff]
        %s2855 = scalar_lea.vmem %s1, 112
        %v2856 = vld [vmem:[%s2855] sm:$0xff]
        %v2857 = vld [vmem:[%s2855 + $0x8] sm:$0xff]
        %v2859 = vsel %vm238, %v2823, 0
        %v2862 = vsel %vm238, %v2824, 0
        %v2865 = vsel %vm238, %v2825, 0
        %v2868 = vsel %vm238, %v2826, 0
        %v2871 = vsel %vm238, %v2827, 0
        %v2874 = vsel %vm238, %v2828, 0
        %v2877 = vsel %vm238, %v2829, 0
        %v2880 = vsel %vm238, %v2830, 0
        %v2883 = vsel %vm238, %v2831, 0
        %v2886 = vsel %vm238, %v2832, 0
        %v2889 = vsel %vm238, %v2833, 0
        %v2892 = vsel %vm238, %v2834, 0
        %v2895 = vsel %vm238, %v2835, 0
        %v2898 = vsel %vm238, %v2836, 0
        %v2901 = vsel %vm238, %v2837, 0
        %v2904 = vsel %vm238, %v2838, 0
        %v2907 = vsel %vm238, %v2839, 0
        %v2910 = vsel %vm238, %v2840, 0
        %v2913 = vsel %vm238, %v2841, 0
        %v2916 = vsel %vm238, %v2842, 0
        %v2919 = vsel %vm238, %v2843, 0
        %v2922 = vsel %vm238, %v2844, 0
        %v2925 = vsel %vm238, %v2845, 0
        %v2928 = vsel %vm238, %v2846, 0
        %v2931 = vsel %vm238, %v2847, 0
        %v2934 = vsel %vm238, %v2848, 0
        %v2937 = vsel %vm238, %v2849, 0
        %v2940 = vsel %vm238, %v2850, 0
        %v2943 = vsel %vm238, %v2851, 0
        %v2946 = vsel %vm238, %v2852, 0
        %v2949 = vsel %vm238, %v2853, 0
        %v2952 = vsel %vm238, %v2854, 0
        %2954 = vmatprep.subr.mxu0 0.0
        %2955 = vmatpush1.msra.mxu0 %v2856
        %2956 = vmatprep.subr.mxu0 0.0
        %2957 = vmatpush1.msra.mxu0 %v2857
        %2958 = vmatprep.subr.mxu0 0.0
        %2959 = vmatpush1.msra.mxu0 0.0
        %2960 = vmatprep.subr.mxu0 0.0
        %2961 = vmatpush1.msra.mxu0 0.0
        %2962 = vmatprep.subr.mxu0 0.0
        %2963 = vmatpush1.msra.mxu0 0.0
        %2964 = vmatprep.subr.mxu0 0.0
        %2965 = vmatpush1.msra.mxu0 0.0
        %2966 = vmatprep.subr.mxu0 0.0
        %2967 = vmatpush1.msra.mxu0 0.0
        %2968 = vmatprep.subr.mxu0 0.0
        %2969 = vmatpush1.msra.mxu0 0.0
        %2970 = vmatprep.subr.mxu0 0.0
        %2971 = vmatpush1.msra.mxu0 0.0
        %2972 = vmatprep.subr.mxu0 0.0
        %2973 = vmatpush1.msra.mxu0 0.0
        %2974 = vmatprep.subr.mxu0 0.0
        %2975 = vmatpush1.msra.mxu0 0.0
        %2976 = vmatprep.subr.mxu0 0.0
        %2977 = vmatpush1.msra.mxu0 0.0
        %2978 = vmatprep.subr.mxu0 0.0
        %2979 = vmatpush1.msra.mxu0 0.0
        %2980 = vmatprep.subr.mxu0 0.0
        %2981 = vmatpush1.msra.mxu0 0.0
        %2982 = vmatprep.subr.mxu0 0.0
        %2983 = vmatpush1.msra.mxu0 0.0
        %2984 = vmatprep.subr.mxu0 0.0
        %2985 = vmatpush1.msra.mxu0 0.0
        %2986 = vmatprep.subr.mxu0 0.0
        %2987 = vmatpush1.msra.mxu0 0.0
        %2988 = vmatprep.subr.mxu0 0.0
        %2989 = vmatpush1.msra.mxu0 0.0
        %2990 = vmatprep.subr.mxu0 0.0
        %2991 = vmatpush1.msra.mxu0 0.0
        %2992 = vmatprep.subr.mxu0 0.0
        %2993 = vmatpush1.msra.mxu0 0.0
        %2994 = vmatprep.subr.mxu0 0.0
        %2995 = vmatpush1.msra.mxu0 0.0
        %2996 = vmatprep.subr.mxu0 0.0
        %2997 = vmatpush1.msra.mxu0 0.0
        %2998 = vmatprep.subr.mxu0 0.0
        %2999 = vmatpush1.msra.mxu0 0.0
        %3000 = vmatprep.subr.mxu0 0.0
        %3001 = vmatpush1.msra.mxu0 0.0
        %3002 = vmatprep.subr.mxu0 0.0
        %3003 = vmatpush1.msra.mxu0 0.0
        %3004 = vmatprep.subr.mxu0 0.0
        %3005 = vmatpush1.msra.mxu0 0.0
        %3006 = vmatprep.subr.mxu0 0.0
        %3007 = vmatpush1.msra.mxu0 0.0
        %3008 = vmatprep.subr.mxu0 0.0
        %3009 = vmatpush1.msra.mxu0 0.0
        %3010 = vmatprep.subr.mxu0 0.0
        %3011 = vmatpush1.msra.mxu0 0.0
        %3012 = vmatprep.subr.mxu0 0.0
        %3013 = vmatpush1.msra.mxu0 0.0
        %3014 = vmatprep.subr.mxu0 0.0
        %3015 = vmatpush1.msra.mxu0 0.0
        %3016 = vmatprep.subr.mxu0 0.0
        %3017 = vmatpush1.msra.mxu0 0.0
        %3018 = vmatprep.mubr.f32.mxu0 0.0
        %3019 = vmatmul.mubr.f32.gmra.mrb[0].mxu0 %v2859
        %v3020 = vpop.f32.mrb[0].mxu0
        %v3021 = vadd.f32 0.0, %v3020
        %v3022 = vpop.f32.mrb[0].mxu0
        %3023 = vmatprep.mubr.f32.mxu0 0.0
        %3024 = vmatmul.mubr.f32.gmra.mrb[0].mxu0 %v2862
        %v3025 = vpop.f32.mrb[0].mxu0
        %v3026 = vadd.f32 0.0, %v3025
        %v3027 = vpop.f32.mrb[0].mxu0
        %3028 = vmatprep.mubr.f32.mxu0 0.0
        %3029 = vmatmul.mubr.f32.gmra.mrb[0].mxu0 %v2865
        %v3030 = vpop.f32.mrb[0].mxu0
        %v3031 = vadd.f32 0.0, %v3030
        %v3032 = vpop.f32.mrb[0].mxu0
        %3033 = vmatprep.mubr.f32.mxu0 0.0
        %3034 = vmatmul.mubr.f32.gmra.mrb[0].mxu0 %v2868
        %v3035 = vpop.f32.mrb[0].mxu0
        %v3036 = vadd.f32 0.0, %v3035
        %v3037 = vpop.f32.mrb[0].mxu0
        %3038 = vmatprep.mubr.f32.mxu0 0.0
        %3039 = vmatmul.mubr.f32.gmra.mrb[0].mxu0 %v2871
        %v3040 = vpop.f32.mrb[0].mxu0
        %v3041 = vadd.f32 0.0, %v3040
        %v3042 = vpop.f32.mrb[0].mxu0
        %3043 = vmatprep.mubr.f32.mxu0 0.0
        %3044 = vmatmul.mubr.f32.gmra.mrb[0].mxu0 %v2874
        %v3045 = vpop.f32.mrb[0].mxu0
        %v3046 = vadd.f32 0.0, %v3045
        %v3047 = vpop.f32.mrb[0].mxu0
        %3048 = vmatprep.mubr.f32.mxu0 0.0
        %3049 = vmatmul.mubr.f32.gmra.mrb[0].mxu0 %v2877
        %v3050 = vpop.f32.mrb[0].mxu0
        %v3051 = vadd.f32 0.0, %v3050
        %v3052 = vpop.f32.mrb[0].mxu0
        %3053 = vmatprep.mubr.f32.mxu0 0.0
        %3054 = vmatmul.mubr.f32.gmra.mrb[0].mxu0 %v2880
        %v3055 = vpop.f32.mrb[0].mxu0
        %v3056 = vadd.f32 0.0, %v3055
        %v3057 = vpop.f32.mrb[0].mxu0
        %3058 = vmatprep.mubr.f32.mxu0 0.0
        %3059 = vmatmul.mubr.f32.gmra.mrb[0].mxu0 %v2883
        %v3060 = vpop.f32.mrb[0].mxu0
        %v3061 = vadd.f32 0.0, %v3060
        %v3062 = vpop.f32.mrb[0].mxu0
        %3063 = vmatprep.mubr.f32.mxu0 0.0
        %3064 = vmatmul.mubr.f32.gmra.mrb[0].mxu0 %v2886
        %v3065 = vpop.f32.mrb[0].mxu0
        %v3066 = vadd.f32 0.0, %v3065
        %v3067 = vpop.f32.mrb[0].mxu0
        %3068 = vmatprep.mubr.f32.mxu0 0.0
        %3069 = vmatmul.mubr.f32.gmra.mrb[0].mxu0 %v2889
        %v3070 = vpop.f32.mrb[0].mxu0
        %v3071 = vadd.f32 0.0, %v3070
        %v3072 = vpop.f32.mrb[0].mxu0
        %3073 = vmatprep.mubr.f32.mxu0 0.0
        %3074 = vmatmul.mubr.f32.gmra.mrb[0].mxu0 %v2892
        %v3075 = vpop.f32.mrb[0].mxu0
        %v3076 = vadd.f32 0.0, %v3075
        %v3077 = vpop.f32.mrb[0].mxu0
        %3078 = vmatprep.mubr.f32.mxu0 0.0
        %3079 = vmatmul.mubr.f32.gmra.mrb[0].mxu0 %v2895
        %v3080 = vpop.f32.mrb[0].mxu0
        %v3081 = vadd.f32 0.0, %v3080
        %v3082 = vpop.f32.mrb[0].mxu0
        %3083 = vmatprep.mubr.f32.mxu0 0.0
        %3084 = vmatmul.mubr.f32.gmra.mrb[0].mxu0 %v2898
        %v3085 = vpop.f32.mrb[0].mxu0
        %v3086 = vadd.f32 0.0, %v3085
        %v3087 = vpop.f32.mrb[0].mxu0
        %3088 = vmatprep.mubr.f32.mxu0 0.0
        %3089 = vmatmul.mubr.f32.gmra.mrb[0].mxu0 %v2901
        %v3090 = vpop.f32.mrb[0].mxu0
        %v3091 = vadd.f32 0.0, %v3090
        %v3092 = vpop.f32.mrb[0].mxu0
        %3093 = vmatprep.mubr.f32.mxu0 0.0
        %3094 = vmatmul.mubr.f32.gmra.mrb[0].mxu0 %v2904
        %v3095 = vpop.f32.mrb[0].mxu0
        %v3096 = vadd.f32 0.0, %v3095
        %v3097 = vpop.f32.mrb[0].mxu0
        %3098 = vmatprep.mubr.f32.mxu0 0.0
        %3099 = vmatmul.mubr.f32.gmra.mrb[0].mxu0 %v2907
        %v3100 = vpop.f32.mrb[0].mxu0
        %v3101 = vadd.f32 0.0, %v3100
        %v3102 = vpop.f32.mrb[0].mxu0
        %3103 = vmatprep.mubr.f32.mxu0 0.0
        %3104 = vmatmul.mubr.f32.gmra.mrb[0].mxu0 %v2910
        %v3105 = vpop.f32.mrb[0].mxu0
        %v3106 = vadd.f32 0.0, %v3105
        %v3107 = vpop.f32.mrb[0].mxu0
        %3108 = vmatprep.mubr.f32.mxu0 0.0
        %3109 = vmatmul.mubr.f32.gmra.mrb[0].mxu0 %v2913
        %v3110 = vpop.f32.mrb[0].mxu0
        %v3111 = vadd.f32 0.0, %v3110
        %v3112 = vpop.f32.mrb[0].mxu0
        %3113 = vmatprep.mubr.f32.mxu0 0.0
        %3114 = vmatmul.mubr.f32.gmra.mrb[0].mxu0 %v2916
        %v3115 = vpop.f32.mrb[0].mxu0
        %v3116 = vadd.f32 0.0, %v3115
        %v3117 = vpop.f32.mrb[0].mxu0
        %3118 = vmatprep.mubr.f32.mxu0 0.0
        %3119 = vmatmul.mubr.f32.gmra.mrb[0].mxu0 %v2919
        %v3120 = vpop.f32.mrb[0].mxu0
        %v3121 = vadd.f32 0.0, %v3120
        %v3122 = vpop.f32.mrb[0].mxu0
        %3123 = vmatprep.mubr.f32.mxu0 0.0
        %3124 = vmatmul.mubr.f32.gmra.mrb[0].mxu0 %v2922
        %v3125 = vpop.f32.mrb[0].mxu0
        %v3126 = vadd.f32 0.0, %v3125
        %v3127 = vpop.f32.mrb[0].mxu0
        %3128 = vmatprep.mubr.f32.mxu0 0.0
        %3129 = vmatmul.mubr.f32.gmra.mrb[0].mxu0 %v2925
        %v3130 = vpop.f32.mrb[0].mxu0
        %v3131 = vadd.f32 0.0, %v3130
        %v3132 = vpop.f32.mrb[0].mxu0
        %3133 = vmatprep.mubr.f32.mxu0 0.0
        %3134 = vmatmul.mubr.f32.gmra.mrb[0].mxu0 %v2928
        %v3135 = vpop.f32.mrb[0].mxu0
        %v3136 = vadd.f32 0.0, %v3135
        %v3137 = vpop.f32.mrb[0].mxu0
        %3138 = vmatprep.mubr.f32.mxu0 0.0
        %3139 = vmatmul.mubr.f32.gmra.mrb[0].mxu0 %v2931
        %v3140 = vpop.f32.mrb[0].mxu0
        %v3141 = vadd.f32 0.0, %v3140
        %v3142 = vpop.f32.mrb[0].mxu0
        %3143 = vmatprep.mubr.f32.mxu0 0.0
        %3144 = vmatmul.mubr.f32.gmra.mrb[0].mxu0 %v2934
        %v3145 = vpop.f32.mrb[0].mxu0
        %v3146 = vadd.f32 0.0, %v3145
        %v3147 = vpop.f32.mrb[0].mxu0
        %3148 = vmatprep.mubr.f32.mxu0 0.0
        %3149 = vmatmul.mubr.f32.gmra.mrb[0].mxu0 %v2937
        %v3150 = vpop.f32.mrb[0].mxu0
        %v3151 = vadd.f32 0.0, %v3150
        %v3152 = vpop.f32.mrb[0].mxu0
        %3153 = vmatprep.mubr.f32.mxu0 0.0
        %3154 = vmatmul.mubr.f32.gmra.mrb[0].mxu0 %v2940
        %v3155 = vpop.f32.mrb[0].mxu0
        %v3156 = vadd.f32 0.0, %v3155
        %v3157 = vpop.f32.mrb[0].mxu0
        %3158 = vmatprep.mubr.f32.mxu0 0.0
        %3159 = vmatmul.mubr.f32.gmra.mrb[0].mxu0 %v2943
        %v3160 = vpop.f32.mrb[0].mxu0
        %v3161 = vadd.f32 0.0, %v3160
        %v3162 = vpop.f32.mrb[0].mxu0
        %3163 = vmatprep.mubr.f32.mxu0 0.0
        %3164 = vmatmul.mubr.f32.gmra.mrb[0].mxu0 %v2946
        %v3165 = vpop.f32.mrb[0].mxu0
        %v3166 = vadd.f32 0.0, %v3165
        %v3167 = vpop.f32.mrb[0].mxu0
        %3168 = vmatprep.mubr.f32.mxu0 0.0
        %3169 = vmatmul.mubr.f32.gmra.mrb[0].mxu0 %v2949
        %v3170 = vpop.f32.mrb[0].mxu0
        %v3171 = vadd.f32 0.0, %v3170
        %v3172 = vpop.f32.mrb[0].mxu0
        %3173 = vmatprep.mubr.f32.mxu0 0.0
        %3174 = vmatmul.mubr.f32.gmra.mrb[0].mxu0 %v2952
        %v3175 = vpop.f32.mrb[0].mxu0
        %v3176 = vadd.f32 0.0, %v3175
        %v3177 = vpop.f32.mrb[0].mxu0
        %3178 = vdwg.mxu0
        %v3179 = vadd.f32 %v2791, %v3021
        %v3180 = vadd.f32 %v2792, %v3026
        %v3181 = vadd.f32 %v2793, %v3031
        %v3182 = vadd.f32 %v2794, %v3036
        %v3183 = vadd.f32 %v2795, %v3041
        %v3184 = vadd.f32 %v2796, %v3046
        %v3185 = vadd.f32 %v2797, %v3051
        %v3186 = vadd.f32 %v2798, %v3056
        %v3187 = vadd.f32 %v2799, %v3061
        %v3188 = vadd.f32 %v2800, %v3066
        %v3189 = vadd.f32 %v2801, %v3071
        %v3190 = vadd.f32 %v2802, %v3076
        %v3191 = vadd.f32 %v2803, %v3081
        %v3192 = vadd.f32 %v2804, %v3086
        %v3193 = vadd.f32 %v2805, %v3091
        %v3194 = vadd.f32 %v2806, %v3096
        %v3195 = vadd.f32 %v2807, %v3101
        %v3196 = vadd.f32 %v2808, %v3106
        %v3197 = vadd.f32 %v2809, %v3111
        %v3198 = vadd.f32 %v2810, %v3116
        %v3199 = vadd.f32 %v2811, %v3121
        %v3200 = vadd.f32 %v2812, %v3126
        %v3201 = vadd.f32 %v2813, %v3131
        %v3202 = vadd.f32 %v2814, %v3136
        %v3203 = vadd.f32 %v2815, %v3141
        %v3204 = vadd.f32 %v2816, %v3146
        %v3205 = vadd.f32 %v2817, %v3151
        %v3206 = vadd.f32 %v2818, %v3156
        %v3207 = vadd.f32 %v2819, %v3161
        %v3208 = vadd.f32 %v2820, %v3166
        %v3209 = vadd.f32 %v2821, %v3171
        %v3210 = vadd.f32 %v2822, %v3176
        %v3211 = vld [vmem:[%s2434 + $0x2] sm:$0xff]
        %v3212 = vld [vmem:[%s2434 + $0xa] sm:$0xff]
        %v3213 = vld [vmem:[%s2434 + $0x1a] sm:$0xff]
        %v3214 = vld [vmem:[%s2434 + $0x22] sm:$0xff]
        %v3215 = vld [vmem:[%s2434 + $0x32] sm:$0xff]
        %v3216 = vld [vmem:[%s2434 + $0x3a] sm:$0xff]
        %v3217 = vld [vmem:[%s2434 + $0x4a] sm:$0xff]
        %v3218 = vld [vmem:[%s2434 + $0x52] sm:$0xff]
        %v3219 = vld [vmem:[%s2434 + $0x62] sm:$0xff]
        %v3220 = vld [vmem:[%s2434 + $0x6a] sm:$0xff]
        %v3221 = vld [vmem:[%s2434 + $0x7a] sm:$0xff]
        %v3222 = vld [vmem:[%s2434 + $0x82] sm:$0xff]
        %v3223 = vld [vmem:[%s2434 + $0x92] sm:$0xff]
        %v3224 = vld [vmem:[%s2434 + $0x9a] sm:$0xff]
        %v3225 = vld [vmem:[%s2434 + $0xaa] sm:$0xff]
        %v3226 = vld [vmem:[%s2434 + $0xb2] sm:$0xff]
        %v3227 = vld [vmem:[%s2434 + $0xc2] sm:$0xff]
        %v3228 = vld [vmem:[%s2434 + $0xca] sm:$0xff]
        %v3229 = vld [vmem:[%s2434 + $0xda] sm:$0xff]
        %v3230 = vld [vmem:[%s2434 + $0xe2] sm:$0xff]
        %v3231 = vld [vmem:[%s2434 + $0xf2] sm:$0xff]
        %v3232 = vld [vmem:[%s2434 + $0xfa] sm:$0xff]
        %v3233 = vld [vmem:[%s2434 + $0x10a] sm:$0xff]
        %v3234 = vld [vmem:[%s2434 + $0x112] sm:$0xff]
        %v3235 = vld [vmem:[%s2434 + $0x122] sm:$0xff]
        %v3236 = vld [vmem:[%s2434 + $0x12a] sm:$0xff]
        %v3237 = vld [vmem:[%s2434 + $0x13a] sm:$0xff]
        %v3238 = vld [vmem:[%s2434 + $0x142] sm:$0xff]
        %v3239 = vld [vmem:[%s2434 + $0x152] sm:$0xff]
        %v3240 = vld [vmem:[%s2434 + $0x15a] sm:$0xff]
        %v3241 = vld [vmem:[%s2434 + $0x16a] sm:$0xff]
        %v3242 = vld [vmem:[%s2434 + $0x172] sm:$0xff]
        %s3243 = scalar_lea.vmem %s1, 128
        %v3244 = vld [vmem:[%s3243] sm:$0xff]
        %v3245 = vld [vmem:[%s3243 + $0x8] sm:$0xff]
        %v3247 = vsel %vm238, %v3211, 0
        %v3250 = vsel %vm238, %v3212, 0
        %v3253 = vsel %vm238, %v3213, 0
        %v3256 = vsel %vm238, %v3214, 0
        %v3259 = vsel %vm238, %v3215, 0
        %v3262 = vsel %vm238, %v3216, 0
        %v3265 = vsel %vm238, %v3217, 0
        %v3268 = vsel %vm238, %v3218, 0
        %v3271 = vsel %vm238, %v3219, 0
        %v3274 = vsel %vm238, %v3220, 0
        %v3277 = vsel %vm238, %v3221, 0
        %v3280 = vsel %vm238, %v3222, 0
        %v3283 = vsel %vm238, %v3223, 0
        %v3286 = vsel %vm238, %v3224, 0
        %v3289 = vsel %vm238, %v3225, 0
        %v3292 = vsel %vm238, %v3226, 0
        %v3295 = vsel %vm238, %v3227, 0
        %v3298 = vsel %vm238, %v3228, 0
        %v3301 = vsel %vm238, %v3229, 0
        %v3304 = vsel %vm238, %v3230, 0
        %v3307 = vsel %vm238, %v3231, 0
        %v3310 = vsel %vm238, %v3232, 0
        %v3313 = vsel %vm238, %v3233, 0
        %v3316 = vsel %vm238, %v3234, 0
        %v3319 = vsel %vm238, %v3235, 0
        %v3322 = vsel %vm238, %v3236, 0
        %v3325 = vsel %vm238, %v3237, 0
        %v3328 = vsel %vm238, %v3238, 0
        %v3331 = vsel %vm238, %v3239, 0
        %v3334 = vsel %vm238, %v3240, 0
        %v3337 = vsel %vm238, %v3241, 0
        %v3340 = vsel %vm238, %v3242, 0
        %3342 = vmatprep.subr.mxu0 0.0
        %3343 = vmatpush1.msra.mxu0 %v3244
        %3344 = vmatprep.subr.mxu0 0.0
        %3345 = vmatpush1.msra.mxu0 %v3245
        %3346 = vmatprep.subr.mxu0 0.0
        %3347 = vmatpush1.msra.mxu0 0.0
        %3348 = vmatprep.subr.mxu0 0.0
        %3349 = vmatpush1.msra.mxu0 0.0
        %3350 = vmatprep.subr.mxu0 0.0
        %3351 = vmatpush1.msra.mxu0 0.0
        %3352 = vmatprep.subr.mxu0 0.0
        %3353 = vmatpush1.msra.mxu0 0.0
        %3354 = vmatprep.subr.mxu0 0.0
        %3355 = vmatpush1.msra.mxu0 0.0
        %3356 = vmatprep.subr.mxu0 0.0
        %3357 = vmatpush1.msra.mxu0 0.0
        %3358 = vmatprep.subr.mxu0 0.0
        %3359 = vmatpush1.msra.mxu0 0.0
        %3360 = vmatprep.subr.mxu0 0.0
        %3361 = vmatpush1.msra.mxu0 0.0
        %3362 = vmatprep.subr.mxu0 0.0
        %3363 = vmatpush1.msra.mxu0 0.0
        %3364 = vmatprep.subr.mxu0 0.0
        %3365 = vmatpush1.msra.mxu0 0.0
        %3366 = vmatprep.subr.mxu0 0.0
        %3367 = vmatpush1.msra.mxu0 0.0
        %3368 = vmatprep.subr.mxu0 0.0
        %3369 = vmatpush1.msra.mxu0 0.0
        %3370 = vmatprep.subr.mxu0 0.0
        %3371 = vmatpush1.msra.mxu0 0.0
        %3372 = vmatprep.subr.mxu0 0.0
        %3373 = vmatpush1.msra.mxu0 0.0
        %3374 = vmatprep.subr.mxu0 0.0
        %3375 = vmatpush1.msra.mxu0 0.0
        %3376 = vmatprep.subr.mxu0 0.0
        %3377 = vmatpush1.msra.mxu0 0.0
        %3378 = vmatprep.subr.mxu0 0.0
        %3379 = vmatpush1.msra.mxu0 0.0
        %3380 = vmatprep.subr.mxu0 0.0
        %3381 = vmatpush1.msra.mxu0 0.0
        %3382 = vmatprep.subr.mxu0 0.0
        %3383 = vmatpush1.msra.mxu0 0.0
        %3384 = vmatprep.subr.mxu0 0.0
        %3385 = vmatpush1.msra.mxu0 0.0
        %3386 = vmatprep.subr.mxu0 0.0
        %3387 = vmatpush1.msra.mxu0 0.0
        %3388 = vmatprep.subr.mxu0 0.0
        %3389 = vmatpush1.msra.mxu0 0.0
        %3390 = vmatprep.subr.mxu0 0.0
        %3391 = vmatpush1.msra.mxu0 0.0
        %3392 = vmatprep.subr.mxu0 0.0
        %3393 = vmatpush1.msra.mxu0 0.0
        %3394 = vmatprep.subr.mxu0 0.0
        %3395 = vmatpush1.msra.mxu0 0.0
        %3396 = vmatprep.subr.mxu0 0.0
        %3397 = vmatpush1.msra.mxu0 0.0
        %3398 = vmatprep.subr.mxu0 0.0
        %3399 = vmatpush1.msra.mxu0 0.0
        %3400 = vmatprep.subr.mxu0 0.0
        %3401 = vmatpush1.msra.mxu0 0.0
        %3402 = vmatprep.subr.mxu0 0.0
        %3403 = vmatpush1.msra.mxu0 0.0
        %3404 = vmatprep.subr.mxu0 0.0
        %3405 = vmatpush1.msra.mxu0 0.0
        %3406 = vmatprep.mubr.f32.mxu0 0.0
        %3407 = vmatmul.mubr.f32.gmra.mrb[0].mxu0 %v3247
        %v3408 = vpop.f32.mrb[0].mxu0
        %v3409 = vadd.f32 0.0, %v3408
        %v3410 = vpop.f32.mrb[0].mxu0
        %3411 = vmatprep.mubr.f32.mxu0 0.0
        %3412 = vmatmul.mubr.f32.gmra.mrb[0].mxu0 %v3250
        %v3413 = vpop.f32.mrb[0].mxu0
        %v3414 = vadd.f32 0.0, %v3413
        %v3415 = vpop.f32.mrb[0].mxu0
        %3416 = vmatprep.mubr.f32.mxu0 0.0
        %3417 = vmatmul.mubr.f32.gmra.mrb[0].mxu0 %v3253
        %v3418 = vpop.f32.mrb[0].mxu0
        %v3419 = vadd.f32 0.0, %v3418
        %v3420 = vpop.f32.mrb[0].mxu0
        %3421 = vmatprep.mubr.f32.mxu0 0.0
        %3422 = vmatmul.mubr.f32.gmra.mrb[0].mxu0 %v3256
        %v3423 = vpop.f32.mrb[0].mxu0
        %v3424 = vadd.f32 0.0, %v3423
        %v3425 = vpop.f32.mrb[0].mxu0
        %3426 = vmatprep.mubr.f32.mxu0 0.0
        %3427 = vmatmul.mubr.f32.gmra.mrb[0].mxu0 %v3259
        %v3428 = vpop.f32.mrb[0].mxu0
        %v3429 = vadd.f32 0.0, %v3428
        %v3430 = vpop.f32.mrb[0].mxu0
        %3431 = vmatprep.mubr.f32.mxu0 0.0
        %3432 = vmatmul.mubr.f32.gmra.mrb[0].mxu0 %v3262
        %v3433 = vpop.f32.mrb[0].mxu0
        %v3434 = vadd.f32 0.0, %v3433
        %v3435 = vpop.f32.mrb[0].mxu0
        %3436 = vmatprep.mubr.f32.mxu0 0.0
        %3437 = vmatmul.mubr.f32.gmra.mrb[0].mxu0 %v3265
        %v3438 = vpop.f32.mrb[0].mxu0
        %v3439 = vadd.f32 0.0, %v3438
        %v3440 = vpop.f32.mrb[0].mxu0
        %3441 = vmatprep.mubr.f32.mxu0 0.0
        %3442 = vmatmul.mubr.f32.gmra.mrb[0].mxu0 %v3268
        %v3443 = vpop.f32.mrb[0].mxu0
        %v3444 = vadd.f32 0.0, %v3443
        %v3445 = vpop.f32.mrb[0].mxu0
        %3446 = vmatprep.mubr.f32.mxu0 0.0
        %3447 = vmatmul.mubr.f32.gmra.mrb[0].mxu0 %v3271
        %v3448 = vpop.f32.mrb[0].mxu0
        %v3449 = vadd.f32 0.0, %v3448
        %v3450 = vpop.f32.mrb[0].mxu0
        %3451 = vmatprep.mubr.f32.mxu0 0.0
        %3452 = vmatmul.mubr.f32.gmra.mrb[0].mxu0 %v3274
        %v3453 = vpop.f32.mrb[0].mxu0
        %v3454 = vadd.f32 0.0, %v3453
        %v3455 = vpop.f32.mrb[0].mxu0
        %3456 = vmatprep.mubr.f32.mxu0 0.0
        %3457 = vmatmul.mubr.f32.gmra.mrb[0].mxu0 %v3277
        %v3458 = vpop.f32.mrb[0].mxu0
        %v3459 = vadd.f32 0.0, %v3458
        %v3460 = vpop.f32.mrb[0].mxu0
        %3461 = vmatprep.mubr.f32.mxu0 0.0
        %3462 = vmatmul.mubr.f32.gmra.mrb[0].mxu0 %v3280
        %v3463 = vpop.f32.mrb[0].mxu0
        %v3464 = vadd.f32 0.0, %v3463
        %v3465 = vpop.f32.mrb[0].mxu0
        %3466 = vmatprep.mubr.f32.mxu0 0.0
        %3467 = vmatmul.mubr.f32.gmra.mrb[0].mxu0 %v3283
        %v3468 = vpop.f32.mrb[0].mxu0
        %v3469 = vadd.f32 0.0, %v3468
        %v3470 = vpop.f32.mrb[0].mxu0
        %3471 = vmatprep.mubr.f32.mxu0 0.0
        %3472 = vmatmul.mubr.f32.gmra.mrb[0].mxu0 %v3286
        %v3473 = vpop.f32.mrb[0].mxu0
        %v3474 = vadd.f32 0.0, %v3473
        %v3475 = vpop.f32.mrb[0].mxu0
        %3476 = vmatprep.mubr.f32.mxu0 0.0
        %3477 = vmatmul.mubr.f32.gmra.mrb[0].mxu0 %v3289
        %v3478 = vpop.f32.mrb[0].mxu0
        %v3479 = vadd.f32 0.0, %v3478
        %v3480 = vpop.f32.mrb[0].mxu0
        %3481 = vmatprep.mubr.f32.mxu0 0.0
        %3482 = vmatmul.mubr.f32.gmra.mrb[0].mxu0 %v3292
        %v3483 = vpop.f32.mrb[0].mxu0
        %v3484 = vadd.f32 0.0, %v3483
        %v3485 = vpop.f32.mrb[0].mxu0
        %3486 = vmatprep.mubr.f32.mxu0 0.0
        %3487 = vmatmul.mubr.f32.gmra.mrb[0].mxu0 %v3295
        %v3488 = vpop.f32.mrb[0].mxu0
        %v3489 = vadd.f32 0.0, %v3488
        %v3490 = vpop.f32.mrb[0].mxu0
        %3491 = vmatprep.mubr.f32.mxu0 0.0
        %3492 = vmatmul.mubr.f32.gmra.mrb[0].mxu0 %v3298
        %v3493 = vpop.f32.mrb[0].mxu0
        %v3494 = vadd.f32 0.0, %v3493
        %v3495 = vpop.f32.mrb[0].mxu0
        %3496 = vmatprep.mubr.f32.mxu0 0.0
        %3497 = vmatmul.mubr.f32.gmra.mrb[0].mxu0 %v3301
        %v3498 = vpop.f32.mrb[0].mxu0
        %v3499 = vadd.f32 0.0, %v3498
        %v3500 = vpop.f32.mrb[0].mxu0
        %3501 = vmatprep.mubr.f32.mxu0 0.0
        %3502 = vmatmul.mubr.f32.gmra.mrb[0].mxu0 %v3304
        %v3503 = vpop.f32.mrb[0].mxu0
        %v3504 = vadd.f32 0.0, %v3503
        %v3505 = vpop.f32.mrb[0].mxu0
        %3506 = vmatprep.mubr.f32.mxu0 0.0
        %3507 = vmatmul.mubr.f32.gmra.mrb[0].mxu0 %v3307
        %v3508 = vpop.f32.mrb[0].mxu0
        %v3509 = vadd.f32 0.0, %v3508
        %v3510 = vpop.f32.mrb[0].mxu0
        %3511 = vmatprep.mubr.f32.mxu0 0.0
        %3512 = vmatmul.mubr.f32.gmra.mrb[0].mxu0 %v3310
        %v3513 = vpop.f32.mrb[0].mxu0
        %v3514 = vadd.f32 0.0, %v3513
        %v3515 = vpop.f32.mrb[0].mxu0
        %3516 = vmatprep.mubr.f32.mxu0 0.0
        %3517 = vmatmul.mubr.f32.gmra.mrb[0].mxu0 %v3313
        %v3518 = vpop.f32.mrb[0].mxu0
        %v3519 = vadd.f32 0.0, %v3518
        %v3520 = vpop.f32.mrb[0].mxu0
        %3521 = vmatprep.mubr.f32.mxu0 0.0
        %3522 = vmatmul.mubr.f32.gmra.mrb[0].mxu0 %v3316
        %v3523 = vpop.f32.mrb[0].mxu0
        %v3524 = vadd.f32 0.0, %v3523
        %v3525 = vpop.f32.mrb[0].mxu0
        %3526 = vmatprep.mubr.f32.mxu0 0.0
        %3527 = vmatmul.mubr.f32.gmra.mrb[0].mxu0 %v3319
        %v3528 = vpop.f32.mrb[0].mxu0
        %v3529 = vadd.f32 0.0, %v3528
        %v3530 = vpop.f32.mrb[0].mxu0
        %3531 = vmatprep.mubr.f32.mxu0 0.0
        %3532 = vmatmul.mubr.f32.gmra.mrb[0].mxu0 %v3322
        %v3533 = vpop.f32.mrb[0].mxu0
        %v3534 = vadd.f32 0.0, %v3533
        %v3535 = vpop.f32.mrb[0].mxu0
        %3536 = vmatprep.mubr.f32.mxu0 0.0
        %3537 = vmatmul.mubr.f32.gmra.mrb[0].mxu0 %v3325
        %v3538 = vpop.f32.mrb[0].mxu0
        %v3539 = vadd.f32 0.0, %v3538
        %v3540 = vpop.f32.mrb[0].mxu0
        %3541 = vmatprep.mubr.f32.mxu0 0.0
        %3542 = vmatmul.mubr.f32.gmra.mrb[0].mxu0 %v3328
        %v3543 = vpop.f32.mrb[0].mxu0
        %v3544 = vadd.f32 0.0, %v3543
        %v3545 = vpop.f32.mrb[0].mxu0
        %3546 = vmatprep.mubr.f32.mxu0 0.0
        %3547 = vmatmul.mubr.f32.gmra.mrb[0].mxu0 %v3331
        %v3548 = vpop.f32.mrb[0].mxu0
        %v3549 = vadd.f32 0.0, %v3548
        %v3550 = vpop.f32.mrb[0].mxu0
        %3551 = vmatprep.mubr.f32.mxu0 0.0
        %3552 = vmatmul.mubr.f32.gmra.mrb[0].mxu0 %v3334
        %v3553 = vpop.f32.mrb[0].mxu0
        %v3554 = vadd.f32 0.0, %v3553
        %v3555 = vpop.f32.mrb[0].mxu0
        %3556 = vmatprep.mubr.f32.mxu0 0.0
        %3557 = vmatmul.mubr.f32.gmra.mrb[0].mxu0 %v3337
        %v3558 = vpop.f32.mrb[0].mxu0
        %v3559 = vadd.f32 0.0, %v3558
        %v3560 = vpop.f32.mrb[0].mxu0
        %3561 = vmatprep.mubr.f32.mxu0 0.0
        %3562 = vmatmul.mubr.f32.gmra.mrb[0].mxu0 %v3340
        %v3563 = vpop.f32.mrb[0].mxu0
        %v3564 = vadd.f32 0.0, %v3563
        %v3565 = vpop.f32.mrb[0].mxu0
        %3566 = vdwg.mxu0
        %v3567 = vadd.f32 %v3179, %v3409
        %v3568 = vadd.f32 %v3180, %v3414
        %v3569 = vadd.f32 %v3181, %v3419
        %v3570 = vadd.f32 %v3182, %v3424
        %v3571 = vadd.f32 %v3183, %v3429
        %v3572 = vadd.f32 %v3184, %v3434
        %v3573 = vadd.f32 %v3185, %v3439
        %v3574 = vadd.f32 %v3186, %v3444
        %v3575 = vadd.f32 %v3187, %v3449
        %v3576 = vadd.f32 %v3188, %v3454
        %v3577 = vadd.f32 %v3189, %v3459
        %v3578 = vadd.f32 %v3190, %v3464
        %v3579 = vadd.f32 %v3191, %v3469
        %v3580 = vadd.f32 %v3192, %v3474
        %v3581 = vadd.f32 %v3193, %v3479
        %v3582 = vadd.f32 %v3194, %v3484
        %v3583 = vadd.f32 %v3195, %v3489
        %v3584 = vadd.f32 %v3196, %v3494
        %v3585 = vadd.f32 %v3197, %v3499
        %v3586 = vadd.f32 %v3198, %v3504
        %v3587 = vadd.f32 %v3199, %v3509
        %v3588 = vadd.f32 %v3200, %v3514
        %v3589 = vadd.f32 %v3201, %v3519
        %v3590 = vadd.f32 %v3202, %v3524
        %v3591 = vadd.f32 %v3203, %v3529
        %v3592 = vadd.f32 %v3204, %v3534
        %v3593 = vadd.f32 %v3205, %v3539
        %v3594 = vadd.f32 %v3206, %v3544
        %v3595 = vadd.f32 %v3207, %v3549
        %v3596 = vadd.f32 %v3208, %v3554
        %v3597 = vadd.f32 %v3209, %v3559
        %v3598 = vadd.f32 %v3210, %v3564
        %v3599 = vld [vmem:[%s2] sm:$0x1]
        %v3601 = vlaneseq
        %v3602 = vshrl.u32 %v3601, 7
        %v3603 = vsub.s32 0, %v3602
        %v3604 = vrot.slane %v3599, %v3603
        %v3606 = vadd.f32 %v3567, %v3604
        %v3607 = vadd.f32 %v3568, %v3604
        %v3608 = vadd.f32 %v3569, %v3604
        %v3609 = vadd.f32 %v3570, %v3604
        %v3610 = vadd.f32 %v3571, %v3604
        %v3611 = vadd.f32 %v3572, %v3604
        %v3612 = vadd.f32 %v3573, %v3604
        %v3613 = vadd.f32 %v3574, %v3604
        %v3614 = vadd.f32 %v3575, %v3604
        %v3615 = vadd.f32 %v3576, %v3604
        %v3616 = vadd.f32 %v3577, %v3604
        %v3617 = vadd.f32 %v3578, %v3604
        %v3618 = vadd.f32 %v3579, %v3604
        %v3619 = vadd.f32 %v3580, %v3604
        %v3620 = vadd.f32 %v3581, %v3604
        %v3621 = vadd.f32 %v3582, %v3604
        %v3622 = vadd.f32 %v3583, %v3604
        %v3623 = vadd.f32 %v3584, %v3604
        %v3624 = vadd.f32 %v3585, %v3604
        %v3625 = vadd.f32 %v3586, %v3604
        %v3626 = vadd.f32 %v3587, %v3604
        %v3627 = vadd.f32 %v3588, %v3604
        %v3628 = vadd.f32 %v3589, %v3604
        %v3629 = vadd.f32 %v3590, %v3604
        %v3630 = vadd.f32 %v3591, %v3604
        %v3631 = vadd.f32 %v3592, %v3604
        %v3632 = vadd.f32 %v3593, %v3604
        %v3633 = vadd.f32 %v3594, %v3604
        %v3634 = vadd.f32 %v3595, %v3604
        %v3635 = vadd.f32 %v3596, %v3604
        %v3636 = vadd.f32 %v3597, %v3604
        %v3637 = vadd.f32 %v3598, %v3604
        %3638 = vst.msk [vmem:[%s163] sm:$0xff] %vm238, %v3606
        %3639 = vst.msk [vmem:[%s163 + $0x8] sm:$0xff] %vm238, %v3607
        %3640 = vst.msk [vmem:[%s163 + $0x10] sm:$0xff] %vm238, %v3608
        %3641 = vst.msk [vmem:[%s163 + $0x18] sm:$0xff] %vm238, %v3609
        %3642 = vst.msk [vmem:[%s163 + $0x20] sm:$0xff] %vm238, %v3610
        %3643 = vst.msk [vmem:[%s163 + $0x28] sm:$0xff] %vm238, %v3611
        %3644 = vst.msk [vmem:[%s163 + $0x30] sm:$0xff] %vm238, %v3612
        %3645 = vst.msk [vmem:[%s163 + $0x38] sm:$0xff] %vm238, %v3613
        %3646 = vst.msk [vmem:[%s163 + $0x40] sm:$0xff] %vm238, %v3614
        %3647 = vst.msk [vmem:[%s163 + $0x48] sm:$0xff] %vm238, %v3615
        %3648 = vst.msk [vmem:[%s163 + $0x50] sm:$0xff] %vm238, %v3616
        %3649 = vst.msk [vmem:[%s163 + $0x58] sm:$0xff] %vm238, %v3617
        %3650 = vst.msk [vmem:[%s163 + $0x60] sm:$0xff] %vm238, %v3618
        %3651 = vst.msk [vmem:[%s163 + $0x68] sm:$0xff] %vm238, %v3619
        %3652 = vst.msk [vmem:[%s163 + $0x70] sm:$0xff] %vm238, %v3620
        %3653 = vst.msk [vmem:[%s163 + $0x78] sm:$0xff] %vm238, %v3621
        %3654 = vst.msk [vmem:[%s163 + $0x80] sm:$0xff] %vm238, %v3622
        %3655 = vst.msk [vmem:[%s163 + $0x88] sm:$0xff] %vm238, %v3623
        %3656 = vst.msk [vmem:[%s163 + $0x90] sm:$0xff] %vm238, %v3624
        %3657 = vst.msk [vmem:[%s163 + $0x98] sm:$0xff] %vm238, %v3625
        %3658 = vst.msk [vmem:[%s163 + $0xa0] sm:$0xff] %vm238, %v3626
        %3659 = vst.msk [vmem:[%s163 + $0xa8] sm:$0xff] %vm238, %v3627
        %3660 = vst.msk [vmem:[%s163 + $0xb0] sm:$0xff] %vm238, %v3628
        %3661 = vst.msk [vmem:[%s163 + $0xb8] sm:$0xff] %vm238, %v3629
        %3662 = vst.msk [vmem:[%s163 + $0xc0] sm:$0xff] %vm238, %v3630
        %3663 = vst.msk [vmem:[%s163 + $0xc8] sm:$0xff] %vm238, %v3631
        %3664 = vst.msk [vmem:[%s163 + $0xd0] sm:$0xff] %vm238, %v3632
        %3665 = vst.msk [vmem:[%s163 + $0xd8] sm:$0xff] %vm238, %v3633
        %3666 = vst.msk [vmem:[%s163 + $0xe0] sm:$0xff] %vm238, %v3634
        %3667 = vst.msk [vmem:[%s163 + $0xe8] sm:$0xff] %vm238, %v3635
        %3668 = vst.msk [vmem:[%s163 + $0xf0] sm:$0xff] %vm238, %v3636
        %3669 = vst.msk [vmem:[%s163 + $0xf8] sm:$0xff] %vm238, %v3637
        %s3670 = sand.u32 %s93, 1
        %s3671 = scalar_lea.sflag [#allocation3], %s3670
        %s3672 = sand.u32 %s93, 1
        %s3673 = smul.addr %s3672, 256
        %s3674 = scalar_lea.vmem [#allocation2], %s3673
        // Predicated region
        $region33: #{tpu_custom_call.1} parent=31 // pred_check
          %p3675 = pneg %p103
        $region34: #{tpu_custom_call.1} parent=31 // pred_check_branch
          %3677 = sbr.rel (%p3675) target = $region36
        $region35: #{tpu_custom_call.1} parent=31 // pred_region
          %s3679 = ssub.s32 4096, 4096
          %3680 = vsyncadd %s3671, %s3679
          %s3681 = smul.addr %s17, 32
          %s3682 = smul.addr %s3681, 128
          %s3683 = scalar_lea.hbm %s3, %s3682
          %s3684 = sshll.u32 %s3674, 4
          %s3685 = int_to_ptr.vmem [resolvable:$true] %s3684
          %3690 = dma.vmem_to_hbm [thread:$0]  %s3685, 4096, %s3683, %s3671, 128, 128, 8
        $region36: #{tpu_custom_call.1} parent=31 // pred_fallthru
          _
      $region32: #{tpu_custom_call.1} parent=5 // pred_fallthru
        _
      %p3691 = scmp.le.s32.totalorder 2, %s12
      // Predicated region
      $region37: #{tpu_custom_call.1} parent=5 // pred_check
        %p3692 = pneg %p3691
      $region38: #{tpu_custom_call.1} parent=5 // pred_check_branch
        %3694 = sbr.rel (%p3692) target = $region40
      $region39: #{tpu_custom_call.1} parent=5 // pred_region
        %s3695 = ssub.s32 %s12, 2
        // Predicated region
        $region41: #{tpu_custom_call.1} parent=39 // pred_check
          %p3696 = pneg %p109
        $region42: #{tpu_custom_call.1} parent=39 // pred_check_branch
          %3698 = sbr.rel (%p3696) target = $region44
        $region43: #{tpu_custom_call.1} parent=39 // pred_region
          %s3699 = sand.u32 %s94, 1
          %s3700 = scalar_lea.sflag [#allocation3], %s3699
          %s3701 = sand.u32 %s94, 1
          %s3702 = smul.addr %s3701, 256
          %s3703 = scalar_lea.vmem [#allocation2], %s3702
          %3704 = dma.done %s3700, 4096
        $region44: #{tpu_custom_call.1} parent=39 // pred_fallthru
          _
      $region40: #{tpu_custom_call.1} parent=5 // pred_fallthru
        _
    $region6: #{tpu_custom_call.1} parent=1 // loop_footer
      %s16 = sadd.s32 1, %s12
    $region7: #{tpu_custom_call.1} parent=1 // loop_footer_branch
      %11 = sbr.rel target = $region3
    $region8: #{tpu_custom_call.1} parent=1 // loop_exit
      _
    %3705 = vsyncpa [#allocation3], 1
    %s3706 = scalar_lea.sflag [#allocation3], 1
    %3707 = vsyncpa %s3706, 1

</llo_original>
